<compile_context>
chip_gen: v5e
topology: v5e:2x2
jax: 0.10.0
libtpu: 0.0.40
codegen_flags: <defaults>
</compile_context>

<pallas_src>
import functools

import numpy as np
import jax
import jax.numpy as jnp
from jax import lax
from jax.experimental import pallas as pl
from jax.experimental.pallas import tpu as pltpu

# ---- Hyperparameters copied from the reference script -----------------------
D_COEF = 0.01
DT = 0.01
DOMAIN = [-1, 1]
N_DX_ELEMENTS = 100
DX = (DOMAIN[1] - DOMAIN[0]) / N_DX_ELEMENTS
TIME_CHUNKS = 1
ALPHA = 0.1 * DT / (2 * DX)          # 0.025
BETA = D_COEF * DT / DX ** 2         # 0.25

_LANE = 128   # lane width (images per lane group)
_SUB = 8      # sublane depth (image groups per vreg)


def _round_up(a, b):
    return -(-a // b) * b


# ---- Pallas kernel -----------------------------------------------------------
def _diffeq_kernel(x_ref, o_ref, xp_ref, *, taps, time_chunks, H, W):
    """Fused diffusion/advection update, repeated `time_chunks` times.

    x_ref : (H, W, G, 128)       VMEM -- input block, batch-minor (lane-dense).
    o_ref : (H, W, G, 128)       VMEM -- output block.
    xp_ref: (H+2, W+2, G, 128)   VMEM -- scratch holding the zero-padded state.
    taps  : compile-time tuple of (di, dj, weight) for the nonzero taps of the
            fused 3x3 stencil  I + beta*K_lap - alpha*K_grad.
    """
    G = x_ref.shape[2]
    L = x_ref.shape[3]

    # Border-only zeroing of the padded scratch (Conv2d padding=1 semantics).
    # Done every grid step: under 'parallel' sharding each core owns its own
    # scratch, and these 4 strips are cheap compared to a full clear.
    zrow = jnp.zeros((1, W + 2, G, L), jnp.float32)
    zcol = jnp.zeros((H + 2, 1, G, L), jnp.float32)
    xp_ref[0:1, :, :, :] = zrow
    xp_ref[H + 1:H + 2, :, :, :] = zrow
    xp_ref[:, 0:1, :, :] = zcol
    xp_ref[:, W + 1:W + 2, :, :] = zcol
    # Interior copy (border stays zero for the whole time loop).
    xp_ref[1:H + 1, 1:W + 1, :, :] = x_ref[...]

    def stencil():
        # All shifts are along the outer H/W dims -> pure address offsets, no
        # lane/sublane retiling.  Weights are baked compile-time constants.
        di0, dj0, w0 = taps[0]
        acc = w0 * xp_ref[di0:di0 + H, dj0:dj0 + W, :, :]
        for di, dj, w in taps[1:]:
            acc = acc + w * xp_ref[di:di + H, dj:dj + W, :, :]
        return acc

    n_inner = time_chunks - 1
    if 0 < n_inner <= 8:
        # Small trip count: unrolled (LLO sees straight-line code).
        for _ in range(n_inner):
            xp_ref[1:H + 1, 1:W + 1, :, :] = stencil()
    elif n_inner > 8:
        # Large trip count: visible loop keeps code size / live ranges flat.
        def body(_, carry):
            xp_ref[1:H + 1, 1:W + 1, :, :] = stencil()
            return carry
        lax.fori_loop(0, n_inner, body, 0, unroll=False)

    # Final chunk writes straight from the accumulator to the lane-dense output.
    o_ref[...] = stencil().astype(o_ref.dtype)


# ---- Wrapper -----------------------------------------------------------------
def neural_diffeq_forward(x, w_lap, w_grad, *,
                          alpha=ALPHA, beta=BETA, time_chunks=TIME_CHUNKS,
                          group_block=None):
    """x: (N, C=1, H, W) float32; w_lap / w_grad: concrete (3, 3) Conv2d weights."""
    N, C, H, W = x.shape
    assert C == 1, "module uses Conv2d(1, 1, ...)"
    NC = N * C
    time_chunks = int(time_chunks)
    if time_chunks <= 0:
        return x.astype(jnp.float32)

    # Fuse residual + both stencils into one 3x3 kernel (exact by linearity of
    # conv) and bake the taps as compile-time constants; drop zero taps.
    # NOTE: weights must be concrete here (init_kernels is deterministic).
    wl = np.asarray(w_lap, dtype=np.float32)
    wg = np.asarray(w_grad, dtype=np.float32)
    w_comb = (np.float32(beta) * wl - np.float32(alpha) * wg).astype(np.float32)
    w_comb[1, 1] += np.float32(1.0)          # identity (residual) tap
    taps = tuple((di, dj, float(w_comb[di, dj]))
                 for di in range(3) for dj in range(3)
                 if float(w_comb[di, dj]) != 0.0)
    if not taps:                              # degenerate: all-zero stencil
        return jnp.zeros_like(x, dtype=jnp.float32)

    # ---- batch-minor, lane-dense layout -------------------------------------
    # Images map to (sublane, lane) = (group, 128); H and W stay outer dims.
    Gtn = -(-NC // _LANE)                     # 128-image groups needed
    budget = 10 * 1024 * 1024                 # fits v5e's 16 MiB scoped default
    per_g = (4 * H * W + (H + 2) * (W + 2)) * _LANE * 4   # 2*in + 2*out + scratch
    if group_block is not None:
        Gb = max(1, int(group_block))
    elif Gtn <= _SUB:
        Gb = Gtn                              # block == full group dim (small batch)
    else:
        # Full (8,128) vreg density; grow to 16 groups when the budget allows,
        # keeping grid length >= 2 so both v7x TensorCores get work.
        Gb = 16 if (Gtn >= 32 and 16 * per_g <= budget) else _SUB
    G_total = _round_up(Gtn, Gb)
    NCp = G_total * _LANE

    x_flat = x.reshape(NC, H, W).astype(jnp.float32)
    if NCp != NC:
        x_flat = jnp.pad(x_flat, ((0, NCp - NC), (0, 0), (0, 0)))
    # Layout plumbing in the wrapper (cheap XLA ops) so the kernel sees a
    # lane-dense slab: (H, W, G_total, 128).
    x_hwb = jnp.transpose(x_flat, (1, 2, 0)).reshape(H, W, G_total, _LANE)

    # VMEM estimate including (8,128) sublane padding of the group dim; raise
    # the scoped limit only when needed (kept well under v7x's 64 MiB physical).
    gb_pad = _round_up(Gb, _SUB)
    est = (4 * H * W + (H + 2) * (W + 2)) * gb_pad * _LANE * 4
    cp_kwargs = dict(dimension_semantics=("parallel",))
    if est > 12 * 1024 * 1024:
        cp_kwargs["vmem_limit_bytes"] = int(min(est + (4 << 20), 100 << 20))

    kern = functools.partial(_diffeq_kernel, taps=taps,
                             time_chunks=time_chunks, H=H, W=W)

    out = pl.pallas_call(
        kern,
        out_shape=jax.ShapeDtypeStruct((H, W, G_total, _LANE), jnp.float32),
        grid=(G_total // Gb,),
        in_specs=[pl.BlockSpec((H, W, Gb, _LANE), lambda g: (0, 0, g, 0))],
        out_specs=pl.BlockSpec((H, W, Gb, _LANE), lambda g: (0, 0, g, 0)),
        scratch_shapes=[pltpu.VMEM((H + 2, W + 2, Gb, _LANE), jnp.float32)],
        compiler_params=pltpu.CompilerParams(**cp_kwargs),
    )(x_hwb)

    out_flat = jnp.transpose(out.reshape(H, W, NCp), (2, 0, 1))[:NC]
    return out_flat.reshape(N, C, H, W)


# ---- Pure-JAX reference (for verification) -----------------------------------
def _reference(x, w_lap, w_grad, *, alpha=ALPHA, beta=BETA,
               time_chunks=TIME_CHUNKS):
    wl = jnp.asarray(w_lap, jnp.float32).reshape(1, 1, 3, 3)
    wg = jnp.asarray(w_grad, jnp.float32).reshape(1, 1, 3, 3)
    dn = ("NCHW", "OIHW", "NCHW")
    for _ in range(time_chunks):
        lap = jax.lax.conv_general_dilated(x, wl, (1, 1), ((1, 1), (1, 1)),
                                           dimension_numbers=dn)
        grad = jax.lax.conv_general_dilated(x, wg, (1, 1), ((1, 1), (1, 1)),
                                            dimension_numbers=dn)
        x = x + beta * lap - alpha * grad
    return x


if __name__ == "__main__":
    key = jax.random.PRNGKey(0)

    # Deterministic parameter initialization (init_kernels): fixed stencils.
    w_lap = np.array([[0.0, 1.0, 0.0],
                      [1.0, -4.0, 1.0],
                      [0.0, 1.0, 0.0]], dtype=np.float32)
    w_grad = np.array([[0.0, -1.0, 0.0],
                       [-1.0, 0.0, 1.0],
                       [0.0, 1.0, 0.0]], dtype=np.float32)

    # Small example input consistent with Conv2d(1, 1, ...): NCHW = (2, 1, 16, 16)
    x = jax.random.normal(key, (2, 1, 16, 16), dtype=jnp.float32)

    out = jax.block_until_ready(neural_diffeq_forward(x, w_lap, w_grad))

    ref = _reference(x, w_lap, w_grad)
    assert out.shape == ref.shape == x.shape
    assert jnp.allclose(out, ref, atol=1e-5, rtol=1e-5), "mismatch vs reference"

    print("KERNEL_OK")
</pallas_src>

<mosaic_0001>
module attributes {stable_mosaic.version = 11 : i64} {
  func.func @_diffeq_kernel(%arg0: i32, %arg1: memref<16x16x1x128xf32, #tpu.memory_space<vmem>>, %arg2: memref<16x16x1x128xf32, #tpu.memory_space<vmem>>, %arg3: memref<18x18x1x128xf32, #tpu.memory_space<vmem>>) attributes {dimension_semantics = [#tpu.dimension_semantics<parallel>], iteration_bounds = array<i64: 1>, scalar_prefetch = 0 : i64, scratch_operands = 1 : i64, tpu.core_type = #tpu.core_type<tc>, window_params = [{transform_indices = @transform_0, window_bounds = array<i64: 16, 16, 1, 128>}, {transform_indices = @transform_1, window_bounds = array<i64: 16, 16, 1, 128>}]} {
    %cst = arith.constant 0.000000e+00 : f32
    %0 = vector.broadcast %cst : f32 to vector<1x18x1x128xf32>
    %cst_0 = arith.constant 0.000000e+00 : f32
    %1 = vector.broadcast %cst_0 : f32 to vector<18x1x1x128xf32>
    %c0 = arith.constant 0 : index
    %c0_1 = arith.constant 0 : index
    %c0_2 = arith.constant 0 : index
    %c0_3 = arith.constant 0 : index
    %2 = vector.load %arg3[%c0, %c0_1, %c0_2, %c0_3] : memref<18x18x1x128xf32, #tpu.memory_space<vmem>>, vector<1x18x1x128xf32>
    tpu.vector_store %arg3[%c0, %c0_1, %c0_2, %c0_3], %0 {strides = array<i32>} : memref<18x18x1x128xf32, #tpu.memory_space<vmem>>, vector<1x18x1x128xf32>,
    %c17 = arith.constant 17 : index
    %c0_4 = arith.constant 0 : index
    %c0_5 = arith.constant 0 : index
    %c0_6 = arith.constant 0 : index
    %3 = vector.load %arg3[%c17, %c0_4, %c0_5, %c0_6] : memref<18x18x1x128xf32, #tpu.memory_space<vmem>>, vector<1x18x1x128xf32>
    tpu.vector_store %arg3[%c17, %c0_4, %c0_5, %c0_6], %0 {strides = array<i32>} : memref<18x18x1x128xf32, #tpu.memory_space<vmem>>, vector<1x18x1x128xf32>,
    %c0_7 = arith.constant 0 : index
    %c0_8 = arith.constant 0 : index
    %c0_9 = arith.constant 0 : index
    %c0_10 = arith.constant 0 : index
    %4 = vector.load %arg3[%c0_7, %c0_8, %c0_9, %c0_10] : memref<18x18x1x128xf32, #tpu.memory_space<vmem>>, vector<18x1x1x128xf32>
    tpu.vector_store %arg3[%c0_7, %c0_8, %c0_9, %c0_10], %1 {strides = array<i32>} : memref<18x18x1x128xf32, #tpu.memory_space<vmem>>, vector<18x1x1x128xf32>,
    %c0_11 = arith.constant 0 : index
    %c17_12 = arith.constant 17 : index
    %c0_13 = arith.constant 0 : index
    %c0_14 = arith.constant 0 : index
    %5 = vector.load %arg3[%c0_11, %c17_12, %c0_13, %c0_14] : memref<18x18x1x128xf32, #tpu.memory_space<vmem>>, vector<18x1x1x128xf32>
    tpu.vector_store %arg3[%c0_11, %c17_12, %c0_13, %c0_14], %1 {strides = array<i32>} : memref<18x18x1x128xf32, #tpu.memory_space<vmem>>, vector<18x1x1x128xf32>,
    %c0_15 = arith.constant 0 : index
    %c0_16 = arith.constant 0 : index
    %c0_17 = arith.constant 0 : index
    %c0_18 = arith.constant 0 : index
    %6 = vector.load %arg1[%c0_15, %c0_16, %c0_17, %c0_18] : memref<16x16x1x128xf32, #tpu.memory_space<vmem>>, vector<16x16x1x128xf32>
    %c1 = arith.constant 1 : index
    %c1_19 = arith.constant 1 : index
    %c0_20 = arith.constant 0 : index
    %c0_21 = arith.constant 0 : index
    %7 = vector.load %arg3[%c1, %c1_19, %c0_20, %c0_21] : memref<18x18x1x128xf32, #tpu.memory_space<vmem>>, vector<16x16x1x128xf32>
    tpu.vector_store %arg3[%c1, %c1_19, %c0_20, %c0_21], %6 {strides = array<i32>} : memref<18x18x1x128xf32, #tpu.memory_space<vmem>>, vector<16x16x1x128xf32>,
    %c0_22 = arith.constant 0 : index
    %c1_23 = arith.constant 1 : index
    %c0_24 = arith.constant 0 : index
    %c0_25 = arith.constant 0 : index
    %8 = vector.load %arg3[%c0_22, %c1_23, %c0_24, %c0_25] : memref<18x18x1x128xf32, #tpu.memory_space<vmem>>, vector<16x16x1x128xf32>
    %cst_26 = arith.constant 2.750000e-01 : f32
    %9 = vector.broadcast %cst_26 : f32 to vector<16x16x1x128xf32>
    %10 = arith.mulf %9, %8 : vector<16x16x1x128xf32>
    %c1_27 = arith.constant 1 : index
    %c0_28 = arith.constant 0 : index
    %c0_29 = arith.constant 0 : index
    %c0_30 = arith.constant 0 : index
    %11 = vector.load %arg3[%c1_27, %c0_28, %c0_29, %c0_30] : memref<18x18x1x128xf32, #tpu.memory_space<vmem>>, vector<16x16x1x128xf32>
    %cst_31 = arith.constant 2.750000e-01 : f32
    %12 = vector.broadcast %cst_31 : f32 to vector<16x16x1x128xf32>
    %13 = arith.mulf %12, %11 : vector<16x16x1x128xf32>
    %14 = arith.addf %10, %13 : vector<16x16x1x128xf32>
    %c1_32 = arith.constant 1 : index
    %c2 = arith.constant 2 : index
    %c0_33 = arith.constant 0 : index
    %c0_34 = arith.constant 0 : index
    %15 = vector.load %arg3[%c1_32, %c2, %c0_33, %c0_34] : memref<18x18x1x128xf32, #tpu.memory_space<vmem>>, vector<16x16x1x128xf32>
    %cst_35 = arith.constant 2.250000e-01 : f32
    %16 = vector.broadcast %cst_35 : f32 to vector<16x16x1x128xf32>
    %17 = arith.mulf %16, %15 : vector<16x16x1x128xf32>
    %18 = arith.addf %14, %17 : vector<16x16x1x128xf32>
    %c2_36 = arith.constant 2 : index
    %c1_37 = arith.constant 1 : index
    %c0_38 = arith.constant 0 : index
    %c0_39 = arith.constant 0 : index
    %19 = vector.load %arg3[%c2_36, %c1_37, %c0_38, %c0_39] : memref<18x18x1x128xf32, #tpu.memory_space<vmem>>, vector<16x16x1x128xf32>
    %cst_40 = arith.constant 2.250000e-01 : f32
    %20 = vector.broadcast %cst_40 : f32 to vector<16x16x1x128xf32>
    %21 = arith.mulf %20, %19 : vector<16x16x1x128xf32>
    %22 = arith.addf %18, %21 : vector<16x16x1x128xf32>
    %c0_41 = arith.constant 0 : index
    %c0_42 = arith.constant 0 : index
    %c0_43 = arith.constant 0 : index
    %c0_44 = arith.constant 0 : index
    %23 = vector.load %arg2[%c0_41, %c0_42, %c0_43, %c0_44] : memref<16x16x1x128xf32, #tpu.memory_space<vmem>>, vector<16x16x1x128xf32>
    tpu.vector_store %arg2[%c0_41, %c0_42, %c0_43, %c0_44], %22 {strides = array<i32>} : memref<16x16x1x128xf32, #tpu.memory_space<vmem>>, vector<16x16x1x128xf32>,
    return
  }
  func.func @transform_0(%arg0: i32) -> (i32, i32, i32, i32) {
    %c0_i32 = arith.constant 0 : i32
    %c0_i32_0 = arith.constant 0 : i32
    %c0_i32_1 = arith.constant 0 : i32
    %c0_i32_2 = arith.constant 0 : i32
    return %c0_i32, %c0_i32_0, %arg0, %c0_i32_1 : i32, i32, i32, i32
  }
  func.func @transform_1(%arg0: i32) -> (i32, i32, i32, i32) {
    %c0_i32 = arith.constant 0 : i32
    %c0_i32_0 = arith.constant 0 : i32
    %c0_i32_1 = arith.constant 0 : i32
    %c0_i32_2 = arith.constant 0 : i32
    return %c0_i32, %c0_i32_0, %arg0, %c0_i32_1 : i32, i32, i32, i32
  }
}

</mosaic_0001>

<llo_original>
// kernel: tpu_custom_call.1
$region0: #{tpu_custom_call.1}
  #allocation0 [shape = 'u32[]', space=smem, size = 0x4, offset = 0x4, fixed_abs, tag = 'smem constant byte address 0x4 - core index']
  #allocation1 [shape = 'u32[72,128]{1,0:T(1,128)}', space=vmem, size = 0x9000, scoped, tag = 'internal scratch']
  #allocation2 [shape = 'f32[18,18,1,128]{3,2,1,0:T(1,128)}', space=vmem, size = 0x28800, scoped, tag = 'scratch operand']
  %s0 = inlined_call_operand.hbm [shape: f32[16,16,1,128], index: 0, kind: input, shape index: {}]
  %s1 = inlined_call_operand.hbm [shape: f32[16,16,1,128], index: 1, kind: output, shape index: {}]
  %s2 = sld [smem:[#allocation0]]
  $region18: #{tpu_custom_call.1} parent=0
    _
  %s4 = ssub.s32 1, %s2
  %s5 = scalar_select 0, %s4, %s2
  $region1: #{tpu_custom_call.1} parent=0
    #allocation3 [shape = 'u8[131072]{0}', space=vmem, size = 0x20000, scoped, tag = 'input window, operand 0, single buffered']
    #allocation4 [shape = 's32[1]{0}', space=sflag, size = 0x4, scoped, tag = 'scoped memory for tpu_custom_call.1']
    #allocation5 [shape = 's32[1]{0}', space=sflag, size = 0x4, scoped, tag = 'scoped memory for tpu_custom_call.1']
    #allocation6 [shape = 'u8[131072]{0}', space=vmem, size = 0x20000, scoped, tag = 'output window, operand 0, single buffered']
    %6 = vsyncpa [#allocation4], 0
    %7 = vsyncpa [#allocation5], 0
    // Predicated region
    $region2: #{tpu_custom_call.1} parent=1 // pred_check
      _
    $region3: #{tpu_custom_call.1} parent=1 // pred_check_branch
      %9 = sbr.rel (0) target = $region5
    $region4: #{tpu_custom_call.1} parent=1 // pred_region
      %11 = vsyncadd [#allocation4], 0
      %s12 = sshll.u32 %s0, 4
      %s13 = int_to_ptr.hbm [resolvable:$true] %s12
      %s14 = sshll.u32 [#allocation3], 4
      %s15 = int_to_ptr.vmem [resolvable:$true] %s14
      %20 = dma.hbm_to_vmem [thread:$0]  %s13, 4096, %s15, [#allocation4], 16, 16, 1
    $region5: #{tpu_custom_call.1} parent=1 // pred_fallthru
      _
    // Predicated region
    $region6: #{tpu_custom_call.1} parent=1 // pred_check
      _
    $region7: #{tpu_custom_call.1} parent=1 // pred_check_branch
      %22 = sbr.rel (0) target = $region9
    $region8: #{tpu_custom_call.1} parent=1 // pred_region
      %24 = dma.done [#allocation4], 4096
    $region9: #{tpu_custom_call.1} parent=1 // pred_fallthru
      _
    %25 = vst [vmem:[#allocation2] sm:$0x1] 0.0
    %26 = vst [vmem:[#allocation2 + $0x1] sm:$0x1] 0.0
    %27 = vst [vmem:[#allocation2 + $0x2] sm:$0x1] 0.0
    %28 = vst [vmem:[#allocation2 + $0x3] sm:$0x1] 0.0
    %29 = vst [vmem:[#allocation2 + $0x4] sm:$0x1] 0.0
    %30 = vst [vmem:[#allocation2 + $0x5] sm:$0x1] 0.0
    %31 = vst [vmem:[#allocation2 + $0x6] sm:$0x1] 0.0
    %32 = vst [vmem:[#allocation2 + $0x7] sm:$0x1] 0.0
    %33 = vst [vmem:[#allocation2 + $0x8] sm:$0x1] 0.0
    %34 = vst [vmem:[#allocation2 + $0x9] sm:$0x1] 0.0
    %35 = vst [vmem:[#allocation2 + $0xa] sm:$0x1] 0.0
    %36 = vst [vmem:[#allocation2 + $0xb] sm:$0x1] 0.0
    %37 = vst [vmem:[#allocation2 + $0xc] sm:$0x1] 0.0
    %38 = vst [vmem:[#allocation2 + $0xd] sm:$0x1] 0.0
    %39 = vst [vmem:[#allocation2 + $0xe] sm:$0x1] 0.0
    %40 = vst [vmem:[#allocation2 + $0xf] sm:$0x1] 0.0
    %41 = vst [vmem:[#allocation2 + $0x10] sm:$0x1] 0.0
    %42 = vst [vmem:[#allocation2 + $0x11] sm:$0x1] 0.0
    %s43 = scalar_lea.vmem [#allocation2], 306
    %44 = vst [vmem:[%s43] sm:$0x1] 0.0
    %45 = vst [vmem:[%s43 + $0x1] sm:$0x1] 0.0
    %46 = vst [vmem:[%s43 + $0x2] sm:$0x1] 0.0
    %47 = vst [vmem:[%s43 + $0x3] sm:$0x1] 0.0
    %48 = vst [vmem:[%s43 + $0x4] sm:$0x1] 0.0
    %49 = vst [vmem:[%s43 + $0x5] sm:$0x1] 0.0
    %50 = vst [vmem:[%s43 + $0x6] sm:$0x1] 0.0
    %51 = vst [vmem:[%s43 + $0x7] sm:$0x1] 0.0
    %52 = vst [vmem:[%s43 + $0x8] sm:$0x1] 0.0
    %53 = vst [vmem:[%s43 + $0x9] sm:$0x1] 0.0
    %54 = vst [vmem:[%s43 + $0xa] sm:$0x1] 0.0
    %55 = vst [vmem:[%s43 + $0xb] sm:$0x1] 0.0
    %56 = vst [vmem:[%s43 + $0xc] sm:$0x1] 0.0
    %57 = vst [vmem:[%s43 + $0xd] sm:$0x1] 0.0
    %58 = vst [vmem:[%s43 + $0xe] sm:$0x1] 0.0
    %59 = vst [vmem:[%s43 + $0xf] sm:$0x1] 0.0
    %60 = vst [vmem:[%s43 + $0x10] sm:$0x1] 0.0
    %61 = vst [vmem:[%s43 + $0x11] sm:$0x1] 0.0
    %62 = vst [vmem:[#allocation2] sm:$0x1] 0.0
    %63 = vst [vmem:[#allocation2 + $0x12] sm:$0x1] 0.0
    %64 = vst [vmem:[#allocation2 + $0x24] sm:$0x1] 0.0
    %65 = vst [vmem:[#allocation2 + $0x36] sm:$0x1] 0.0
    %66 = vst [vmem:[#allocation2 + $0x48] sm:$0x1] 0.0
    %67 = vst [vmem:[#allocation2 + $0x5a] sm:$0x1] 0.0
    %68 = vst [vmem:[#allocation2 + $0x6c] sm:$0x1] 0.0
    %69 = vst [vmem:[#allocation2 + $0x7e] sm:$0x1] 0.0
    %70 = vst [vmem:[#allocation2 + $0x90] sm:$0x1] 0.0
    %71 = vst [vmem:[#allocation2 + $0xa2] sm:$0x1] 0.0
    %72 = vst [vmem:[#allocation2 + $0xb4] sm:$0x1] 0.0
    %73 = vst [vmem:[#allocation2 + $0xc6] sm:$0x1] 0.0
    %74 = vst [vmem:[#allocation2 + $0xd8] sm:$0x1] 0.0
    %75 = vst [vmem:[#allocation2 + $0xea] sm:$0x1] 0.0
    %76 = vst [vmem:[#allocation2 + $0xfc] sm:$0x1] 0.0
    %77 = vst [vmem:[#allocation2 + $0x10e] sm:$0x1] 0.0
    %78 = vst [vmem:[#allocation2 + $0x120] sm:$0x1] 0.0
    %79 = vst [vmem:[#allocation2 + $0x132] sm:$0x1] 0.0
    %s80 = scalar_lea.vmem [#allocation2], 17
    %81 = vst [vmem:[%s80] sm:$0x1] 0.0
    %82 = vst [vmem:[%s80 + $0x12] sm:$0x1] 0.0
    %83 = vst [vmem:[%s80 + $0x24] sm:$0x1] 0.0
    %84 = vst [vmem:[%s80 + $0x36] sm:$0x1] 0.0
    %85 = vst [vmem:[%s80 + $0x48] sm:$0x1] 0.0
    %86 = vst [vmem:[%s80 + $0x5a] sm:$0x1] 0.0
    %87 = vst [vmem:[%s80 + $0x6c] sm:$0x1] 0.0
    %88 = vst [vmem:[%s80 + $0x7e] sm:$0x1] 0.0
    %89 = vst [vmem:[%s80 + $0x90] sm:$0x1] 0.0
    %90 = vst [vmem:[%s80 + $0xa2] sm:$0x1] 0.0
    %91 = vst [vmem:[%s80 + $0xb4] sm:$0x1] 0.0
    %92 = vst [vmem:[%s80 + $0xc6] sm:$0x1] 0.0
    %93 = vst [vmem:[%s80 + $0xd8] sm:$0x1] 0.0
    %94 = vst [vmem:[%s80 + $0xea] sm:$0x1] 0.0
    %95 = vst [vmem:[%s80 + $0xfc] sm:$0x1] 0.0
    %96 = vst [vmem:[%s80 + $0x10e] sm:$0x1] 0.0
    %97 = vst [vmem:[%s80 + $0x120] sm:$0x1] 0.0
    %98 = vst [vmem:[%s80 + $0x132] sm:$0x1] 0.0
    %v99 = vld [vmem:[#allocation3] sm:$0x1]
    %v100 = vld [vmem:[#allocation3 + $0x1] sm:$0x1]
    %v101 = vld [vmem:[#allocation3 + $0x2] sm:$0x1]
    %v102 = vld [vmem:[#allocation3 + $0x3] sm:$0x1]
    %v103 = vld [vmem:[#allocation3 + $0x4] sm:$0x1]
    %v104 = vld [vmem:[#allocation3 + $0x5] sm:$0x1]
    %v105 = vld [vmem:[#allocation3 + $0x6] sm:$0x1]
    %v106 = vld [vmem:[#allocation3 + $0x7] sm:$0x1]
    %v107 = vld [vmem:[#allocation3 + $0x8] sm:$0x1]
    %v108 = vld [vmem:[#allocation3 + $0x9] sm:$0x1]
    %v109 = vld [vmem:[#allocation3 + $0xa] sm:$0x1]
    %v110 = vld [vmem:[#allocation3 + $0xb] sm:$0x1]
    %v111 = vld [vmem:[#allocation3 + $0xc] sm:$0x1]
    %v112 = vld [vmem:[#allocation3 + $0xd] sm:$0x1]
    %v113 = vld [vmem:[#allocation3 + $0xe] sm:$0x1]
    %v114 = vld [vmem:[#allocation3 + $0xf] sm:$0x1]
    %v115 = vld [vmem:[#allocation3 + $0x10] sm:$0x1]
    %v116 = vld [vmem:[#allocation3 + $0x11] sm:$0x1]
    %v117 = vld [vmem:[#allocation3 + $0x12] sm:$0x1]
    %v118 = vld [vmem:[#allocation3 + $0x13] sm:$0x1]
    %v119 = vld [vmem:[#allocation3 + $0x14] sm:$0x1]
    %v120 = vld [vmem:[#allocation3 + $0x15] sm:$0x1]
    %v121 = vld [vmem:[#allocation3 + $0x16] sm:$0x1]
    %v122 = vld [vmem:[#allocation3 + $0x17] sm:$0x1]
    %v123 = vld [vmem:[#allocation3 + $0x18] sm:$0x1]
    %v124 = vld [vmem:[#allocation3 + $0x19] sm:$0x1]
    %v125 = vld [vmem:[#allocation3 + $0x1a] sm:$0x1]
    %v126 = vld [vmem:[#allocation3 + $0x1b] sm:$0x1]
    %v127 = vld [vmem:[#allocation3 + $0x1c] sm:$0x1]
    %v128 = vld [vmem:[#allocation3 + $0x1d] sm:$0x1]
    %v129 = vld [vmem:[#allocation3 + $0x1e] sm:$0x1]
    %v130 = vld [vmem:[#allocation3 + $0x1f] sm:$0x1]
    %v131 = vld [vmem:[#allocation3 + $0x20] sm:$0x1]
    %v132 = vld [vmem:[#allocation3 + $0x21] sm:$0x1]
    %v133 = vld [vmem:[#allocation3 + $0x22] sm:$0x1]
    %v134 = vld [vmem:[#allocation3 + $0x23] sm:$0x1]
    %v135 = vld [vmem:[#allocation3 + $0x24] sm:$0x1]
    %v136 = vld [vmem:[#allocation3 + $0x25] sm:$0x1]
    %v137 = vld [vmem:[#allocation3 + $0x26] sm:$0x1]
    %v138 = vld [vmem:[#allocation3 + $0x27] sm:$0x1]
    %v139 = vld [vmem:[#allocation3 + $0x28] sm:$0x1]
    %v140 = vld [vmem:[#allocation3 + $0x29] sm:$0x1]
    %v141 = vld [vmem:[#allocation3 + $0x2a] sm:$0x1]
    %v142 = vld [vmem:[#allocation3 + $0x2b] sm:$0x1]
    %v143 = vld [vmem:[#allocation3 + $0x2c] sm:$0x1]
    %v144 = vld [vmem:[#allocation3 + $0x2d] sm:$0x1]
    %v145 = vld [vmem:[#allocation3 + $0x2e] sm:$0x1]
    %v146 = vld [vmem:[#allocation3 + $0x2f] sm:$0x1]
    %v147 = vld [vmem:[#allocation3 + $0x30] sm:$0x1]
    %v148 = vld [vmem:[#allocation3 + $0x31] sm:$0x1]
    %v149 = vld [vmem:[#allocation3 + $0x32] sm:$0x1]
    %v150 = vld [vmem:[#allocation3 + $0x33] sm:$0x1]
    %v151 = vld [vmem:[#allocation3 + $0x34] sm:$0x1]
    %v152 = vld [vmem:[#allocation3 + $0x35] sm:$0x1]
    %v153 = vld [vmem:[#allocation3 + $0x36] sm:$0x1]
    %v154 = vld [vmem:[#allocation3 + $0x37] sm:$0x1]
    %v155 = vld [vmem:[#allocation3 + $0x38] sm:$0x1]
    %v156 = vld [vmem:[#allocation3 + $0x39] sm:$0x1]
    %v157 = vld [vmem:[#allocation3 + $0x3a] sm:$0x1]
    %v158 = vld [vmem:[#allocation3 + $0x3b] sm:$0x1]
    %v159 = vld [vmem:[#allocation3 + $0x3c] sm:$0x1]
    %v160 = vld [vmem:[#allocation3 + $0x3d] sm:$0x1]
    %v161 = vld [vmem:[#allocation3 + $0x3e] sm:$0x1]
    %v162 = vld [vmem:[#allocation3 + $0x3f] sm:$0x1]
    %v163 = vld [vmem:[#allocation3 + $0x40] sm:$0x1]
    %v164 = vld [vmem:[#allocation3 + $0x41] sm:$0x1]
    %v165 = vld [vmem:[#allocation3 + $0x42] sm:$0x1]
    %v166 = vld [vmem:[#allocation3 + $0x43] sm:$0x1]
    %v167 = vld [vmem:[#allocation3 + $0x44] sm:$0x1]
    %v168 = vld [vmem:[#allocation3 + $0x45] sm:$0x1]
    %v169 = vld [vmem:[#allocation3 + $0x46] sm:$0x1]
    %v170 = vld [vmem:[#allocation3 + $0x47] sm:$0x1]
    %v171 = vld [vmem:[#allocation3 + $0x48] sm:$0x1]
    %v172 = vld [vmem:[#allocation3 + $0x49] sm:$0x1]
    %v173 = vld [vmem:[#allocation3 + $0x4a] sm:$0x1]
    %v174 = vld [vmem:[#allocation3 + $0x4b] sm:$0x1]
    %v175 = vld [vmem:[#allocation3 + $0x4c] sm:$0x1]
    %v176 = vld [vmem:[#allocation3 + $0x4d] sm:$0x1]
    %v177 = vld [vmem:[#allocation3 + $0x4e] sm:$0x1]
    %v178 = vld [vmem:[#allocation3 + $0x4f] sm:$0x1]
    %v179 = vld [vmem:[#allocation3 + $0x50] sm:$0x1]
    %v180 = vld [vmem:[#allocation3 + $0x51] sm:$0x1]
    %v181 = vld [vmem:[#allocation3 + $0x52] sm:$0x1]
    %v182 = vld [vmem:[#allocation3 + $0x53] sm:$0x1]
    %v183 = vld [vmem:[#allocation3 + $0x54] sm:$0x1]
    %v184 = vld [vmem:[#allocation3 + $0x55] sm:$0x1]
    %v185 = vld [vmem:[#allocation3 + $0x56] sm:$0x1]
    %v186 = vld [vmem:[#allocation3 + $0x57] sm:$0x1]
    %v187 = vld [vmem:[#allocation3 + $0x58] sm:$0x1]
    %v188 = vld [vmem:[#allocation3 + $0x59] sm:$0x1]
    %v189 = vld [vmem:[#allocation3 + $0x5a] sm:$0x1]
    %v190 = vld [vmem:[#allocation3 + $0x5b] sm:$0x1]
    %v191 = vld [vmem:[#allocation3 + $0x5c] sm:$0x1]
    %v192 = vld [vmem:[#allocation3 + $0x5d] sm:$0x1]
    %v193 = vld [vmem:[#allocation3 + $0x5e] sm:$0x1]
    %v194 = vld [vmem:[#allocation3 + $0x5f] sm:$0x1]
    %v195 = vld [vmem:[#allocation3 + $0x60] sm:$0x1]
    %v196 = vld [vmem:[#allocation3 + $0x61] sm:$0x1]
    %v197 = vld [vmem:[#allocation3 + $0x62] sm:$0x1]
    %v198 = vld [vmem:[#allocation3 + $0x63] sm:$0x1]
    %v199 = vld [vmem:[#allocation3 + $0x64] sm:$0x1]
    %v200 = vld [vmem:[#allocation3 + $0x65] sm:$0x1]
    %v201 = vld [vmem:[#allocation3 + $0x66] sm:$0x1]
    %v202 = vld [vmem:[#allocation3 + $0x67] sm:$0x1]
    %v203 = vld [vmem:[#allocation3 + $0x68] sm:$0x1]
    %v204 = vld [vmem:[#allocation3 + $0x69] sm:$0x1]
    %v205 = vld [vmem:[#allocation3 + $0x6a] sm:$0x1]
    %v206 = vld [vmem:[#allocation3 + $0x6b] sm:$0x1]
    %v207 = vld [vmem:[#allocation3 + $0x6c] sm:$0x1]
    %v208 = vld [vmem:[#allocation3 + $0x6d] sm:$0x1]
    %v209 = vld [vmem:[#allocation3 + $0x6e] sm:$0x1]
    %v210 = vld [vmem:[#allocation3 + $0x6f] sm:$0x1]
    %v211 = vld [vmem:[#allocation3 + $0x70] sm:$0x1]
    %v212 = vld [vmem:[#allocation3 + $0x71] sm:$0x1]
    %v213 = vld [vmem:[#allocation3 + $0x72] sm:$0x1]
    %v214 = vld [vmem:[#allocation3 + $0x73] sm:$0x1]
    %v215 = vld [vmem:[#allocation3 + $0x74] sm:$0x1]
    %v216 = vld [vmem:[#allocation3 + $0x75] sm:$0x1]
    %v217 = vld [vmem:[#allocation3 + $0x76] sm:$0x1]
    %v218 = vld [vmem:[#allocation3 + $0x77] sm:$0x1]
    %v219 = vld [vmem:[#allocation3 + $0x78] sm:$0x1]
    %v220 = vld [vmem:[#allocation3 + $0x79] sm:$0x1]
    %v221 = vld [vmem:[#allocation3 + $0x7a] sm:$0x1]
    %v222 = vld [vmem:[#allocation3 + $0x7b] sm:$0x1]
    %v223 = vld [vmem:[#allocation3 + $0x7c] sm:$0x1]
    %v224 = vld [vmem:[#allocation3 + $0x7d] sm:$0x1]
    %v225 = vld [vmem:[#allocation3 + $0x7e] sm:$0x1]
    %v226 = vld [vmem:[#allocation3 + $0x7f] sm:$0x1]
    %v227 = vld [vmem:[#allocation3 + $0x80] sm:$0x1]
    %v228 = vld [vmem:[#allocation3 + $0x81] sm:$0x1]
    %v229 = vld [vmem:[#allocation3 + $0x82] sm:$0x1]
    %v230 = vld [vmem:[#allocation3 + $0x83] sm:$0x1]
    %v231 = vld [vmem:[#allocation3 + $0x84] sm:$0x1]
    %v232 = vld [vmem:[#allocation3 + $0x85] sm:$0x1]
    %v233 = vld [vmem:[#allocation3 + $0x86] sm:$0x1]
    %v234 = vld [vmem:[#allocation3 + $0x87] sm:$0x1]
    %v235 = vld [vmem:[#allocation3 + $0x88] sm:$0x1]
    %v236 = vld [vmem:[#allocation3 + $0x89] sm:$0x1]
    %v237 = vld [vmem:[#allocation3 + $0x8a] sm:$0x1]
    %v238 = vld [vmem:[#allocation3 + $0x8b] sm:$0x1]
    %v239 = vld [vmem:[#allocation3 + $0x8c] sm:$0x1]
    %v240 = vld [vmem:[#allocation3 + $0x8d] sm:$0x1]
    %v241 = vld [vmem:[#allocation3 + $0x8e] sm:$0x1]
    %v242 = vld [vmem:[#allocation3 + $0x8f] sm:$0x1]
    %v243 = vld [vmem:[#allocation3 + $0x90] sm:$0x1]
    %v244 = vld [vmem:[#allocation3 + $0x91] sm:$0x1]
    %v245 = vld [vmem:[#allocation3 + $0x92] sm:$0x1]
    %v246 = vld [vmem:[#allocation3 + $0x93] sm:$0x1]
    %v247 = vld [vmem:[#allocation3 + $0x94] sm:$0x1]
    %v248 = vld [vmem:[#allocation3 + $0x95] sm:$0x1]
    %v249 = vld [vmem:[#allocation3 + $0x96] sm:$0x1]
    %v250 = vld [vmem:[#allocation3 + $0x97] sm:$0x1]
    %v251 = vld [vmem:[#allocation3 + $0x98] sm:$0x1]
    %v252 = vld [vmem:[#allocation3 + $0x99] sm:$0x1]
    %v253 = vld [vmem:[#allocation3 + $0x9a] sm:$0x1]
    %v254 = vld [vmem:[#allocation3 + $0x9b] sm:$0x1]
    %v255 = vld [vmem:[#allocation3 + $0x9c] sm:$0x1]
    %v256 = vld [vmem:[#allocation3 + $0x9d] sm:$0x1]
    %v257 = vld [vmem:[#allocation3 + $0x9e] sm:$0x1]
    %v258 = vld [vmem:[#allocation3 + $0x9f] sm:$0x1]
    %v259 = vld [vmem:[#allocation3 + $0xa0] sm:$0x1]
    %v260 = vld [vmem:[#allocation3 + $0xa1] sm:$0x1]
    %v261 = vld [vmem:[#allocation3 + $0xa2] sm:$0x1]
    %v262 = vld [vmem:[#allocation3 + $0xa3] sm:$0x1]
    %v263 = vld [vmem:[#allocation3 + $0xa4] sm:$0x1]
    %v264 = vld [vmem:[#allocation3 + $0xa5] sm:$0x1]
    %v265 = vld [vmem:[#allocation3 + $0xa6] sm:$0x1]
    %v266 = vld [vmem:[#allocation3 + $0xa7] sm:$0x1]
    %v267 = vld [vmem:[#allocation3 + $0xa8] sm:$0x1]
    %v268 = vld [vmem:[#allocation3 + $0xa9] sm:$0x1]
    %v269 = vld [vmem:[#allocation3 + $0xaa] sm:$0x1]
    %v270 = vld [vmem:[#allocation3 + $0xab] sm:$0x1]
    %v271 = vld [vmem:[#allocation3 + $0xac] sm:$0x1]
    %v272 = vld [vmem:[#allocation3 + $0xad] sm:$0x1]
    %v273 = vld [vmem:[#allocation3 + $0xae] sm:$0x1]
    %v274 = vld [vmem:[#allocation3 + $0xaf] sm:$0x1]
    %v275 = vld [vmem:[#allocation3 + $0xb0] sm:$0x1]
    %v276 = vld [vmem:[#allocation3 + $0xb1] sm:$0x1]
    %v277 = vld [vmem:[#allocation3 + $0xb2] sm:$0x1]
    %v278 = vld [vmem:[#allocation3 + $0xb3] sm:$0x1]
    %v279 = vld [vmem:[#allocation3 + $0xb4] sm:$0x1]
    %v280 = vld [vmem:[#allocation3 + $0xb5] sm:$0x1]
    %v281 = vld [vmem:[#allocation3 + $0xb6] sm:$0x1]
    %v282 = vld [vmem:[#allocation3 + $0xb7] sm:$0x1]
    %v283 = vld [vmem:[#allocation3 + $0xb8] sm:$0x1]
    %v284 = vld [vmem:[#allocation3 + $0xb9] sm:$0x1]
    %v285 = vld [vmem:[#allocation3 + $0xba] sm:$0x1]
    %v286 = vld [vmem:[#allocation3 + $0xbb] sm:$0x1]
    %v287 = vld [vmem:[#allocation3 + $0xbc] sm:$0x1]
    %v288 = vld [vmem:[#allocation3 + $0xbd] sm:$0x1]
    %v289 = vld [vmem:[#allocation3 + $0xbe] sm:$0x1]
    %v290 = vld [vmem:[#allocation3 + $0xbf] sm:$0x1]
    %v291 = vld [vmem:[#allocation3 + $0xc0] sm:$0x1]
    %v292 = vld [vmem:[#allocation3 + $0xc1] sm:$0x1]
    %v293 = vld [vmem:[#allocation3 + $0xc2] sm:$0x1]
    %v294 = vld [vmem:[#allocation3 + $0xc3] sm:$0x1]
    %v295 = vld [vmem:[#allocation3 + $0xc4] sm:$0x1]
    %v296 = vld [vmem:[#allocation3 + $0xc5] sm:$0x1]
    %v297 = vld [vmem:[#allocation3 + $0xc6] sm:$0x1]
    %v298 = vld [vmem:[#allocation3 + $0xc7] sm:$0x1]
    %v299 = vld [vmem:[#allocation3 + $0xc8] sm:$0x1]
    %v300 = vld [vmem:[#allocation3 + $0xc9] sm:$0x1]
    %v301 = vld [vmem:[#allocation3 + $0xca] sm:$0x1]
    %v302 = vld [vmem:[#allocation3 + $0xcb] sm:$0x1]
    %v303 = vld [vmem:[#allocation3 + $0xcc] sm:$0x1]
    %v304 = vld [vmem:[#allocation3 + $0xcd] sm:$0x1]
    %v305 = vld [vmem:[#allocation3 + $0xce] sm:$0x1]
    %v306 = vld [vmem:[#allocation3 + $0xcf] sm:$0x1]
    %v307 = vld [vmem:[#allocation3 + $0xd0] sm:$0x1]
    %v308 = vld [vmem:[#allocation3 + $0xd1] sm:$0x1]
    %v309 = vld [vmem:[#allocation3 + $0xd2] sm:$0x1]
    %v310 = vld [vmem:[#allocation3 + $0xd3] sm:$0x1]
    %v311 = vld [vmem:[#allocation3 + $0xd4] sm:$0x1]
    %v312 = vld [vmem:[#allocation3 + $0xd5] sm:$0x1]
    %v313 = vld [vmem:[#allocation3 + $0xd6] sm:$0x1]
    %v314 = vld [vmem:[#allocation3 + $0xd7] sm:$0x1]
    %v315 = vld [vmem:[#allocation3 + $0xd8] sm:$0x1]
    %v316 = vld [vmem:[#allocation3 + $0xd9] sm:$0x1]
    %v317 = vld [vmem:[#allocation3 + $0xda] sm:$0x1]
    %v318 = vld [vmem:[#allocation3 + $0xdb] sm:$0x1]
    %v319 = vld [vmem:[#allocation3 + $0xdc] sm:$0x1]
    %v320 = vld [vmem:[#allocation3 + $0xdd] sm:$0x1]
    %v321 = vld [vmem:[#allocation3 + $0xde] sm:$0x1]
    %v322 = vld [vmem:[#allocation3 + $0xdf] sm:$0x1]
    %v323 = vld [vmem:[#allocation3 + $0xe0] sm:$0x1]
    %v324 = vld [vmem:[#allocation3 + $0xe1] sm:$0x1]
    %v325 = vld [vmem:[#allocation3 + $0xe2] sm:$0x1]
    %v326 = vld [vmem:[#allocation3 + $0xe3] sm:$0x1]
    %v327 = vld [vmem:[#allocation3 + $0xe4] sm:$0x1]
    %v328 = vld [vmem:[#allocation3 + $0xe5] sm:$0x1]
    %v329 = vld [vmem:[#allocation3 + $0xe6] sm:$0x1]
    %v330 = vld [vmem:[#allocation3 + $0xe7] sm:$0x1]
    %v331 = vld [vmem:[#allocation3 + $0xe8] sm:$0x1]
    %v332 = vld [vmem:[#allocation3 + $0xe9] sm:$0x1]
    %v333 = vld [vmem:[#allocation3 + $0xea] sm:$0x1]
    %v334 = vld [vmem:[#allocation3 + $0xeb] sm:$0x1]
    %v335 = vld [vmem:[#allocation3 + $0xec] sm:$0x1]
    %v336 = vld [vmem:[#allocation3 + $0xed] sm:$0x1]
    %v337 = vld [vmem:[#allocation3 + $0xee] sm:$0x1]
    %v338 = vld [vmem:[#allocation3 + $0xef] sm:$0x1]
    %v339 = vld [vmem:[#allocation3 + $0xf0] sm:$0x1]
    %v340 = vld [vmem:[#allocation3 + $0xf1] sm:$0x1]
    %v341 = vld [vmem:[#allocation3 + $0xf2] sm:$0x1]
    %v342 = vld [vmem:[#allocation3 + $0xf3] sm:$0x1]
    %v343 = vld [vmem:[#allocation3 + $0xf4] sm:$0x1]
    %v344 = vld [vmem:[#allocation3 + $0xf5] sm:$0x1]
    %v345 = vld [vmem:[#allocation3 + $0xf6] sm:$0x1]
    %v346 = vld [vmem:[#allocation3 + $0xf7] sm:$0x1]
    %v347 = vld [vmem:[#allocation3 + $0xf8] sm:$0x1]
    %v348 = vld [vmem:[#allocation3 + $0xf9] sm:$0x1]
    %v349 = vld [vmem:[#allocation3 + $0xfa] sm:$0x1]
    %v350 = vld [vmem:[#allocation3 + $0xfb] sm:$0x1]
    %v351 = vld [vmem:[#allocation3 + $0xfc] sm:$0x1]
    %v352 = vld [vmem:[#allocation3 + $0xfd] sm:$0x1]
    %v353 = vld [vmem:[#allocation3 + $0xfe] sm:$0x1]
    %v354 = vld [vmem:[#allocation3 + $0xff] sm:$0x1]
    %s355 = scalar_lea.vmem [#allocation2], 19
    %356 = vst [vmem:[%s355] sm:$0x1] %v99
    %357 = vst [vmem:[%s355 + $0x1] sm:$0x1] %v100
    %358 = vst [vmem:[%s355 + $0x2] sm:$0x1] %v101
    %359 = vst [vmem:[%s355 + $0x3] sm:$0x1] %v102
    %360 = vst [vmem:[%s355 + $0x4] sm:$0x1] %v103
    %361 = vst [vmem:[%s355 + $0x5] sm:$0x1] %v104
    %362 = vst [vmem:[%s355 + $0x6] sm:$0x1] %v105
    %363 = vst [vmem:[%s355 + $0x7] sm:$0x1] %v106
    %364 = vst [vmem:[%s355 + $0x8] sm:$0x1] %v107
    %365 = vst [vmem:[%s355 + $0x9] sm:$0x1] %v108
    %366 = vst [vmem:[%s355 + $0xa] sm:$0x1] %v109
    %367 = vst [vmem:[%s355 + $0xb] sm:$0x1] %v110
    %368 = vst [vmem:[%s355 + $0xc] sm:$0x1] %v111
    %369 = vst [vmem:[%s355 + $0xd] sm:$0x1] %v112
    %370 = vst [vmem:[%s355 + $0xe] sm:$0x1] %v113
    %371 = vst [vmem:[%s355 + $0xf] sm:$0x1] %v114
    %372 = vst [vmem:[%s355 + $0x12] sm:$0x1] %v115
    %373 = vst [vmem:[%s355 + $0x13] sm:$0x1] %v116
    %374 = vst [vmem:[%s355 + $0x14] sm:$0x1] %v117
    %375 = vst [vmem:[%s355 + $0x15] sm:$0x1] %v118
    %376 = vst [vmem:[%s355 + $0x16] sm:$0x1] %v119
    %377 = vst [vmem:[%s355 + $0x17] sm:$0x1] %v120
    %378 = vst [vmem:[%s355 + $0x18] sm:$0x1] %v121
    %379 = vst [vmem:[%s355 + $0x19] sm:$0x1] %v122
    %380 = vst [vmem:[%s355 + $0x1a] sm:$0x1] %v123
    %381 = vst [vmem:[%s355 + $0x1b] sm:$0x1] %v124
    %382 = vst [vmem:[%s355 + $0x1c] sm:$0x1] %v125
    %383 = vst [vmem:[%s355 + $0x1d] sm:$0x1] %v126
    %384 = vst [vmem:[%s355 + $0x1e] sm:$0x1] %v127
    %385 = vst [vmem:[%s355 + $0x1f] sm:$0x1] %v128
    %386 = vst [vmem:[%s355 + $0x20] sm:$0x1] %v129
    %387 = vst [vmem:[%s355 + $0x21] sm:$0x1] %v130
    %388 = vst [vmem:[%s355 + $0x24] sm:$0x1] %v131
    %389 = vst [vmem:[%s355 + $0x25] sm:$0x1] %v132
    %390 = vst [vmem:[%s355 + $0x26] sm:$0x1] %v133
    %391 = vst [vmem:[%s355 + $0x27] sm:$0x1] %v134
    %392 = vst [vmem:[%s355 + $0x28] sm:$0x1] %v135
    %393 = vst [vmem:[%s355 + $0x29] sm:$0x1] %v136
    %394 = vst [vmem:[%s355 + $0x2a] sm:$0x1] %v137
    %395 = vst [vmem:[%s355 + $0x2b] sm:$0x1] %v138
    %396 = vst [vmem:[%s355 + $0x2c] sm:$0x1] %v139
    %397 = vst [vmem:[%s355 + $0x2d] sm:$0x1] %v140
    %398 = vst [vmem:[%s355 + $0x2e] sm:$0x1] %v141
    %399 = vst [vmem:[%s355 + $0x2f] sm:$0x1] %v142
    %400 = vst [vmem:[%s355 + $0x30] sm:$0x1] %v143
    %401 = vst [vmem:[%s355 + $0x31] sm:$0x1] %v144
    %402 = vst [vmem:[%s355 + $0x32] sm:$0x1] %v145
    %403 = vst [vmem:[%s355 + $0x33] sm:$0x1] %v146
    %404 = vst [vmem:[%s355 + $0x36] sm:$0x1] %v147
    %405 = vst [vmem:[%s355 + $0x37] sm:$0x1] %v148
    %406 = vst [vmem:[%s355 + $0x38] sm:$0x1] %v149
    %407 = vst [vmem:[%s355 + $0x39] sm:$0x1] %v150
    %408 = vst [vmem:[%s355 + $0x3a] sm:$0x1] %v151
    %409 = vst [vmem:[%s355 + $0x3b] sm:$0x1] %v152
    %410 = vst [vmem:[%s355 + $0x3c] sm:$0x1] %v153
    %411 = vst [vmem:[%s355 + $0x3d] sm:$0x1] %v154
    %412 = vst [vmem:[%s355 + $0x3e] sm:$0x1] %v155
    %413 = vst [vmem:[%s355 + $0x3f] sm:$0x1] %v156
    %414 = vst [vmem:[%s355 + $0x40] sm:$0x1] %v157
    %415 = vst [vmem:[%s355 + $0x41] sm:$0x1] %v158
    %416 = vst [vmem:[%s355 + $0x42] sm:$0x1] %v159
    %417 = vst [vmem:[%s355 + $0x43] sm:$0x1] %v160
    %418 = vst [vmem:[%s355 + $0x44] sm:$0x1] %v161
    %419 = vst [vmem:[%s355 + $0x45] sm:$0x1] %v162
    %420 = vst [vmem:[%s355 + $0x48] sm:$0x1] %v163
    %421 = vst [vmem:[%s355 + $0x49] sm:$0x1] %v164
    %422 = vst [vmem:[%s355 + $0x4a] sm:$0x1] %v165
    %423 = vst [vmem:[%s355 + $0x4b] sm:$0x1] %v166
    %424 = vst [vmem:[%s355 + $0x4c] sm:$0x1] %v167
    %425 = vst [vmem:[%s355 + $0x4d] sm:$0x1] %v168
    %426 = vst [vmem:[%s355 + $0x4e] sm:$0x1] %v169
    %427 = vst [vmem:[%s355 + $0x4f] sm:$0x1] %v170
    %428 = vst [vmem:[%s355 + $0x50] sm:$0x1] %v171
    %429 = vst [vmem:[%s355 + $0x51] sm:$0x1] %v172
    %430 = vst [vmem:[%s355 + $0x52] sm:$0x1] %v173
    %431 = vst [vmem:[%s355 + $0x53] sm:$0x1] %v174
    %432 = vst [vmem:[%s355 + $0x54] sm:$0x1] %v175
    %433 = vst [vmem:[%s355 + $0x55] sm:$0x1] %v176
    %434 = vst [vmem:[%s355 + $0x56] sm:$0x1] %v177
    %435 = vst [vmem:[%s355 + $0x57] sm:$0x1] %v178
    %436 = vst [vmem:[%s355 + $0x5a] sm:$0x1] %v179
    %437 = vst [vmem:[%s355 + $0x5b] sm:$0x1] %v180
    %438 = vst [vmem:[%s355 + $0x5c] sm:$0x1] %v181
    %439 = vst [vmem:[%s355 + $0x5d] sm:$0x1] %v182
    %440 = vst [vmem:[%s355 + $0x5e] sm:$0x1] %v183
    %441 = vst [vmem:[%s355 + $0x5f] sm:$0x1] %v184
    %442 = vst [vmem:[%s355 + $0x60] sm:$0x1] %v185
    %443 = vst [vmem:[%s355 + $0x61] sm:$0x1] %v186
    %444 = vst [vmem:[%s355 + $0x62] sm:$0x1] %v187
    %445 = vst [vmem:[%s355 + $0x63] sm:$0x1] %v188
    %446 = vst [vmem:[%s355 + $0x64] sm:$0x1] %v189
    %447 = vst [vmem:[%s355 + $0x65] sm:$0x1] %v190
    %448 = vst [vmem:[%s355 + $0x66] sm:$0x1] %v191
    %449 = vst [vmem:[%s355 + $0x67] sm:$0x1] %v192
    %450 = vst [vmem:[%s355 + $0x68] sm:$0x1] %v193
    %451 = vst [vmem:[%s355 + $0x69] sm:$0x1] %v194
    %452 = vst [vmem:[%s355 + $0x6c] sm:$0x1] %v195
    %453 = vst [vmem:[%s355 + $0x6d] sm:$0x1] %v196
    %454 = vst [vmem:[%s355 + $0x6e] sm:$0x1] %v197
    %455 = vst [vmem:[%s355 + $0x6f] sm:$0x1] %v198
    %456 = vst [vmem:[%s355 + $0x70] sm:$0x1] %v199
    %457 = vst [vmem:[%s355 + $0x71] sm:$0x1] %v200
    %458 = vst [vmem:[%s355 + $0x72] sm:$0x1] %v201
    %459 = vst [vmem:[%s355 + $0x73] sm:$0x1] %v202
    %460 = vst [vmem:[%s355 + $0x74] sm:$0x1] %v203
    %461 = vst [vmem:[%s355 + $0x75] sm:$0x1] %v204
    %462 = vst [vmem:[%s355 + $0x76] sm:$0x1] %v205
    %463 = vst [vmem:[%s355 + $0x77] sm:$0x1] %v206
    %464 = vst [vmem:[%s355 + $0x78] sm:$0x1] %v207
    %465 = vst [vmem:[%s355 + $0x79] sm:$0x1] %v208
    %466 = vst [vmem:[%s355 + $0x7a] sm:$0x1] %v209
    %467 = vst [vmem:[%s355 + $0x7b] sm:$0x1] %v210
    %468 = vst [vmem:[%s355 + $0x7e] sm:$0x1] %v211
    %469 = vst [vmem:[%s355 + $0x7f] sm:$0x1] %v212
    %470 = vst [vmem:[%s355 + $0x80] sm:$0x1] %v213
    %471 = vst [vmem:[%s355 + $0x81] sm:$0x1] %v214
    %472 = vst [vmem:[%s355 + $0x82] sm:$0x1] %v215
    %473 = vst [vmem:[%s355 + $0x83] sm:$0x1] %v216
    %474 = vst [vmem:[%s355 + $0x84] sm:$0x1] %v217
    %475 = vst [vmem:[%s355 + $0x85] sm:$0x1] %v218
    %476 = vst [vmem:[%s355 + $0x86] sm:$0x1] %v219
    %477 = vst [vmem:[%s355 + $0x87] sm:$0x1] %v220
    %478 = vst [vmem:[%s355 + $0x88] sm:$0x1] %v221
    %479 = vst [vmem:[%s355 + $0x89] sm:$0x1] %v222
    %480 = vst [vmem:[%s355 + $0x8a] sm:$0x1] %v223
    %481 = vst [vmem:[%s355 + $0x8b] sm:$0x1] %v224
    %482 = vst [vmem:[%s355 + $0x8c] sm:$0x1] %v225
    %483 = vst [vmem:[%s355 + $0x8d] sm:$0x1] %v226
    %484 = vst [vmem:[%s355 + $0x90] sm:$0x1] %v227
    %485 = vst [vmem:[%s355 + $0x91] sm:$0x1] %v228
    %486 = vst [vmem:[%s355 + $0x92] sm:$0x1] %v229
    %487 = vst [vmem:[%s355 + $0x93] sm:$0x1] %v230
    %488 = vst [vmem:[%s355 + $0x94] sm:$0x1] %v231
    %489 = vst [vmem:[%s355 + $0x95] sm:$0x1] %v232
    %490 = vst [vmem:[%s355 + $0x96] sm:$0x1] %v233
    %491 = vst [vmem:[%s355 + $0x97] sm:$0x1] %v234
    %492 = vst [vmem:[%s355 + $0x98] sm:$0x1] %v235
    %493 = vst [vmem:[%s355 + $0x99] sm:$0x1] %v236
    %494 = vst [vmem:[%s355 + $0x9a] sm:$0x1] %v237
    %495 = vst [vmem:[%s355 + $0x9b] sm:$0x1] %v238
    %496 = vst [vmem:[%s355 + $0x9c] sm:$0x1] %v239
    %497 = vst [vmem:[%s355 + $0x9d] sm:$0x1] %v240
    %498 = vst [vmem:[%s355 + $0x9e] sm:$0x1] %v241
    %499 = vst [vmem:[%s355 + $0x9f] sm:$0x1] %v242
    %500 = vst [vmem:[%s355 + $0xa2] sm:$0x1] %v243
    %501 = vst [vmem:[%s355 + $0xa3] sm:$0x1] %v244
    %502 = vst [vmem:[%s355 + $0xa4] sm:$0x1] %v245
    %503 = vst [vmem:[%s355 + $0xa5] sm:$0x1] %v246
    %504 = vst [vmem:[%s355 + $0xa6] sm:$0x1] %v247
    %505 = vst [vmem:[%s355 + $0xa7] sm:$0x1] %v248
    %506 = vst [vmem:[%s355 + $0xa8] sm:$0x1] %v249
    %507 = vst [vmem:[%s355 + $0xa9] sm:$0x1] %v250
    %508 = vst [vmem:[%s355 + $0xaa] sm:$0x1] %v251
    %509 = vst [vmem:[%s355 + $0xab] sm:$0x1] %v252
    %510 = vst [vmem:[%s355 + $0xac] sm:$0x1] %v253
    %511 = vst [vmem:[%s355 + $0xad] sm:$0x1] %v254
    %512 = vst [vmem:[%s355 + $0xae] sm:$0x1] %v255
    %513 = vst [vmem:[%s355 + $0xaf] sm:$0x1] %v256
    %514 = vst [vmem:[%s355 + $0xb0] sm:$0x1] %v257
    %515 = vst [vmem:[%s355 + $0xb1] sm:$0x1] %v258
    %516 = vst [vmem:[%s355 + $0xb4] sm:$0x1] %v259
    %517 = vst [vmem:[%s355 + $0xb5] sm:$0x1] %v260
    %518 = vst [vmem:[%s355 + $0xb6] sm:$0x1] %v261
    %519 = vst [vmem:[%s355 + $0xb7] sm:$0x1] %v262
    %520 = vst [vmem:[%s355 + $0xb8] sm:$0x1] %v263
    %521 = vst [vmem:[%s355 + $0xb9] sm:$0x1] %v264
    %522 = vst [vmem:[%s355 + $0xba] sm:$0x1] %v265
    %523 = vst [vmem:[%s355 + $0xbb] sm:$0x1] %v266
    %524 = vst [vmem:[%s355 + $0xbc] sm:$0x1] %v267
    %525 = vst [vmem:[%s355 + $0xbd] sm:$0x1] %v268
    %526 = vst [vmem:[%s355 + $0xbe] sm:$0x1] %v269
    %527 = vst [vmem:[%s355 + $0xbf] sm:$0x1] %v270
    %528 = vst [vmem:[%s355 + $0xc0] sm:$0x1] %v271
    %529 = vst [vmem:[%s355 + $0xc1] sm:$0x1] %v272
    %530 = vst [vmem:[%s355 + $0xc2] sm:$0x1] %v273
    %531 = vst [vmem:[%s355 + $0xc3] sm:$0x1] %v274
    %532 = vst [vmem:[%s355 + $0xc6] sm:$0x1] %v275
    %533 = vst [vmem:[%s355 + $0xc7] sm:$0x1] %v276
    %534 = vst [vmem:[%s355 + $0xc8] sm:$0x1] %v277
    %535 = vst [vmem:[%s355 + $0xc9] sm:$0x1] %v278
    %536 = vst [vmem:[%s355 + $0xca] sm:$0x1] %v279
    %537 = vst [vmem:[%s355 + $0xcb] sm:$0x1] %v280
    %538 = vst [vmem:[%s355 + $0xcc] sm:$0x1] %v281
    %539 = vst [vmem:[%s355 + $0xcd] sm:$0x1] %v282
    %540 = vst [vmem:[%s355 + $0xce] sm:$0x1] %v283
    %541 = vst [vmem:[%s355 + $0xcf] sm:$0x1] %v284
    %542 = vst [vmem:[%s355 + $0xd0] sm:$0x1] %v285
    %543 = vst [vmem:[%s355 + $0xd1] sm:$0x1] %v286
    %544 = vst [vmem:[%s355 + $0xd2] sm:$0x1] %v287
    %545 = vst [vmem:[%s355 + $0xd3] sm:$0x1] %v288
    %546 = vst [vmem:[%s355 + $0xd4] sm:$0x1] %v289
    %547 = vst [vmem:[%s355 + $0xd5] sm:$0x1] %v290
    %548 = vst [vmem:[%s355 + $0xd8] sm:$0x1] %v291
    %549 = vst [vmem:[%s355 + $0xd9] sm:$0x1] %v292
    %550 = vst [vmem:[%s355 + $0xda] sm:$0x1] %v293
    %551 = vst [vmem:[%s355 + $0xdb] sm:$0x1] %v294
    %552 = vst [vmem:[%s355 + $0xdc] sm:$0x1] %v295
    %553 = vst [vmem:[%s355 + $0xdd] sm:$0x1] %v296
    %554 = vst [vmem:[%s355 + $0xde] sm:$0x1] %v297
    %555 = vst [vmem:[%s355 + $0xdf] sm:$0x1] %v298
    %556 = vst [vmem:[%s355 + $0xe0] sm:$0x1] %v299
    %557 = vst [vmem:[%s355 + $0xe1] sm:$0x1] %v300
    %558 = vst [vmem:[%s355 + $0xe2] sm:$0x1] %v301
    %559 = vst [vmem:[%s355 + $0xe3] sm:$0x1] %v302
    %560 = vst [vmem:[%s355 + $0xe4] sm:$0x1] %v303
    %561 = vst [vmem:[%s355 + $0xe5] sm:$0x1] %v304
    %562 = vst [vmem:[%s355 + $0xe6] sm:$0x1] %v305
    %563 = vst [vmem:[%s355 + $0xe7] sm:$0x1] %v306
    %564 = vst [vmem:[%s355 + $0xea] sm:$0x1] %v307
    %565 = vst [vmem:[%s355 + $0xeb] sm:$0x1] %v308
    %566 = vst [vmem:[%s355 + $0xec] sm:$0x1] %v309
    %567 = vst [vmem:[%s355 + $0xed] sm:$0x1] %v310
    %568 = vst [vmem:[%s355 + $0xee] sm:$0x1] %v311
    %569 = vst [vmem:[%s355 + $0xef] sm:$0x1] %v312
    %570 = vst [vmem:[%s355 + $0xf0] sm:$0x1] %v313
    %571 = vst [vmem:[%s355 + $0xf1] sm:$0x1] %v314
    %572 = vst [vmem:[%s355 + $0xf2] sm:$0x1] %v315
    %573 = vst [vmem:[%s355 + $0xf3] sm:$0x1] %v316
    %574 = vst [vmem:[%s355 + $0xf4] sm:$0x1] %v317
    %575 = vst [vmem:[%s355 + $0xf5] sm:$0x1] %v318
    %576 = vst [vmem:[%s355 + $0xf6] sm:$0x1] %v319
    %577 = vst [vmem:[%s355 + $0xf7] sm:$0x1] %v320
    %578 = vst [vmem:[%s355 + $0xf8] sm:$0x1] %v321
    %579 = vst [vmem:[%s355 + $0xf9] sm:$0x1] %v322
    %580 = vst [vmem:[%s355 + $0xfc] sm:$0x1] %v323
    %581 = vst [vmem:[%s355 + $0xfd] sm:$0x1] %v324
    %582 = vst [vmem:[%s355 + $0xfe] sm:$0x1] %v325
    %583 = vst [vmem:[%s355 + $0xff] sm:$0x1] %v326
    %584 = vst [vmem:[%s355 + $0x100] sm:$0x1] %v327
    %585 = vst [vmem:[%s355 + $0x101] sm:$0x1] %v328
    %586 = vst [vmem:[%s355 + $0x102] sm:$0x1] %v329
    %587 = vst [vmem:[%s355 + $0x103] sm:$0x1] %v330
    %588 = vst [vmem:[%s355 + $0x104] sm:$0x1] %v331
    %589 = vst [vmem:[%s355 + $0x105] sm:$0x1] %v332
    %590 = vst [vmem:[%s355 + $0x106] sm:$0x1] %v333
    %591 = vst [vmem:[%s355 + $0x107] sm:$0x1] %v334
    %592 = vst [vmem:[%s355 + $0x108] sm:$0x1] %v335
    %593 = vst [vmem:[%s355 + $0x109] sm:$0x1] %v336
    %594 = vst [vmem:[%s355 + $0x10a] sm:$0x1] %v337
    %595 = vst [vmem:[%s355 + $0x10b] sm:$0x1] %v338
    %596 = vst [vmem:[%s355 + $0x10e] sm:$0x1] %v339
    %597 = vst [vmem:[%s355 + $0x10f] sm:$0x1] %v340
    %598 = vst [vmem:[%s355 + $0x110] sm:$0x1] %v341
    %599 = vst [vmem:[%s355 + $0x111] sm:$0x1] %v342
    %600 = vst [vmem:[%s355 + $0x112] sm:$0x1] %v343
    %601 = vst [vmem:[%s355 + $0x113] sm:$0x1] %v344
    %602 = vst [vmem:[%s355 + $0x114] sm:$0x1] %v345
    %603 = vst [vmem:[%s355 + $0x115] sm:$0x1] %v346
    %604 = vst [vmem:[%s355 + $0x116] sm:$0x1] %v347
    %605 = vst [vmem:[%s355 + $0x117] sm:$0x1] %v348
    %606 = vst [vmem:[%s355 + $0x118] sm:$0x1] %v349
    %607 = vst [vmem:[%s355 + $0x119] sm:$0x1] %v350
    %608 = vst [vmem:[%s355 + $0x11a] sm:$0x1] %v351
    %609 = vst [vmem:[%s355 + $0x11b] sm:$0x1] %v352
    %610 = vst [vmem:[%s355 + $0x11c] sm:$0x1] %v353
    %611 = vst [vmem:[%s355 + $0x11d] sm:$0x1] %v354
    %s612 = scalar_lea.vmem [#allocation2], 1
    %v613 = vld [vmem:[%s612] sm:$0x1]
    %v614 = vld [vmem:[%s612 + $0x1] sm:$0x1]
    %v615 = vld [vmem:[%s612 + $0x2] sm:$0x1]
    %v616 = vld [vmem:[%s612 + $0x3] sm:$0x1]
    %v617 = vld [vmem:[%s612 + $0x4] sm:$0x1]
    %v618 = vld [vmem:[%s612 + $0x5] sm:$0x1]
    %v619 = vld [vmem:[%s612 + $0x6] sm:$0x1]
    %v620 = vld [vmem:[%s612 + $0x7] sm:$0x1]
    %v621 = vld [vmem:[%s612 + $0x8] sm:$0x1]
    %v622 = vld [vmem:[%s612 + $0x9] sm:$0x1]
    %v623 = vld [vmem:[%s612 + $0xa] sm:$0x1]
    %v624 = vld [vmem:[%s612 + $0xb] sm:$0x1]
    %v625 = vld [vmem:[%s612 + $0xc] sm:$0x1]
    %v626 = vld [vmem:[%s612 + $0xd] sm:$0x1]
    %v627 = vld [vmem:[%s612 + $0xe] sm:$0x1]
    %v628 = vld [vmem:[%s612 + $0xf] sm:$0x1]
    %v629 = vld [vmem:[%s612 + $0x12] sm:$0x1]
    %v630 = vld [vmem:[%s612 + $0x13] sm:$0x1]
    %v631 = vld [vmem:[%s612 + $0x14] sm:$0x1]
    %v632 = vld [vmem:[%s612 + $0x15] sm:$0x1]
    %v633 = vld [vmem:[%s612 + $0x16] sm:$0x1]
    %v634 = vld [vmem:[%s612 + $0x17] sm:$0x1]
    %v635 = vld [vmem:[%s612 + $0x18] sm:$0x1]
    %v636 = vld [vmem:[%s612 + $0x19] sm:$0x1]
    %v637 = vld [vmem:[%s612 + $0x1a] sm:$0x1]
    %v638 = vld [vmem:[%s612 + $0x1b] sm:$0x1]
    %v639 = vld [vmem:[%s612 + $0x1c] sm:$0x1]
    %v640 = vld [vmem:[%s612 + $0x1d] sm:$0x1]
    %v641 = vld [vmem:[%s612 + $0x1e] sm:$0x1]
    %v642 = vld [vmem:[%s612 + $0x1f] sm:$0x1]
    %v643 = vld [vmem:[%s612 + $0x20] sm:$0x1]
    %v644 = vld [vmem:[%s612 + $0x21] sm:$0x1]
    %v645 = vld [vmem:[%s612 + $0x24] sm:$0x1]
    %v646 = vld [vmem:[%s612 + $0x25] sm:$0x1]
    %v647 = vld [vmem:[%s612 + $0x26] sm:$0x1]
    %v648 = vld [vmem:[%s612 + $0x27] sm:$0x1]
    %v649 = vld [vmem:[%s612 + $0x28] sm:$0x1]
    %v650 = vld [vmem:[%s612 + $0x29] sm:$0x1]
    %v651 = vld [vmem:[%s612 + $0x2a] sm:$0x1]
    %v652 = vld [vmem:[%s612 + $0x2b] sm:$0x1]
    %v653 = vld [vmem:[%s612 + $0x2c] sm:$0x1]
    %v654 = vld [vmem:[%s612 + $0x2d] sm:$0x1]
    %v655 = vld [vmem:[%s612 + $0x2e] sm:$0x1]
    %v656 = vld [vmem:[%s612 + $0x2f] sm:$0x1]
    %v657 = vld [vmem:[%s612 + $0x30] sm:$0x1]
    %v658 = vld [vmem:[%s612 + $0x31] sm:$0x1]
    %v659 = vld [vmem:[%s612 + $0x32] sm:$0x1]
    %v660 = vld [vmem:[%s612 + $0x33] sm:$0x1]
    %v661 = vld [vmem:[%s612 + $0x36] sm:$0x1]
    %v662 = vld [vmem:[%s612 + $0x37] sm:$0x1]
    %v663 = vld [vmem:[%s612 + $0x38] sm:$0x1]
    %v664 = vld [vmem:[%s612 + $0x39] sm:$0x1]
    %v665 = vld [vmem:[%s612 + $0x3a] sm:$0x1]
    %v666 = vld [vmem:[%s612 + $0x3b] sm:$0x1]
    %v667 = vld [vmem:[%s612 + $0x3c] sm:$0x1]
    %v668 = vld [vmem:[%s612 + $0x3d] sm:$0x1]
    %v669 = vld [vmem:[%s612 + $0x3e] sm:$0x1]
    %v670 = vld [vmem:[%s612 + $0x3f] sm:$0x1]
    %v671 = vld [vmem:[%s612 + $0x40] sm:$0x1]
    %v672 = vld [vmem:[%s612 + $0x41] sm:$0x1]
    %v673 = vld [vmem:[%s612 + $0x42] sm:$0x1]
    %v674 = vld [vmem:[%s612 + $0x43] sm:$0x1]
    %v675 = vld [vmem:[%s612 + $0x44] sm:$0x1]
    %v676 = vld [vmem:[%s612 + $0x45] sm:$0x1]
    %v677 = vld [vmem:[%s612 + $0x48] sm:$0x1]
    %v678 = vld [vmem:[%s612 + $0x49] sm:$0x1]
    %v679 = vld [vmem:[%s612 + $0x4a] sm:$0x1]
    %v680 = vld [vmem:[%s612 + $0x4b] sm:$0x1]
    %v681 = vld [vmem:[%s612 + $0x4c] sm:$0x1]
    %v682 = vld [vmem:[%s612 + $0x4d] sm:$0x1]
    %v683 = vld [vmem:[%s612 + $0x4e] sm:$0x1]
    %v684 = vld [vmem:[%s612 + $0x4f] sm:$0x1]
    %v685 = vld [vmem:[%s612 + $0x50] sm:$0x1]
    %v686 = vld [vmem:[%s612 + $0x51] sm:$0x1]
    %v687 = vld [vmem:[%s612 + $0x52] sm:$0x1]
    %v688 = vld [vmem:[%s612 + $0x53] sm:$0x1]
    %v689 = vld [vmem:[%s612 + $0x54] sm:$0x1]
    %v690 = vld [vmem:[%s612 + $0x55] sm:$0x1]
    %v691 = vld [vmem:[%s612 + $0x56] sm:$0x1]
    %v692 = vld [vmem:[%s612 + $0x57] sm:$0x1]
    %v693 = vld [vmem:[%s612 + $0x5a] sm:$0x1]
    %v694 = vld [vmem:[%s612 + $0x5b] sm:$0x1]
    %v695 = vld [vmem:[%s612 + $0x5c] sm:$0x1]
    %v696 = vld [vmem:[%s612 + $0x5d] sm:$0x1]
    %v697 = vld [vmem:[%s612 + $0x5e] sm:$0x1]
    %v698 = vld [vmem:[%s612 + $0x5f] sm:$0x1]
    %v699 = vld [vmem:[%s612 + $0x60] sm:$0x1]
    %v700 = vld [vmem:[%s612 + $0x61] sm:$0x1]
    %v701 = vld [vmem:[%s612 + $0x62] sm:$0x1]
    %v702 = vld [vmem:[%s612 + $0x63] sm:$0x1]
    %v703 = vld [vmem:[%s612 + $0x64] sm:$0x1]
    %v704 = vld [vmem:[%s612 + $0x65] sm:$0x1]
    %v705 = vld [vmem:[%s612 + $0x66] sm:$0x1]
    %v706 = vld [vmem:[%s612 + $0x67] sm:$0x1]
    %v707 = vld [vmem:[%s612 + $0x68] sm:$0x1]
    %v708 = vld [vmem:[%s612 + $0x69] sm:$0x1]
    %v709 = vld [vmem:[%s612 + $0x6c] sm:$0x1]
    %v710 = vld [vmem:[%s612 + $0x6d] sm:$0x1]
    %v711 = vld [vmem:[%s612 + $0x6e] sm:$0x1]
    %v712 = vld [vmem:[%s612 + $0x6f] sm:$0x1]
    %v713 = vld [vmem:[%s612 + $0x70] sm:$0x1]
    %v714 = vld [vmem:[%s612 + $0x71] sm:$0x1]
    %v715 = vld [vmem:[%s612 + $0x72] sm:$0x1]
    %v716 = vld [vmem:[%s612 + $0x73] sm:$0x1]
    %v717 = vld [vmem:[%s612 + $0x74] sm:$0x1]
    %v718 = vld [vmem:[%s612 + $0x75] sm:$0x1]
    %v719 = vld [vmem:[%s612 + $0x76] sm:$0x1]
    %v720 = vld [vmem:[%s612 + $0x77] sm:$0x1]
    %v721 = vld [vmem:[%s612 + $0x78] sm:$0x1]
    %v722 = vld [vmem:[%s612 + $0x79] sm:$0x1]
    %v723 = vld [vmem:[%s612 + $0x7a] sm:$0x1]
    %v724 = vld [vmem:[%s612 + $0x7b] sm:$0x1]
    %v725 = vld [vmem:[%s612 + $0x7e] sm:$0x1]
    %v726 = vld [vmem:[%s612 + $0x7f] sm:$0x1]
    %v727 = vld [vmem:[%s612 + $0x80] sm:$0x1]
    %v728 = vld [vmem:[%s612 + $0x81] sm:$0x1]
    %v729 = vld [vmem:[%s612 + $0x82] sm:$0x1]
    %v730 = vld [vmem:[%s612 + $0x83] sm:$0x1]
    %v731 = vld [vmem:[%s612 + $0x84] sm:$0x1]
    %v732 = vld [vmem:[%s612 + $0x85] sm:$0x1]
    %v733 = vld [vmem:[%s612 + $0x86] sm:$0x1]
    %v734 = vld [vmem:[%s612 + $0x87] sm:$0x1]
    %v735 = vld [vmem:[%s612 + $0x88] sm:$0x1]
    %v736 = vld [vmem:[%s612 + $0x89] sm:$0x1]
    %v737 = vld [vmem:[%s612 + $0x8a] sm:$0x1]
    %v738 = vld [vmem:[%s612 + $0x8b] sm:$0x1]
    %v739 = vld [vmem:[%s612 + $0x8c] sm:$0x1]
    %v740 = vld [vmem:[%s612 + $0x8d] sm:$0x1]
    %v741 = vld [vmem:[%s612 + $0x90] sm:$0x1]
    %v742 = vld [vmem:[%s612 + $0x91] sm:$0x1]
    %v743 = vld [vmem:[%s612 + $0x92] sm:$0x1]
    %v744 = vld [vmem:[%s612 + $0x93] sm:$0x1]
    %v745 = vld [vmem:[%s612 + $0x94] sm:$0x1]
    %v746 = vld [vmem:[%s612 + $0x95] sm:$0x1]
    %v747 = vld [vmem:[%s612 + $0x96] sm:$0x1]
    %v748 = vld [vmem:[%s612 + $0x97] sm:$0x1]
    %v749 = vld [vmem:[%s612 + $0x98] sm:$0x1]
    %v750 = vld [vmem:[%s612 + $0x99] sm:$0x1]
    %v751 = vld [vmem:[%s612 + $0x9a] sm:$0x1]
    %v752 = vld [vmem:[%s612 + $0x9b] sm:$0x1]
    %v753 = vld [vmem:[%s612 + $0x9c] sm:$0x1]
    %v754 = vld [vmem:[%s612 + $0x9d] sm:$0x1]
    %v755 = vld [vmem:[%s612 + $0x9e] sm:$0x1]
    %v756 = vld [vmem:[%s612 + $0x9f] sm:$0x1]
    %v757 = vld [vmem:[%s612 + $0xa2] sm:$0x1]
    %v758 = vld [vmem:[%s612 + $0xa3] sm:$0x1]
    %v759 = vld [vmem:[%s612 + $0xa4] sm:$0x1]
    %v760 = vld [vmem:[%s612 + $0xa5] sm:$0x1]
    %v761 = vld [vmem:[%s612 + $0xa6] sm:$0x1]
    %v762 = vld [vmem:[%s612 + $0xa7] sm:$0x1]
    %v763 = vld [vmem:[%s612 + $0xa8] sm:$0x1]
    %v764 = vld [vmem:[%s612 + $0xa9] sm:$0x1]
    %v765 = vld [vmem:[%s612 + $0xaa] sm:$0x1]
    %v766 = vld [vmem:[%s612 + $0xab] sm:$0x1]
    %v767 = vld [vmem:[%s612 + $0xac] sm:$0x1]
    %v768 = vld [vmem:[%s612 + $0xad] sm:$0x1]
    %v769 = vld [vmem:[%s612 + $0xae] sm:$0x1]
    %v770 = vld [vmem:[%s612 + $0xaf] sm:$0x1]
    %v771 = vld [vmem:[%s612 + $0xb0] sm:$0x1]
    %v772 = vld [vmem:[%s612 + $0xb1] sm:$0x1]
    %v773 = vld [vmem:[%s612 + $0xb4] sm:$0x1]
    %v774 = vld [vmem:[%s612 + $0xb5] sm:$0x1]
    %v775 = vld [vmem:[%s612 + $0xb6] sm:$0x1]
    %v776 = vld [vmem:[%s612 + $0xb7] sm:$0x1]
    %v777 = vld [vmem:[%s612 + $0xb8] sm:$0x1]
    %v778 = vld [vmem:[%s612 + $0xb9] sm:$0x1]
    %v779 = vld [vmem:[%s612 + $0xba] sm:$0x1]
    %v780 = vld [vmem:[%s612 + $0xbb] sm:$0x1]
    %v781 = vld [vmem:[%s612 + $0xbc] sm:$0x1]
    %v782 = vld [vmem:[%s612 + $0xbd] sm:$0x1]
    %v783 = vld [vmem:[%s612 + $0xbe] sm:$0x1]
    %v784 = vld [vmem:[%s612 + $0xbf] sm:$0x1]
    %v785 = vld [vmem:[%s612 + $0xc0] sm:$0x1]
    %v786 = vld [vmem:[%s612 + $0xc1] sm:$0x1]
    %v787 = vld [vmem:[%s612 + $0xc2] sm:$0x1]
    %v788 = vld [vmem:[%s612 + $0xc3] sm:$0x1]
    %v789 = vld [vmem:[%s612 + $0xc6] sm:$0x1]
    %v790 = vld [vmem:[%s612 + $0xc7] sm:$0x1]
    %v791 = vld [vmem:[%s612 + $0xc8] sm:$0x1]
    %v792 = vld [vmem:[%s612 + $0xc9] sm:$0x1]
    %v793 = vld [vmem:[%s612 + $0xca] sm:$0x1]
    %v794 = vld [vmem:[%s612 + $0xcb] sm:$0x1]
    %v795 = vld [vmem:[%s612 + $0xcc] sm:$0x1]
    %v796 = vld [vmem:[%s612 + $0xcd] sm:$0x1]
    %v797 = vld [vmem:[%s612 + $0xce] sm:$0x1]
    %v798 = vld [vmem:[%s612 + $0xcf] sm:$0x1]
    %v799 = vld [vmem:[%s612 + $0xd0] sm:$0x1]
    %v800 = vld [vmem:[%s612 + $0xd1] sm:$0x1]
    %v801 = vld [vmem:[%s612 + $0xd2] sm:$0x1]
    %v802 = vld [vmem:[%s612 + $0xd3] sm:$0x1]
    %v803 = vld [vmem:[%s612 + $0xd4] sm:$0x1]
    %v804 = vld [vmem:[%s612 + $0xd5] sm:$0x1]
    %v805 = vld [vmem:[%s612 + $0xd8] sm:$0x1]
    %v806 = vld [vmem:[%s612 + $0xd9] sm:$0x1]
    %v807 = vld [vmem:[%s612 + $0xda] sm:$0x1]
    %v808 = vld [vmem:[%s612 + $0xdb] sm:$0x1]
    %v809 = vld [vmem:[%s612 + $0xdc] sm:$0x1]
    %v810 = vld [vmem:[%s612 + $0xdd] sm:$0x1]
    %v811 = vld [vmem:[%s612 + $0xde] sm:$0x1]
    %v812 = vld [vmem:[%s612 + $0xdf] sm:$0x1]
    %v813 = vld [vmem:[%s612 + $0xe0] sm:$0x1]
    %v814 = vld [vmem:[%s612 + $0xe1] sm:$0x1]
    %v815 = vld [vmem:[%s612 + $0xe2] sm:$0x1]
    %v816 = vld [vmem:[%s612 + $0xe3] sm:$0x1]
    %v817 = vld [vmem:[%s612 + $0xe4] sm:$0x1]
    %v818 = vld [vmem:[%s612 + $0xe5] sm:$0x1]
    %v819 = vld [vmem:[%s612 + $0xe6] sm:$0x1]
    %v820 = vld [vmem:[%s612 + $0xe7] sm:$0x1]
    %v821 = vld [vmem:[%s612 + $0xea] sm:$0x1]
    %v822 = vld [vmem:[%s612 + $0xeb] sm:$0x1]
    %v823 = vld [vmem:[%s612 + $0xec] sm:$0x1]
    %v824 = vld [vmem:[%s612 + $0xed] sm:$0x1]
    %v825 = vld [vmem:[%s612 + $0xee] sm:$0x1]
    %v826 = vld [vmem:[%s612 + $0xef] sm:$0x1]
    %v827 = vld [vmem:[%s612 + $0xf0] sm:$0x1]
    %v828 = vld [vmem:[%s612 + $0xf1] sm:$0x1]
    %v829 = vld [vmem:[%s612 + $0xf2] sm:$0x1]
    %v830 = vld [vmem:[%s612 + $0xf3] sm:$0x1]
    %v831 = vld [vmem:[%s612 + $0xf4] sm:$0x1]
    %v832 = vld [vmem:[%s612 + $0xf5] sm:$0x1]
    %v833 = vld [vmem:[%s612 + $0xf6] sm:$0x1]
    %v834 = vld [vmem:[%s612 + $0xf7] sm:$0x1]
    %v835 = vld [vmem:[%s612 + $0xf8] sm:$0x1]
    %v836 = vld [vmem:[%s612 + $0xf9] sm:$0x1]
    %v837 = vld [vmem:[%s612 + $0xfc] sm:$0x1]
    %v838 = vld [vmem:[%s612 + $0xfd] sm:$0x1]
    %v839 = vld [vmem:[%s612 + $0xfe] sm:$0x1]
    %v840 = vld [vmem:[%s612 + $0xff] sm:$0x1]
    %v841 = vld [vmem:[%s612 + $0x100] sm:$0x1]
    %v842 = vld [vmem:[%s612 + $0x101] sm:$0x1]
    %v843 = vld [vmem:[%s612 + $0x102] sm:$0x1]
    %v844 = vld [vmem:[%s612 + $0x103] sm:$0x1]
    %v845 = vld [vmem:[%s612 + $0x104] sm:$0x1]
    %v846 = vld [vmem:[%s612 + $0x105] sm:$0x1]
    %v847 = vld [vmem:[%s612 + $0x106] sm:$0x1]
    %v848 = vld [vmem:[%s612 + $0x107] sm:$0x1]
    %v849 = vld [vmem:[%s612 + $0x108] sm:$0x1]
    %v850 = vld [vmem:[%s612 + $0x109] sm:$0x1]
    %v851 = vld [vmem:[%s612 + $0x10a] sm:$0x1]
    %v852 = vld [vmem:[%s612 + $0x10b] sm:$0x1]
    %v853 = vld [vmem:[%s612 + $0x10e] sm:$0x1]
    %v854 = vld [vmem:[%s612 + $0x10f] sm:$0x1]
    %v855 = vld [vmem:[%s612 + $0x110] sm:$0x1]
    %v856 = vld [vmem:[%s612 + $0x111] sm:$0x1]
    %v857 = vld [vmem:[%s612 + $0x112] sm:$0x1]
    %v858 = vld [vmem:[%s612 + $0x113] sm:$0x1]
    %v859 = vld [vmem:[%s612 + $0x114] sm:$0x1]
    %v860 = vld [vmem:[%s612 + $0x115] sm:$0x1]
    %v861 = vld [vmem:[%s612 + $0x116] sm:$0x1]
    %v862 = vld [vmem:[%s612 + $0x117] sm:$0x1]
    %v863 = vld [vmem:[%s612 + $0x118] sm:$0x1]
    %v864 = vld [vmem:[%s612 + $0x119] sm:$0x1]
    %v865 = vld [vmem:[%s612 + $0x11a] sm:$0x1]
    %v866 = vld [vmem:[%s612 + $0x11b] sm:$0x1]
    %v867 = vld [vmem:[%s612 + $0x11c] sm:$0x1]
    %v868 = vld [vmem:[%s612 + $0x11d] sm:$0x1]
    %v869 = vmul.f32 %v613, 0.275
    %v870 = vmul.f32 %v614, 0.275
    %v871 = vmul.f32 %v615, 0.275
    %v872 = vmul.f32 %v616, 0.275
    %v873 = vmul.f32 %v617, 0.275
    %v874 = vmul.f32 %v618, 0.275
    %v875 = vmul.f32 %v619, 0.275
    %v876 = vmul.f32 %v620, 0.275
    %v877 = vmul.f32 %v621, 0.275
    %v878 = vmul.f32 %v622, 0.275
    %v879 = vmul.f32 %v623, 0.275
    %v880 = vmul.f32 %v624, 0.275
    %v881 = vmul.f32 %v625, 0.275
    %v882 = vmul.f32 %v626, 0.275
    %v883 = vmul.f32 %v627, 0.275
    %v884 = vmul.f32 %v628, 0.275
    %v885 = vmul.f32 %v629, 0.275
    %v886 = vmul.f32 %v630, 0.275
    %v887 = vmul.f32 %v631, 0.275
    %v888 = vmul.f32 %v632, 0.275
    %v889 = vmul.f32 %v633, 0.275
    %v890 = vmul.f32 %v634, 0.275
    %v891 = vmul.f32 %v635, 0.275
    %v892 = vmul.f32 %v636, 0.275
    %v893 = vmul.f32 %v637, 0.275
    %v894 = vmul.f32 %v638, 0.275
    %v895 = vmul.f32 %v639, 0.275
    %v896 = vmul.f32 %v640, 0.275
    %v897 = vmul.f32 %v641, 0.275
    %v898 = vmul.f32 %v642, 0.275
    %v899 = vmul.f32 %v643, 0.275
    %v900 = vmul.f32 %v644, 0.275
    %v901 = vmul.f32 %v645, 0.275
    %v902 = vmul.f32 %v646, 0.275
    %v903 = vmul.f32 %v647, 0.275
    %v904 = vmul.f32 %v648, 0.275
    %v905 = vmul.f32 %v649, 0.275
    %v906 = vmul.f32 %v650, 0.275
    %v907 = vmul.f32 %v651, 0.275
    %v908 = vmul.f32 %v652, 0.275
    %v909 = vmul.f32 %v653, 0.275
    %v910 = vmul.f32 %v654, 0.275
    %v911 = vmul.f32 %v655, 0.275
    %v912 = vmul.f32 %v656, 0.275
    %v913 = vmul.f32 %v657, 0.275
    %v914 = vmul.f32 %v658, 0.275
    %v915 = vmul.f32 %v659, 0.275
    %v916 = vmul.f32 %v660, 0.275
    %v917 = vmul.f32 %v661, 0.275
    %v918 = vmul.f32 %v662, 0.275
    %v919 = vmul.f32 %v663, 0.275
    %v920 = vmul.f32 %v664, 0.275
    %v921 = vmul.f32 %v665, 0.275
    %v922 = vmul.f32 %v666, 0.275
    %v923 = vmul.f32 %v667, 0.275
    %v924 = vmul.f32 %v668, 0.275
    %v925 = vmul.f32 %v669, 0.275
    %v926 = vmul.f32 %v670, 0.275
    %v927 = vmul.f32 %v671, 0.275
    %v928 = vmul.f32 %v672, 0.275
    %v929 = vmul.f32 %v673, 0.275
    %v930 = vmul.f32 %v674, 0.275
    %v931 = vmul.f32 %v675, 0.275
    %v932 = vmul.f32 %v676, 0.275
    %v933 = vmul.f32 %v677, 0.275
    %v934 = vmul.f32 %v678, 0.275
    %v935 = vmul.f32 %v679, 0.275
    %v936 = vmul.f32 %v680, 0.275
    %v937 = vmul.f32 %v681, 0.275
    %v938 = vmul.f32 %v682, 0.275
    %v939 = vmul.f32 %v683, 0.275
    %v940 = vmul.f32 %v684, 0.275
    %v941 = vmul.f32 %v685, 0.275
    %v942 = vmul.f32 %v686, 0.275
    %v943 = vmul.f32 %v687, 0.275
    %v944 = vmul.f32 %v688, 0.275
    %v945 = vmul.f32 %v689, 0.275
    %v946 = vmul.f32 %v690, 0.275
    %v947 = vmul.f32 %v691, 0.275
    %v948 = vmul.f32 %v692, 0.275
    %v949 = vmul.f32 %v693, 0.275
    %v950 = vmul.f32 %v694, 0.275
    %v951 = vmul.f32 %v695, 0.275
    %v952 = vmul.f32 %v696, 0.275
    %v953 = vmul.f32 %v697, 0.275
    %v954 = vmul.f32 %v698, 0.275
    %v955 = vmul.f32 %v699, 0.275
    %v956 = vmul.f32 %v700, 0.275
    %v957 = vmul.f32 %v701, 0.275
    %v958 = vmul.f32 %v702, 0.275
    %v959 = vmul.f32 %v703, 0.275
    %v960 = vmul.f32 %v704, 0.275
    %v961 = vmul.f32 %v705, 0.275
    %v962 = vmul.f32 %v706, 0.275
    %v963 = vmul.f32 %v707, 0.275
    %v964 = vmul.f32 %v708, 0.275
    %v965 = vmul.f32 %v709, 0.275
    %v966 = vmul.f32 %v710, 0.275
    %v967 = vmul.f32 %v711, 0.275
    %v968 = vmul.f32 %v712, 0.275
    %v969 = vmul.f32 %v713, 0.275
    %v970 = vmul.f32 %v714, 0.275
    %v971 = vmul.f32 %v715, 0.275
    %v972 = vmul.f32 %v716, 0.275
    %v973 = vmul.f32 %v717, 0.275
    %v974 = vmul.f32 %v718, 0.275
    %v975 = vmul.f32 %v719, 0.275
    %v976 = vmul.f32 %v720, 0.275
    %v977 = vmul.f32 %v721, 0.275
    %v978 = vmul.f32 %v722, 0.275
    %v979 = vmul.f32 %v723, 0.275
    %v980 = vmul.f32 %v724, 0.275
    %v981 = vmul.f32 %v725, 0.275
    %v982 = vmul.f32 %v726, 0.275
    %v983 = vmul.f32 %v727, 0.275
    %v984 = vmul.f32 %v728, 0.275
    %v985 = vmul.f32 %v729, 0.275
    %v986 = vmul.f32 %v730, 0.275
    %v987 = vmul.f32 %v731, 0.275
    %v988 = vmul.f32 %v732, 0.275
    %v989 = vmul.f32 %v733, 0.275
    %v990 = vmul.f32 %v734, 0.275
    %v991 = vmul.f32 %v735, 0.275
    %v992 = vmul.f32 %v736, 0.275
    %v993 = vmul.f32 %v737, 0.275
    %v994 = vmul.f32 %v738, 0.275
    %v995 = vmul.f32 %v739, 0.275
    %v996 = vmul.f32 %v740, 0.275
    %v997 = vmul.f32 %v741, 0.275
    %v998 = vmul.f32 %v742, 0.275
    %v999 = vmul.f32 %v743, 0.275
    %v1000 = vmul.f32 %v744, 0.275
    %v1001 = vmul.f32 %v745, 0.275
    %v1002 = vmul.f32 %v746, 0.275
    %v1003 = vmul.f32 %v747, 0.275
    %v1004 = vmul.f32 %v748, 0.275
    %v1005 = vmul.f32 %v749, 0.275
    %v1006 = vmul.f32 %v750, 0.275
    %v1007 = vmul.f32 %v751, 0.275
    %v1008 = vmul.f32 %v752, 0.275
    %v1009 = vmul.f32 %v753, 0.275
    %v1010 = vmul.f32 %v754, 0.275
    %v1011 = vmul.f32 %v755, 0.275
    %v1012 = vmul.f32 %v756, 0.275
    %v1013 = vmul.f32 %v757, 0.275
    %v1014 = vmul.f32 %v758, 0.275
    %v1015 = vmul.f32 %v759, 0.275
    %v1016 = vmul.f32 %v760, 0.275
    %v1017 = vmul.f32 %v761, 0.275
    %v1018 = vmul.f32 %v762, 0.275
    %v1019 = vmul.f32 %v763, 0.275
    %v1020 = vmul.f32 %v764, 0.275
    %v1021 = vmul.f32 %v765, 0.275
    %v1022 = vmul.f32 %v766, 0.275
    %v1023 = vmul.f32 %v767, 0.275
    %v1024 = vmul.f32 %v768, 0.275
    %v1025 = vmul.f32 %v769, 0.275
    %v1026 = vmul.f32 %v770, 0.275
    %v1027 = vmul.f32 %v771, 0.275
    %v1028 = vmul.f32 %v772, 0.275
    %v1029 = vmul.f32 %v773, 0.275
    %v1030 = vmul.f32 %v774, 0.275
    %v1031 = vmul.f32 %v775, 0.275
    %v1032 = vmul.f32 %v776, 0.275
    %v1033 = vmul.f32 %v777, 0.275
    %v1034 = vmul.f32 %v778, 0.275
    %v1035 = vmul.f32 %v779, 0.275
    %v1036 = vmul.f32 %v780, 0.275
    %v1037 = vmul.f32 %v781, 0.275
    %v1038 = vmul.f32 %v782, 0.275
    %v1039 = vmul.f32 %v783, 0.275
    %v1040 = vmul.f32 %v784, 0.275
    %v1041 = vmul.f32 %v785, 0.275
    %v1042 = vmul.f32 %v786, 0.275
    %v1043 = vmul.f32 %v787, 0.275
    %v1044 = vmul.f32 %v788, 0.275
    %v1045 = vmul.f32 %v789, 0.275
    %v1046 = vmul.f32 %v790, 0.275
    %v1047 = vmul.f32 %v791, 0.275
    %v1048 = vmul.f32 %v792, 0.275
    %v1049 = vmul.f32 %v793, 0.275
    %v1050 = vmul.f32 %v794, 0.275
    %v1051 = vmul.f32 %v795, 0.275
    %v1052 = vmul.f32 %v796, 0.275
    %v1053 = vmul.f32 %v797, 0.275
    %v1054 = vmul.f32 %v798, 0.275
    %v1055 = vmul.f32 %v799, 0.275
    %v1056 = vmul.f32 %v800, 0.275
    %v1057 = vmul.f32 %v801, 0.275
    %v1058 = vmul.f32 %v802, 0.275
    %v1059 = vmul.f32 %v803, 0.275
    %v1060 = vmul.f32 %v804, 0.275
    %v1061 = vmul.f32 %v805, 0.275
    %v1062 = vmul.f32 %v806, 0.275
    %v1063 = vmul.f32 %v807, 0.275
    %v1064 = vmul.f32 %v808, 0.275
    %v1065 = vmul.f32 %v809, 0.275
    %v1066 = vmul.f32 %v810, 0.275
    %v1067 = vmul.f32 %v811, 0.275
    %v1068 = vmul.f32 %v812, 0.275
    %v1069 = vmul.f32 %v813, 0.275
    %v1070 = vmul.f32 %v814, 0.275
    %v1071 = vmul.f32 %v815, 0.275
    %v1072 = vmul.f32 %v816, 0.275
    %v1073 = vmul.f32 %v817, 0.275
    %v1074 = vmul.f32 %v818, 0.275
    %v1075 = vmul.f32 %v819, 0.275
    %v1076 = vmul.f32 %v820, 0.275
    %v1077 = vmul.f32 %v821, 0.275
    %v1078 = vmul.f32 %v822, 0.275
    %v1079 = vmul.f32 %v823, 0.275
    %v1080 = vmul.f32 %v824, 0.275
    %v1081 = vmul.f32 %v825, 0.275
    %v1082 = vmul.f32 %v826, 0.275
    %v1083 = vmul.f32 %v827, 0.275
    %v1084 = vmul.f32 %v828, 0.275
    %v1085 = vmul.f32 %v829, 0.275
    %v1086 = vmul.f32 %v830, 0.275
    %v1087 = vmul.f32 %v831, 0.275
    %v1088 = vmul.f32 %v832, 0.275
    %v1089 = vmul.f32 %v833, 0.275
    %v1090 = vmul.f32 %v834, 0.275
    %v1091 = vmul.f32 %v835, 0.275
    %v1092 = vmul.f32 %v836, 0.275
    %v1093 = vmul.f32 %v837, 0.275
    %v1094 = vmul.f32 %v838, 0.275
    %v1095 = vmul.f32 %v839, 0.275
    %v1096 = vmul.f32 %v840, 0.275
    %v1097 = vmul.f32 %v841, 0.275
    %v1098 = vmul.f32 %v842, 0.275
    %v1099 = vmul.f32 %v843, 0.275
    %v1100 = vmul.f32 %v844, 0.275
    %v1101 = vmul.f32 %v845, 0.275
    %v1102 = vmul.f32 %v846, 0.275
    %v1103 = vmul.f32 %v847, 0.275
    %v1104 = vmul.f32 %v848, 0.275
    %v1105 = vmul.f32 %v849, 0.275
    %v1106 = vmul.f32 %v850, 0.275
    %v1107 = vmul.f32 %v851, 0.275
    %v1108 = vmul.f32 %v852, 0.275
    %v1109 = vmul.f32 %v853, 0.275
    %v1110 = vmul.f32 %v854, 0.275
    %v1111 = vmul.f32 %v855, 0.275
    %v1112 = vmul.f32 %v856, 0.275
    %v1113 = vmul.f32 %v857, 0.275
    %v1114 = vmul.f32 %v858, 0.275
    %v1115 = vmul.f32 %v859, 0.275
    %v1116 = vmul.f32 %v860, 0.275
    %v1117 = vmul.f32 %v861, 0.275
    %v1118 = vmul.f32 %v862, 0.275
    %v1119 = vmul.f32 %v863, 0.275
    %v1120 = vmul.f32 %v864, 0.275
    %v1121 = vmul.f32 %v865, 0.275
    %v1122 = vmul.f32 %v866, 0.275
    %v1123 = vmul.f32 %v867, 0.275
    %v1124 = vmul.f32 %v868, 0.275
    %s1125 = scalar_lea.vmem [#allocation2], 18
    %v1126 = vld [vmem:[%s1125] sm:$0x1]
    %v1127 = vld [vmem:[%s1125 + $0x1] sm:$0x1]
    %v1128 = vld [vmem:[%s1125 + $0x2] sm:$0x1]
    %v1129 = vld [vmem:[%s1125 + $0x3] sm:$0x1]
    %v1130 = vld [vmem:[%s1125 + $0x4] sm:$0x1]
    %v1131 = vld [vmem:[%s1125 + $0x5] sm:$0x1]
    %v1132 = vld [vmem:[%s1125 + $0x6] sm:$0x1]
    %v1133 = vld [vmem:[%s1125 + $0x7] sm:$0x1]
    %v1134 = vld [vmem:[%s1125 + $0x8] sm:$0x1]
    %v1135 = vld [vmem:[%s1125 + $0x9] sm:$0x1]
    %v1136 = vld [vmem:[%s1125 + $0xa] sm:$0x1]
    %v1137 = vld [vmem:[%s1125 + $0xb] sm:$0x1]
    %v1138 = vld [vmem:[%s1125 + $0xc] sm:$0x1]
    %v1139 = vld [vmem:[%s1125 + $0xd] sm:$0x1]
    %v1140 = vld [vmem:[%s1125 + $0xe] sm:$0x1]
    %v1141 = vld [vmem:[%s1125 + $0xf] sm:$0x1]
    %v1142 = vld [vmem:[%s1125 + $0x12] sm:$0x1]
    %v1143 = vld [vmem:[%s1125 + $0x13] sm:$0x1]
    %v1144 = vld [vmem:[%s1125 + $0x14] sm:$0x1]
    %v1145 = vld [vmem:[%s1125 + $0x15] sm:$0x1]
    %v1146 = vld [vmem:[%s1125 + $0x16] sm:$0x1]
    %v1147 = vld [vmem:[%s1125 + $0x17] sm:$0x1]
    %v1148 = vld [vmem:[%s1125 + $0x18] sm:$0x1]
    %v1149 = vld [vmem:[%s1125 + $0x19] sm:$0x1]
    %v1150 = vld [vmem:[%s1125 + $0x1a] sm:$0x1]
    %v1151 = vld [vmem:[%s1125 + $0x1b] sm:$0x1]
    %v1152 = vld [vmem:[%s1125 + $0x1c] sm:$0x1]
    %v1153 = vld [vmem:[%s1125 + $0x1d] sm:$0x1]
    %v1154 = vld [vmem:[%s1125 + $0x1e] sm:$0x1]
    %v1155 = vld [vmem:[%s1125 + $0x1f] sm:$0x1]
    %v1156 = vld [vmem:[%s1125 + $0x20] sm:$0x1]
    %v1157 = vld [vmem:[%s1125 + $0x21] sm:$0x1]
    %v1158 = vld [vmem:[%s1125 + $0x24] sm:$0x1]
    %v1159 = vld [vmem:[%s1125 + $0x25] sm:$0x1]
    %v1160 = vld [vmem:[%s1125 + $0x26] sm:$0x1]
    %v1161 = vld [vmem:[%s1125 + $0x27] sm:$0x1]
    %v1162 = vld [vmem:[%s1125 + $0x28] sm:$0x1]
    %v1163 = vld [vmem:[%s1125 + $0x29] sm:$0x1]
    %v1164 = vld [vmem:[%s1125 + $0x2a] sm:$0x1]
    %v1165 = vld [vmem:[%s1125 + $0x2b] sm:$0x1]
    %v1166 = vld [vmem:[%s1125 + $0x2c] sm:$0x1]
    %v1167 = vld [vmem:[%s1125 + $0x2d] sm:$0x1]
    %v1168 = vld [vmem:[%s1125 + $0x2e] sm:$0x1]
    %v1169 = vld [vmem:[%s1125 + $0x2f] sm:$0x1]
    %v1170 = vld [vmem:[%s1125 + $0x30] sm:$0x1]
    %v1171 = vld [vmem:[%s1125 + $0x31] sm:$0x1]
    %v1172 = vld [vmem:[%s1125 + $0x32] sm:$0x1]
    %v1173 = vld [vmem:[%s1125 + $0x33] sm:$0x1]
    %v1174 = vld [vmem:[%s1125 + $0x36] sm:$0x1]
    %v1175 = vld [vmem:[%s1125 + $0x37] sm:$0x1]
    %v1176 = vld [vmem:[%s1125 + $0x38] sm:$0x1]
    %v1177 = vld [vmem:[%s1125 + $0x39] sm:$0x1]
    %v1178 = vld [vmem:[%s1125 + $0x3a] sm:$0x1]
    %v1179 = vld [vmem:[%s1125 + $0x3b] sm:$0x1]
    %v1180 = vld [vmem:[%s1125 + $0x3c] sm:$0x1]
    %v1181 = vld [vmem:[%s1125 + $0x3d] sm:$0x1]
    %v1182 = vld [vmem:[%s1125 + $0x3e] sm:$0x1]
    %v1183 = vld [vmem:[%s1125 + $0x3f] sm:$0x1]
    %v1184 = vld [vmem:[%s1125 + $0x40] sm:$0x1]
    %v1185 = vld [vmem:[%s1125 + $0x41] sm:$0x1]
    %v1186 = vld [vmem:[%s1125 + $0x42] sm:$0x1]
    %v1187 = vld [vmem:[%s1125 + $0x43] sm:$0x1]
    %v1188 = vld [vmem:[%s1125 + $0x44] sm:$0x1]
    %v1189 = vld [vmem:[%s1125 + $0x45] sm:$0x1]
    %v1190 = vld [vmem:[%s1125 + $0x48] sm:$0x1]
    %v1191 = vld [vmem:[%s1125 + $0x49] sm:$0x1]
    %v1192 = vld [vmem:[%s1125 + $0x4a] sm:$0x1]
    %v1193 = vld [vmem:[%s1125 + $0x4b] sm:$0x1]
    %v1194 = vld [vmem:[%s1125 + $0x4c] sm:$0x1]
    %v1195 = vld [vmem:[%s1125 + $0x4d] sm:$0x1]
    %v1196 = vld [vmem:[%s1125 + $0x4e] sm:$0x1]
    %v1197 = vld [vmem:[%s1125 + $0x4f] sm:$0x1]
    %v1198 = vld [vmem:[%s1125 + $0x50] sm:$0x1]
    %v1199 = vld [vmem:[%s1125 + $0x51] sm:$0x1]
    %v1200 = vld [vmem:[%s1125 + $0x52] sm:$0x1]
    %v1201 = vld [vmem:[%s1125 + $0x53] sm:$0x1]
    %v1202 = vld [vmem:[%s1125 + $0x54] sm:$0x1]
    %v1203 = vld [vmem:[%s1125 + $0x55] sm:$0x1]
    %v1204 = vld [vmem:[%s1125 + $0x56] sm:$0x1]
    %v1205 = vld [vmem:[%s1125 + $0x57] sm:$0x1]
    %v1206 = vld [vmem:[%s1125 + $0x5a] sm:$0x1]
    %v1207 = vld [vmem:[%s1125 + $0x5b] sm:$0x1]
    %v1208 = vld [vmem:[%s1125 + $0x5c] sm:$0x1]
    %v1209 = vld [vmem:[%s1125 + $0x5d] sm:$0x1]
    %v1210 = vld [vmem:[%s1125 + $0x5e] sm:$0x1]
    %v1211 = vld [vmem:[%s1125 + $0x5f] sm:$0x1]
    %v1212 = vld [vmem:[%s1125 + $0x60] sm:$0x1]
    %v1213 = vld [vmem:[%s1125 + $0x61] sm:$0x1]
    %v1214 = vld [vmem:[%s1125 + $0x62] sm:$0x1]
    %v1215 = vld [vmem:[%s1125 + $0x63] sm:$0x1]
    %v1216 = vld [vmem:[%s1125 + $0x64] sm:$0x1]
    %v1217 = vld [vmem:[%s1125 + $0x65] sm:$0x1]
    %v1218 = vld [vmem:[%s1125 + $0x66] sm:$0x1]
    %v1219 = vld [vmem:[%s1125 + $0x67] sm:$0x1]
    %v1220 = vld [vmem:[%s1125 + $0x68] sm:$0x1]
    %v1221 = vld [vmem:[%s1125 + $0x69] sm:$0x1]
    %v1222 = vld [vmem:[%s1125 + $0x6c] sm:$0x1]
    %v1223 = vld [vmem:[%s1125 + $0x6d] sm:$0x1]
    %v1224 = vld [vmem:[%s1125 + $0x6e] sm:$0x1]
    %v1225 = vld [vmem:[%s1125 + $0x6f] sm:$0x1]
    %v1226 = vld [vmem:[%s1125 + $0x70] sm:$0x1]
    %v1227 = vld [vmem:[%s1125 + $0x71] sm:$0x1]
    %v1228 = vld [vmem:[%s1125 + $0x72] sm:$0x1]
    %v1229 = vld [vmem:[%s1125 + $0x73] sm:$0x1]
    %v1230 = vld [vmem:[%s1125 + $0x74] sm:$0x1]
    %v1231 = vld [vmem:[%s1125 + $0x75] sm:$0x1]
    %v1232 = vld [vmem:[%s1125 + $0x76] sm:$0x1]
    %v1233 = vld [vmem:[%s1125 + $0x77] sm:$0x1]
    %v1234 = vld [vmem:[%s1125 + $0x78] sm:$0x1]
    %v1235 = vld [vmem:[%s1125 + $0x79] sm:$0x1]
    %v1236 = vld [vmem:[%s1125 + $0x7a] sm:$0x1]
    %v1237 = vld [vmem:[%s1125 + $0x7b] sm:$0x1]
    %v1238 = vld [vmem:[%s1125 + $0x7e] sm:$0x1]
    %v1239 = vld [vmem:[%s1125 + $0x7f] sm:$0x1]
    %v1240 = vld [vmem:[%s1125 + $0x80] sm:$0x1]
    %v1241 = vld [vmem:[%s1125 + $0x81] sm:$0x1]
    %v1242 = vld [vmem:[%s1125 + $0x82] sm:$0x1]
    %v1243 = vld [vmem:[%s1125 + $0x83] sm:$0x1]
    %v1244 = vld [vmem:[%s1125 + $0x84] sm:$0x1]
    %v1245 = vld [vmem:[%s1125 + $0x85] sm:$0x1]
    %v1246 = vld [vmem:[%s1125 + $0x86] sm:$0x1]
    %v1247 = vld [vmem:[%s1125 + $0x87] sm:$0x1]
    %v1248 = vld [vmem:[%s1125 + $0x88] sm:$0x1]
    %v1249 = vld [vmem:[%s1125 + $0x89] sm:$0x1]
    %v1250 = vld [vmem:[%s1125 + $0x8a] sm:$0x1]
    %v1251 = vld [vmem:[%s1125 + $0x8b] sm:$0x1]
    %v1252 = vld [vmem:[%s1125 + $0x8c] sm:$0x1]
    %v1253 = vld [vmem:[%s1125 + $0x8d] sm:$0x1]
    %v1254 = vld [vmem:[%s1125 + $0x90] sm:$0x1]
    %v1255 = vld [vmem:[%s1125 + $0x91] sm:$0x1]
    %v1256 = vld [vmem:[%s1125 + $0x92] sm:$0x1]
    %v1257 = vld [vmem:[%s1125 + $0x93] sm:$0x1]
    %v1258 = vld [vmem:[%s1125 + $0x94] sm:$0x1]
    %v1259 = vld [vmem:[%s1125 + $0x95] sm:$0x1]
    %v1260 = vld [vmem:[%s1125 + $0x96] sm:$0x1]
    %v1261 = vld [vmem:[%s1125 + $0x97] sm:$0x1]
    %v1262 = vld [vmem:[%s1125 + $0x98] sm:$0x1]
    %v1263 = vld [vmem:[%s1125 + $0x99] sm:$0x1]
    %v1264 = vld [vmem:[%s1125 + $0x9a] sm:$0x1]
    %v1265 = vld [vmem:[%s1125 + $0x9b] sm:$0x1]
    %v1266 = vld [vmem:[%s1125 + $0x9c] sm:$0x1]
    %v1267 = vld [vmem:[%s1125 + $0x9d] sm:$0x1]
    %v1268 = vld [vmem:[%s1125 + $0x9e] sm:$0x1]
    %v1269 = vld [vmem:[%s1125 + $0x9f] sm:$0x1]
    %v1270 = vld [vmem:[%s1125 + $0xa2] sm:$0x1]
    %v1271 = vld [vmem:[%s1125 + $0xa3] sm:$0x1]
    %v1272 = vld [vmem:[%s1125 + $0xa4] sm:$0x1]
    %v1273 = vld [vmem:[%s1125 + $0xa5] sm:$0x1]
    %v1274 = vld [vmem:[%s1125 + $0xa6] sm:$0x1]
    %v1275 = vld [vmem:[%s1125 + $0xa7] sm:$0x1]
    %v1276 = vld [vmem:[%s1125 + $0xa8] sm:$0x1]
    %v1277 = vld [vmem:[%s1125 + $0xa9] sm:$0x1]
    %v1278 = vld [vmem:[%s1125 + $0xaa] sm:$0x1]
    %v1279 = vld [vmem:[%s1125 + $0xab] sm:$0x1]
    %v1280 = vld [vmem:[%s1125 + $0xac] sm:$0x1]
    %v1281 = vld [vmem:[%s1125 + $0xad] sm:$0x1]
    %v1282 = vld [vmem:[%s1125 + $0xae] sm:$0x1]
    %v1283 = vld [vmem:[%s1125 + $0xaf] sm:$0x1]
    %v1284 = vld [vmem:[%s1125 + $0xb0] sm:$0x1]
    %v1285 = vld [vmem:[%s1125 + $0xb1] sm:$0x1]
    %v1286 = vld [vmem:[%s1125 + $0xb4] sm:$0x1]
    %v1287 = vld [vmem:[%s1125 + $0xb5] sm:$0x1]
    %v1288 = vld [vmem:[%s1125 + $0xb6] sm:$0x1]
    %v1289 = vld [vmem:[%s1125 + $0xb7] sm:$0x1]
    %v1290 = vld [vmem:[%s1125 + $0xb8] sm:$0x1]
    %v1291 = vld [vmem:[%s1125 + $0xb9] sm:$0x1]
    %v1292 = vld [vmem:[%s1125 + $0xba] sm:$0x1]
    %v1293 = vld [vmem:[%s1125 + $0xbb] sm:$0x1]
    %v1294 = vld [vmem:[%s1125 + $0xbc] sm:$0x1]
    %v1295 = vld [vmem:[%s1125 + $0xbd] sm:$0x1]
    %v1296 = vld [vmem:[%s1125 + $0xbe] sm:$0x1]
    %v1297 = vld [vmem:[%s1125 + $0xbf] sm:$0x1]
    %v1298 = vld [vmem:[%s1125 + $0xc0] sm:$0x1]
    %v1299 = vld [vmem:[%s1125 + $0xc1] sm:$0x1]
    %v1300 = vld [vmem:[%s1125 + $0xc2] sm:$0x1]
    %v1301 = vld [vmem:[%s1125 + $0xc3] sm:$0x1]
    %v1302 = vld [vmem:[%s1125 + $0xc6] sm:$0x1]
    %v1303 = vld [vmem:[%s1125 + $0xc7] sm:$0x1]
    %v1304 = vld [vmem:[%s1125 + $0xc8] sm:$0x1]
    %v1305 = vld [vmem:[%s1125 + $0xc9] sm:$0x1]
    %v1306 = vld [vmem:[%s1125 + $0xca] sm:$0x1]
    %v1307 = vld [vmem:[%s1125 + $0xcb] sm:$0x1]
    %v1308 = vld [vmem:[%s1125 + $0xcc] sm:$0x1]
    %v1309 = vld [vmem:[%s1125 + $0xcd] sm:$0x1]
    %v1310 = vld [vmem:[%s1125 + $0xce] sm:$0x1]
    %v1311 = vld [vmem:[%s1125 + $0xcf] sm:$0x1]
    %v1312 = vld [vmem:[%s1125 + $0xd0] sm:$0x1]
    %v1313 = vld [vmem:[%s1125 + $0xd1] sm:$0x1]
    %v1314 = vld [vmem:[%s1125 + $0xd2] sm:$0x1]
    %v1315 = vld [vmem:[%s1125 + $0xd3] sm:$0x1]
    %v1316 = vld [vmem:[%s1125 + $0xd4] sm:$0x1]
    %v1317 = vld [vmem:[%s1125 + $0xd5] sm:$0x1]
    %v1318 = vld [vmem:[%s1125 + $0xd8] sm:$0x1]
    %v1319 = vld [vmem:[%s1125 + $0xd9] sm:$0x1]
    %v1320 = vld [vmem:[%s1125 + $0xda] sm:$0x1]
    %v1321 = vld [vmem:[%s1125 + $0xdb] sm:$0x1]
    %v1322 = vld [vmem:[%s1125 + $0xdc] sm:$0x1]
    %v1323 = vld [vmem:[%s1125 + $0xdd] sm:$0x1]
    %v1324 = vld [vmem:[%s1125 + $0xde] sm:$0x1]
    %v1325 = vld [vmem:[%s1125 + $0xdf] sm:$0x1]
    %v1326 = vld [vmem:[%s1125 + $0xe0] sm:$0x1]
    %v1327 = vld [vmem:[%s1125 + $0xe1] sm:$0x1]
    %v1328 = vld [vmem:[%s1125 + $0xe2] sm:$0x1]
    %v1329 = vld [vmem:[%s1125 + $0xe3] sm:$0x1]
    %v1330 = vld [vmem:[%s1125 + $0xe4] sm:$0x1]
    %v1331 = vld [vmem:[%s1125 + $0xe5] sm:$0x1]
    %v1332 = vld [vmem:[%s1125 + $0xe6] sm:$0x1]
    %v1333 = vld [vmem:[%s1125 + $0xe7] sm:$0x1]
    %v1334 = vld [vmem:[%s1125 + $0xea] sm:$0x1]
    %v1335 = vld [vmem:[%s1125 + $0xeb] sm:$0x1]
    %v1336 = vld [vmem:[%s1125 + $0xec] sm:$0x1]
    %v1337 = vld [vmem:[%s1125 + $0xed] sm:$0x1]
    %v1338 = vld [vmem:[%s1125 + $0xee] sm:$0x1]
    %v1339 = vld [vmem:[%s1125 + $0xef] sm:$0x1]
    %v1340 = vld [vmem:[%s1125 + $0xf0] sm:$0x1]
    %v1341 = vld [vmem:[%s1125 + $0xf1] sm:$0x1]
    %v1342 = vld [vmem:[%s1125 + $0xf2] sm:$0x1]
    %v1343 = vld [vmem:[%s1125 + $0xf3] sm:$0x1]
    %v1344 = vld [vmem:[%s1125 + $0xf4] sm:$0x1]
    %v1345 = vld [vmem:[%s1125 + $0xf5] sm:$0x1]
    %v1346 = vld [vmem:[%s1125 + $0xf6] sm:$0x1]
    %v1347 = vld [vmem:[%s1125 + $0xf7] sm:$0x1]
    %v1348 = vld [vmem:[%s1125 + $0xf8] sm:$0x1]
    %v1349 = vld [vmem:[%s1125 + $0xf9] sm:$0x1]
    %v1350 = vld [vmem:[%s1125 + $0xfc] sm:$0x1]
    %v1351 = vld [vmem:[%s1125 + $0xfd] sm:$0x1]
    %v1352 = vld [vmem:[%s1125 + $0xfe] sm:$0x1]
    %v1353 = vld [vmem:[%s1125 + $0xff] sm:$0x1]
    %v1354 = vld [vmem:[%s1125 + $0x100] sm:$0x1]
    %v1355 = vld [vmem:[%s1125 + $0x101] sm:$0x1]
    %v1356 = vld [vmem:[%s1125 + $0x102] sm:$0x1]
    %v1357 = vld [vmem:[%s1125 + $0x103] sm:$0x1]
    %v1358 = vld [vmem:[%s1125 + $0x104] sm:$0x1]
    %v1359 = vld [vmem:[%s1125 + $0x105] sm:$0x1]
    %v1360 = vld [vmem:[%s1125 + $0x106] sm:$0x1]
    %v1361 = vld [vmem:[%s1125 + $0x107] sm:$0x1]
    %v1362 = vld [vmem:[%s1125 + $0x108] sm:$0x1]
    %v1363 = vld [vmem:[%s1125 + $0x109] sm:$0x1]
    %v1364 = vld [vmem:[%s1125 + $0x10a] sm:$0x1]
    %v1365 = vld [vmem:[%s1125 + $0x10b] sm:$0x1]
    %v1366 = vld [vmem:[%s1125 + $0x10e] sm:$0x1]
    %v1367 = vld [vmem:[%s1125 + $0x10f] sm:$0x1]
    %v1368 = vld [vmem:[%s1125 + $0x110] sm:$0x1]
    %v1369 = vld [vmem:[%s1125 + $0x111] sm:$0x1]
    %v1370 = vld [vmem:[%s1125 + $0x112] sm:$0x1]
    %v1371 = vld [vmem:[%s1125 + $0x113] sm:$0x1]
    %v1372 = vld [vmem:[%s1125 + $0x114] sm:$0x1]
    %v1373 = vld [vmem:[%s1125 + $0x115] sm:$0x1]
    %v1374 = vld [vmem:[%s1125 + $0x116] sm:$0x1]
    %v1375 = vld [vmem:[%s1125 + $0x117] sm:$0x1]
    %v1376 = vld [vmem:[%s1125 + $0x118] sm:$0x1]
    %v1377 = vld [vmem:[%s1125 + $0x119] sm:$0x1]
    %v1378 = vld [vmem:[%s1125 + $0x11a] sm:$0x1]
    %v1379 = vld [vmem:[%s1125 + $0x11b] sm:$0x1]
    %v1380 = vld [vmem:[%s1125 + $0x11c] sm:$0x1]
    %v1381 = vld [vmem:[%s1125 + $0x11d] sm:$0x1]
    %v1382 = vmul.f32 %v1126, 0.275
    %v1383 = vmul.f32 %v1127, 0.275
    %v1384 = vmul.f32 %v1128, 0.275
    %v1385 = vmul.f32 %v1129, 0.275
    %v1386 = vmul.f32 %v1130, 0.275
    %v1387 = vmul.f32 %v1131, 0.275
    %v1388 = vmul.f32 %v1132, 0.275
    %v1389 = vmul.f32 %v1133, 0.275
    %v1390 = vmul.f32 %v1134, 0.275
    %v1391 = vmul.f32 %v1135, 0.275
    %v1392 = vmul.f32 %v1136, 0.275
    %v1393 = vmul.f32 %v1137, 0.275
    %v1394 = vmul.f32 %v1138, 0.275
    %v1395 = vmul.f32 %v1139, 0.275
    %v1396 = vmul.f32 %v1140, 0.275
    %v1397 = vmul.f32 %v1141, 0.275
    %v1398 = vmul.f32 %v1142, 0.275
    %v1399 = vmul.f32 %v1143, 0.275
    %v1400 = vmul.f32 %v1144, 0.275
    %v1401 = vmul.f32 %v1145, 0.275
    %v1402 = vmul.f32 %v1146, 0.275
    %v1403 = vmul.f32 %v1147, 0.275
    %v1404 = vmul.f32 %v1148, 0.275
    %v1405 = vmul.f32 %v1149, 0.275
    %v1406 = vmul.f32 %v1150, 0.275
    %v1407 = vmul.f32 %v1151, 0.275
    %v1408 = vmul.f32 %v1152, 0.275
    %v1409 = vmul.f32 %v1153, 0.275
    %v1410 = vmul.f32 %v1154, 0.275
    %v1411 = vmul.f32 %v1155, 0.275
    %v1412 = vmul.f32 %v1156, 0.275
    %v1413 = vmul.f32 %v1157, 0.275
    %v1414 = vmul.f32 %v1158, 0.275
    %v1415 = vmul.f32 %v1159, 0.275
    %v1416 = vmul.f32 %v1160, 0.275
    %v1417 = vmul.f32 %v1161, 0.275
    %v1418 = vmul.f32 %v1162, 0.275
    %v1419 = vmul.f32 %v1163, 0.275
    %v1420 = vmul.f32 %v1164, 0.275
    %v1421 = vmul.f32 %v1165, 0.275
    %v1422 = vmul.f32 %v1166, 0.275
    %v1423 = vmul.f32 %v1167, 0.275
    %v1424 = vmul.f32 %v1168, 0.275
    %v1425 = vmul.f32 %v1169, 0.275
    %v1426 = vmul.f32 %v1170, 0.275
    %v1427 = vmul.f32 %v1171, 0.275
    %v1428 = vmul.f32 %v1172, 0.275
    %v1429 = vmul.f32 %v1173, 0.275
    %v1430 = vmul.f32 %v1174, 0.275
    %v1431 = vmul.f32 %v1175, 0.275
    %v1432 = vmul.f32 %v1176, 0.275
    %v1433 = vmul.f32 %v1177, 0.275
    %v1434 = vmul.f32 %v1178, 0.275
    %v1435 = vmul.f32 %v1179, 0.275
    %v1436 = vmul.f32 %v1180, 0.275
    %v1437 = vmul.f32 %v1181, 0.275
    %v1438 = vmul.f32 %v1182, 0.275
    %v1439 = vmul.f32 %v1183, 0.275
    %v1440 = vmul.f32 %v1184, 0.275
    %v1441 = vmul.f32 %v1185, 0.275
    %v1442 = vmul.f32 %v1186, 0.275
    %v1443 = vmul.f32 %v1187, 0.275
    %v1444 = vmul.f32 %v1188, 0.275
    %v1445 = vmul.f32 %v1189, 0.275
    %v1446 = vmul.f32 %v1190, 0.275
    %v1447 = vmul.f32 %v1191, 0.275
    %v1448 = vmul.f32 %v1192, 0.275
    %v1449 = vmul.f32 %v1193, 0.275
    %v1450 = vmul.f32 %v1194, 0.275
    %v1451 = vmul.f32 %v1195, 0.275
    %v1452 = vmul.f32 %v1196, 0.275
    %v1453 = vmul.f32 %v1197, 0.275
    %v1454 = vmul.f32 %v1198, 0.275
    %v1455 = vmul.f32 %v1199, 0.275
    %v1456 = vmul.f32 %v1200, 0.275
    %v1457 = vmul.f32 %v1201, 0.275
    %v1458 = vmul.f32 %v1202, 0.275
    %v1459 = vmul.f32 %v1203, 0.275
    %v1460 = vmul.f32 %v1204, 0.275
    %v1461 = vmul.f32 %v1205, 0.275
    %v1462 = vmul.f32 %v1206, 0.275
    %v1463 = vmul.f32 %v1207, 0.275
    %v1464 = vmul.f32 %v1208, 0.275
    %v1465 = vmul.f32 %v1209, 0.275
    %v1466 = vmul.f32 %v1210, 0.275
    %v1467 = vmul.f32 %v1211, 0.275
    %v1468 = vmul.f32 %v1212, 0.275
    %v1469 = vmul.f32 %v1213, 0.275
    %v1470 = vmul.f32 %v1214, 0.275
    %v1471 = vmul.f32 %v1215, 0.275
    %v1472 = vmul.f32 %v1216, 0.275
    %v1473 = vmul.f32 %v1217, 0.275
    %v1474 = vmul.f32 %v1218, 0.275
    %v1475 = vmul.f32 %v1219, 0.275
    %v1476 = vmul.f32 %v1220, 0.275
    %v1477 = vmul.f32 %v1221, 0.275
    %v1478 = vmul.f32 %v1222, 0.275
    %v1479 = vmul.f32 %v1223, 0.275
    %v1480 = vmul.f32 %v1224, 0.275
    %v1481 = vmul.f32 %v1225, 0.275
    %v1482 = vmul.f32 %v1226, 0.275
    %v1483 = vmul.f32 %v1227, 0.275
    %v1484 = vmul.f32 %v1228, 0.275
    %v1485 = vmul.f32 %v1229, 0.275
    %v1486 = vmul.f32 %v1230, 0.275
    %v1487 = vmul.f32 %v1231, 0.275
    %v1488 = vmul.f32 %v1232, 0.275
    %v1489 = vmul.f32 %v1233, 0.275
    %v1490 = vmul.f32 %v1234, 0.275
    %v1491 = vmul.f32 %v1235, 0.275
    %v1492 = vmul.f32 %v1236, 0.275
    %v1493 = vmul.f32 %v1237, 0.275
    %v1494 = vmul.f32 %v1238, 0.275
    %v1495 = vmul.f32 %v1239, 0.275
    %v1496 = vmul.f32 %v1240, 0.275
    %v1497 = vmul.f32 %v1241, 0.275
    %v1498 = vmul.f32 %v1242, 0.275
    %v1499 = vmul.f32 %v1243, 0.275
    %v1500 = vmul.f32 %v1244, 0.275
    %v1501 = vmul.f32 %v1245, 0.275
    %v1502 = vmul.f32 %v1246, 0.275
    %v1503 = vmul.f32 %v1247, 0.275
    %v1504 = vmul.f32 %v1248, 0.275
    %v1505 = vmul.f32 %v1249, 0.275
    %v1506 = vmul.f32 %v1250, 0.275
    %v1507 = vmul.f32 %v1251, 0.275
    %v1508 = vmul.f32 %v1252, 0.275
    %v1509 = vmul.f32 %v1253, 0.275
    %v1510 = vmul.f32 %v1254, 0.275
    %v1511 = vmul.f32 %v1255, 0.275
    %v1512 = vmul.f32 %v1256, 0.275
    %v1513 = vmul.f32 %v1257, 0.275
    %v1514 = vmul.f32 %v1258, 0.275
    %v1515 = vmul.f32 %v1259, 0.275
    %v1516 = vmul.f32 %v1260, 0.275
    %v1517 = vmul.f32 %v1261, 0.275
    %v1518 = vmul.f32 %v1262, 0.275
    %v1519 = vmul.f32 %v1263, 0.275
    %v1520 = vmul.f32 %v1264, 0.275
    %v1521 = vmul.f32 %v1265, 0.275
    %v1522 = vmul.f32 %v1266, 0.275
    %v1523 = vmul.f32 %v1267, 0.275
    %v1524 = vmul.f32 %v1268, 0.275
    %v1525 = vmul.f32 %v1269, 0.275
    %v1526 = vmul.f32 %v1270, 0.275
    %v1527 = vmul.f32 %v1271, 0.275
    %v1528 = vmul.f32 %v1272, 0.275
    %v1529 = vmul.f32 %v1273, 0.275
    %v1530 = vmul.f32 %v1274, 0.275
    %v1531 = vmul.f32 %v1275, 0.275
    %v1532 = vmul.f32 %v1276, 0.275
    %v1533 = vmul.f32 %v1277, 0.275
    %v1534 = vmul.f32 %v1278, 0.275
    %v1535 = vmul.f32 %v1279, 0.275
    %v1536 = vmul.f32 %v1280, 0.275
    %v1537 = vmul.f32 %v1281, 0.275
    %v1538 = vmul.f32 %v1282, 0.275
    %v1539 = vmul.f32 %v1283, 0.275
    %v1540 = vmul.f32 %v1284, 0.275
    %v1541 = vmul.f32 %v1285, 0.275
    %v1542 = vmul.f32 %v1286, 0.275
    %v1543 = vmul.f32 %v1287, 0.275
    %v1544 = vmul.f32 %v1288, 0.275
    %v1545 = vmul.f32 %v1289, 0.275
    %v1546 = vmul.f32 %v1290, 0.275
    %v1547 = vmul.f32 %v1291, 0.275
    %v1548 = vmul.f32 %v1292, 0.275
    %v1549 = vmul.f32 %v1293, 0.275
    %v1550 = vmul.f32 %v1294, 0.275
    %v1551 = vmul.f32 %v1295, 0.275
    %v1552 = vmul.f32 %v1296, 0.275
    %v1553 = vmul.f32 %v1297, 0.275
    %v1554 = vmul.f32 %v1298, 0.275
    %v1555 = vmul.f32 %v1299, 0.275
    %v1556 = vmul.f32 %v1300, 0.275
    %v1557 = vmul.f32 %v1301, 0.275
    %v1558 = vmul.f32 %v1302, 0.275
    %v1559 = vmul.f32 %v1303, 0.275
    %v1560 = vmul.f32 %v1304, 0.275
    %v1561 = vmul.f32 %v1305, 0.275
    %v1562 = vmul.f32 %v1306, 0.275
    %v1563 = vmul.f32 %v1307, 0.275
    %v1564 = vmul.f32 %v1308, 0.275
    %v1565 = vmul.f32 %v1309, 0.275
    %v1566 = vmul.f32 %v1310, 0.275
    %v1567 = vmul.f32 %v1311, 0.275
    %v1568 = vmul.f32 %v1312, 0.275
    %v1569 = vmul.f32 %v1313, 0.275
    %v1570 = vmul.f32 %v1314, 0.275
    %v1571 = vmul.f32 %v1315, 0.275
    %v1572 = vmul.f32 %v1316, 0.275
    %v1573 = vmul.f32 %v1317, 0.275
    %v1574 = vmul.f32 %v1318, 0.275
    %v1575 = vmul.f32 %v1319, 0.275
    %v1576 = vmul.f32 %v1320, 0.275
    %v1577 = vmul.f32 %v1321, 0.275
    %v1578 = vmul.f32 %v1322, 0.275
    %v1579 = vmul.f32 %v1323, 0.275
    %v1580 = vmul.f32 %v1324, 0.275
    %v1581 = vmul.f32 %v1325, 0.275
    %v1582 = vmul.f32 %v1326, 0.275
    %v1583 = vmul.f32 %v1327, 0.275
    %v1584 = vmul.f32 %v1328, 0.275
    %v1585 = vmul.f32 %v1329, 0.275
    %v1586 = vmul.f32 %v1330, 0.275
    %v1587 = vmul.f32 %v1331, 0.275
    %v1588 = vmul.f32 %v1332, 0.275
    %v1589 = vmul.f32 %v1333, 0.275
    %v1590 = vmul.f32 %v1334, 0.275
    %v1591 = vmul.f32 %v1335, 0.275
    %v1592 = vmul.f32 %v1336, 0.275
    %v1593 = vmul.f32 %v1337, 0.275
    %v1594 = vmul.f32 %v1338, 0.275
    %v1595 = vmul.f32 %v1339, 0.275
    %v1596 = vmul.f32 %v1340, 0.275
    %v1597 = vmul.f32 %v1341, 0.275
    %v1598 = vmul.f32 %v1342, 0.275
    %v1599 = vmul.f32 %v1343, 0.275
    %v1600 = vmul.f32 %v1344, 0.275
    %v1601 = vmul.f32 %v1345, 0.275
    %v1602 = vmul.f32 %v1346, 0.275
    %v1603 = vmul.f32 %v1347, 0.275
    %v1604 = vmul.f32 %v1348, 0.275
    %v1605 = vmul.f32 %v1349, 0.275
    %v1606 = vmul.f32 %v1350, 0.275
    %v1607 = vmul.f32 %v1351, 0.275
    %v1608 = vmul.f32 %v1352, 0.275
    %v1609 = vmul.f32 %v1353, 0.275
    %v1610 = vmul.f32 %v1354, 0.275
    %v1611 = vmul.f32 %v1355, 0.275
    %v1612 = vmul.f32 %v1356, 0.275
    %v1613 = vmul.f32 %v1357, 0.275
    %v1614 = vmul.f32 %v1358, 0.275
    %v1615 = vmul.f32 %v1359, 0.275
    %v1616 = vmul.f32 %v1360, 0.275
    %v1617 = vmul.f32 %v1361, 0.275
    %v1618 = vmul.f32 %v1362, 0.275
    %v1619 = vmul.f32 %v1363, 0.275
    %v1620 = vmul.f32 %v1364, 0.275
    %v1621 = vmul.f32 %v1365, 0.275
    %v1622 = vmul.f32 %v1366, 0.275
    %v1623 = vmul.f32 %v1367, 0.275
    %v1624 = vmul.f32 %v1368, 0.275
    %v1625 = vmul.f32 %v1369, 0.275
    %v1626 = vmul.f32 %v1370, 0.275
    %v1627 = vmul.f32 %v1371, 0.275
    %v1628 = vmul.f32 %v1372, 0.275
    %v1629 = vmul.f32 %v1373, 0.275
    %v1630 = vmul.f32 %v1374, 0.275
    %v1631 = vmul.f32 %v1375, 0.275
    %v1632 = vmul.f32 %v1376, 0.275
    %v1633 = vmul.f32 %v1377, 0.275
    %v1634 = vmul.f32 %v1378, 0.275
    %v1635 = vmul.f32 %v1379, 0.275
    %v1636 = vmul.f32 %v1380, 0.275
    %v1637 = vmul.f32 %v1381, 0.275
    %v1638 = vadd.f32 %v869, %v1382
    %v1639 = vadd.f32 %v870, %v1383
    %v1640 = vadd.f32 %v871, %v1384
    %v1641 = vadd.f32 %v872, %v1385
    %v1642 = vadd.f32 %v873, %v1386
    %v1643 = vadd.f32 %v874, %v1387
    %v1644 = vadd.f32 %v875, %v1388
    %v1645 = vadd.f32 %v876, %v1389
    %v1646 = vadd.f32 %v877, %v1390
    %v1647 = vadd.f32 %v878, %v1391
    %v1648 = vadd.f32 %v879, %v1392
    %v1649 = vadd.f32 %v880, %v1393
    %v1650 = vadd.f32 %v881, %v1394
    %v1651 = vadd.f32 %v882, %v1395
    %v1652 = vadd.f32 %v883, %v1396
    %v1653 = vadd.f32 %v884, %v1397
    %v1654 = vadd.f32 %v885, %v1398
    %v1655 = vadd.f32 %v886, %v1399
    %v1656 = vadd.f32 %v887, %v1400
    %v1657 = vadd.f32 %v888, %v1401
    %v1658 = vadd.f32 %v889, %v1402
    %v1659 = vadd.f32 %v890, %v1403
    %v1660 = vadd.f32 %v891, %v1404
    %v1661 = vadd.f32 %v892, %v1405
    %v1662 = vadd.f32 %v893, %v1406
    %v1663 = vadd.f32 %v894, %v1407
    %v1664 = vadd.f32 %v895, %v1408
    %v1665 = vadd.f32 %v896, %v1409
    %v1666 = vadd.f32 %v897, %v1410
    %v1667 = vadd.f32 %v898, %v1411
    %v1668 = vadd.f32 %v899, %v1412
    %v1669 = vadd.f32 %v900, %v1413
    %v1670 = vadd.f32 %v901, %v1414
    %v1671 = vadd.f32 %v902, %v1415
    %v1672 = vadd.f32 %v903, %v1416
    %v1673 = vadd.f32 %v904, %v1417
    %v1674 = vadd.f32 %v905, %v1418
    %v1675 = vadd.f32 %v906, %v1419
    %v1676 = vadd.f32 %v907, %v1420
    %v1677 = vadd.f32 %v908, %v1421
    %v1678 = vadd.f32 %v909, %v1422
    %v1679 = vadd.f32 %v910, %v1423
    %v1680 = vadd.f32 %v911, %v1424
    %v1681 = vadd.f32 %v912, %v1425
    %v1682 = vadd.f32 %v913, %v1426
    %v1683 = vadd.f32 %v914, %v1427
    %v1684 = vadd.f32 %v915, %v1428
    %v1685 = vadd.f32 %v916, %v1429
    %v1686 = vadd.f32 %v917, %v1430
    %v1687 = vadd.f32 %v918, %v1431
    %v1688 = vadd.f32 %v919, %v1432
    %v1689 = vadd.f32 %v920, %v1433
    %v1690 = vadd.f32 %v921, %v1434
    %v1691 = vadd.f32 %v922, %v1435
    %v1692 = vadd.f32 %v923, %v1436
    %v1693 = vadd.f32 %v924, %v1437
    %v1694 = vadd.f32 %v925, %v1438
    %v1695 = vadd.f32 %v926, %v1439
    %v1696 = vadd.f32 %v927, %v1440
    %v1697 = vadd.f32 %v928, %v1441
    %v1698 = vadd.f32 %v929, %v1442
    %v1699 = vadd.f32 %v930, %v1443
    %v1700 = vadd.f32 %v931, %v1444
    %v1701 = vadd.f32 %v932, %v1445
    %v1702 = vadd.f32 %v933, %v1446
    %v1703 = vadd.f32 %v934, %v1447
    %v1704 = vadd.f32 %v935, %v1448
    %v1705 = vadd.f32 %v936, %v1449
    %v1706 = vadd.f32 %v937, %v1450
    %v1707 = vadd.f32 %v938, %v1451
    %v1708 = vadd.f32 %v939, %v1452
    %v1709 = vadd.f32 %v940, %v1453
    %v1710 = vadd.f32 %v941, %v1454
    %v1711 = vadd.f32 %v942, %v1455
    %v1712 = vadd.f32 %v943, %v1456
    %v1713 = vadd.f32 %v944, %v1457
    %v1714 = vadd.f32 %v945, %v1458
    %v1715 = vadd.f32 %v946, %v1459
    %v1716 = vadd.f32 %v947, %v1460
    %v1717 = vadd.f32 %v948, %v1461
    %v1718 = vadd.f32 %v949, %v1462
    %v1719 = vadd.f32 %v950, %v1463
    %v1720 = vadd.f32 %v951, %v1464
    %v1721 = vadd.f32 %v952, %v1465
    %v1722 = vadd.f32 %v953, %v1466
    %v1723 = vadd.f32 %v954, %v1467
    %v1724 = vadd.f32 %v955, %v1468
    %v1725 = vadd.f32 %v956, %v1469
    %v1726 = vadd.f32 %v957, %v1470
    %v1727 = vadd.f32 %v958, %v1471
    %v1728 = vadd.f32 %v959, %v1472
    %v1729 = vadd.f32 %v960, %v1473
    %v1730 = vadd.f32 %v961, %v1474
    %v1731 = vadd.f32 %v962, %v1475
    %v1732 = vadd.f32 %v963, %v1476
    %v1733 = vadd.f32 %v964, %v1477
    %v1734 = vadd.f32 %v965, %v1478
    %v1735 = vadd.f32 %v966, %v1479
    %v1736 = vadd.f32 %v967, %v1480
    %v1737 = vadd.f32 %v968, %v1481
    %v1738 = vadd.f32 %v969, %v1482
    %v1739 = vadd.f32 %v970, %v1483
    %v1740 = vadd.f32 %v971, %v1484
    %v1741 = vadd.f32 %v972, %v1485
    %v1742 = vadd.f32 %v973, %v1486
    %v1743 = vadd.f32 %v974, %v1487
    %v1744 = vadd.f32 %v975, %v1488
    %v1745 = vadd.f32 %v976, %v1489
    %v1746 = vadd.f32 %v977, %v1490
    %v1747 = vadd.f32 %v978, %v1491
    %v1748 = vadd.f32 %v979, %v1492
    %v1749 = vadd.f32 %v980, %v1493
    %v1750 = vadd.f32 %v981, %v1494
    %v1751 = vadd.f32 %v982, %v1495
    %v1752 = vadd.f32 %v983, %v1496
    %v1753 = vadd.f32 %v984, %v1497
    %v1754 = vadd.f32 %v985, %v1498
    %v1755 = vadd.f32 %v986, %v1499
    %v1756 = vadd.f32 %v987, %v1500
    %v1757 = vadd.f32 %v988, %v1501
    %v1758 = vadd.f32 %v989, %v1502
    %v1759 = vadd.f32 %v990, %v1503
    %v1760 = vadd.f32 %v991, %v1504
    %v1761 = vadd.f32 %v992, %v1505
    %v1762 = vadd.f32 %v993, %v1506
    %v1763 = vadd.f32 %v994, %v1507
    %v1764 = vadd.f32 %v995, %v1508
    %v1765 = vadd.f32 %v996, %v1509
    %v1766 = vadd.f32 %v997, %v1510
    %v1767 = vadd.f32 %v998, %v1511
    %v1768 = vadd.f32 %v999, %v1512
    %v1769 = vadd.f32 %v1000, %v1513
    %v1770 = vadd.f32 %v1001, %v1514
    %v1771 = vadd.f32 %v1002, %v1515
    %v1772 = vadd.f32 %v1003, %v1516
    %v1773 = vadd.f32 %v1004, %v1517
    %v1774 = vadd.f32 %v1005, %v1518
    %v1775 = vadd.f32 %v1006, %v1519
    %v1776 = vadd.f32 %v1007, %v1520
    %v1777 = vadd.f32 %v1008, %v1521
    %v1778 = vadd.f32 %v1009, %v1522
    %v1779 = vadd.f32 %v1010, %v1523
    %v1780 = vadd.f32 %v1011, %v1524
    %v1781 = vadd.f32 %v1012, %v1525
    %v1782 = vadd.f32 %v1013, %v1526
    %v1783 = vadd.f32 %v1014, %v1527
    %v1784 = vadd.f32 %v1015, %v1528
    %v1785 = vadd.f32 %v1016, %v1529
    %v1786 = vadd.f32 %v1017, %v1530
    %v1787 = vadd.f32 %v1018, %v1531
    %v1788 = vadd.f32 %v1019, %v1532
    %v1789 = vadd.f32 %v1020, %v1533
    %v1790 = vadd.f32 %v1021, %v1534
    %v1791 = vadd.f32 %v1022, %v1535
    %v1792 = vadd.f32 %v1023, %v1536
    %v1793 = vadd.f32 %v1024, %v1537
    %v1794 = vadd.f32 %v1025, %v1538
    %v1795 = vadd.f32 %v1026, %v1539
    %v1796 = vadd.f32 %v1027, %v1540
    %v1797 = vadd.f32 %v1028, %v1541
    %v1798 = vadd.f32 %v1029, %v1542
    %v1799 = vadd.f32 %v1030, %v1543
    %v1800 = vadd.f32 %v1031, %v1544
    %v1801 = vadd.f32 %v1032, %v1545
    %v1802 = vadd.f32 %v1033, %v1546
    %v1803 = vadd.f32 %v1034, %v1547
    %v1804 = vadd.f32 %v1035, %v1548
    %v1805 = vadd.f32 %v1036, %v1549
    %v1806 = vadd.f32 %v1037, %v1550
    %v1807 = vadd.f32 %v1038, %v1551
    %v1808 = vadd.f32 %v1039, %v1552
    %v1809 = vadd.f32 %v1040, %v1553
    %v1810 = vadd.f32 %v1041, %v1554
    %v1811 = vadd.f32 %v1042, %v1555
    %v1812 = vadd.f32 %v1043, %v1556
    %v1813 = vadd.f32 %v1044, %v1557
    %v1814 = vadd.f32 %v1045, %v1558
    %v1815 = vadd.f32 %v1046, %v1559
    %v1816 = vadd.f32 %v1047, %v1560
    %v1817 = vadd.f32 %v1048, %v1561
    %v1818 = vadd.f32 %v1049, %v1562
    %v1819 = vadd.f32 %v1050, %v1563
    %v1820 = vadd.f32 %v1051, %v1564
    %v1821 = vadd.f32 %v1052, %v1565
    %v1822 = vadd.f32 %v1053, %v1566
    %v1823 = vadd.f32 %v1054, %v1567
    %v1824 = vadd.f32 %v1055, %v1568
    %v1825 = vadd.f32 %v1056, %v1569
    %v1826 = vadd.f32 %v1057, %v1570
    %v1827 = vadd.f32 %v1058, %v1571
    %v1828 = vadd.f32 %v1059, %v1572
    %v1829 = vadd.f32 %v1060, %v1573
    %v1830 = vadd.f32 %v1061, %v1574
    %v1831 = vadd.f32 %v1062, %v1575
    %v1832 = vadd.f32 %v1063, %v1576
    %v1833 = vadd.f32 %v1064, %v1577
    %v1834 = vadd.f32 %v1065, %v1578
    %v1835 = vadd.f32 %v1066, %v1579
    %v1836 = vadd.f32 %v1067, %v1580
    %v1837 = vadd.f32 %v1068, %v1581
    %v1838 = vadd.f32 %v1069, %v1582
    %v1839 = vadd.f32 %v1070, %v1583
    %v1840 = vadd.f32 %v1071, %v1584
    %v1841 = vadd.f32 %v1072, %v1585
    %v1842 = vadd.f32 %v1073, %v1586
    %v1843 = vadd.f32 %v1074, %v1587
    %v1844 = vadd.f32 %v1075, %v1588
    %v1845 = vadd.f32 %v1076, %v1589
    %v1846 = vadd.f32 %v1077, %v1590
    %v1847 = vadd.f32 %v1078, %v1591
    %v1848 = vadd.f32 %v1079, %v1592
    %v1849 = vadd.f32 %v1080, %v1593
    %v1850 = vadd.f32 %v1081, %v1594
    %v1851 = vadd.f32 %v1082, %v1595
    %v1852 = vadd.f32 %v1083, %v1596
    %v1853 = vadd.f32 %v1084, %v1597
    %v1854 = vadd.f32 %v1085, %v1598
    %v1855 = vadd.f32 %v1086, %v1599
    %v1856 = vadd.f32 %v1087, %v1600
    %v1857 = vadd.f32 %v1088, %v1601
    %v1858 = vadd.f32 %v1089, %v1602
    %v1859 = vadd.f32 %v1090, %v1603
    %v1860 = vadd.f32 %v1091, %v1604
    %v1861 = vadd.f32 %v1092, %v1605
    %v1862 = vadd.f32 %v1093, %v1606
    %v1863 = vadd.f32 %v1094, %v1607
    %v1864 = vadd.f32 %v1095, %v1608
    %v1865 = vadd.f32 %v1096, %v1609
    %v1866 = vadd.f32 %v1097, %v1610
    %v1867 = vadd.f32 %v1098, %v1611
    %v1868 = vadd.f32 %v1099, %v1612
    %v1869 = vadd.f32 %v1100, %v1613
    %v1870 = vadd.f32 %v1101, %v1614
    %v1871 = vadd.f32 %v1102, %v1615
    %v1872 = vadd.f32 %v1103, %v1616
    %v1873 = vadd.f32 %v1104, %v1617
    %v1874 = vadd.f32 %v1105, %v1618
    %v1875 = vadd.f32 %v1106, %v1619
    %v1876 = vadd.f32 %v1107, %v1620
    %v1877 = vadd.f32 %v1108, %v1621
    %v1878 = vadd.f32 %v1109, %v1622
    %v1879 = vadd.f32 %v1110, %v1623
    %v1880 = vadd.f32 %v1111, %v1624
    %v1881 = vadd.f32 %v1112, %v1625
    %v1882 = vadd.f32 %v1113, %v1626
    %v1883 = vadd.f32 %v1114, %v1627
    %v1884 = vadd.f32 %v1115, %v1628
    %v1885 = vadd.f32 %v1116, %v1629
    %v1886 = vadd.f32 %v1117, %v1630
    %v1887 = vadd.f32 %v1118, %v1631
    %v1888 = vadd.f32 %v1119, %v1632
    %v1889 = vadd.f32 %v1120, %v1633
    %v1890 = vadd.f32 %v1121, %v1634
    %v1891 = vadd.f32 %v1122, %v1635
    %v1892 = vadd.f32 %v1123, %v1636
    %v1893 = vadd.f32 %v1124, %v1637
    %s1894 = scalar_lea.vmem [#allocation2], 20
    %v1895 = vld [vmem:[%s1894] sm:$0x1]
    %v1896 = vld [vmem:[%s1894 + $0x1] sm:$0x1]
    %v1897 = vld [vmem:[%s1894 + $0x2] sm:$0x1]
    %v1898 = vld [vmem:[%s1894 + $0x3] sm:$0x1]
    %v1899 = vld [vmem:[%s1894 + $0x4] sm:$0x1]
    %v1900 = vld [vmem:[%s1894 + $0x5] sm:$0x1]
    %v1901 = vld [vmem:[%s1894 + $0x6] sm:$0x1]
    %v1902 = vld [vmem:[%s1894 + $0x7] sm:$0x1]
    %v1903 = vld [vmem:[%s1894 + $0x8] sm:$0x1]
    %v1904 = vld [vmem:[%s1894 + $0x9] sm:$0x1]
    %v1905 = vld [vmem:[%s1894 + $0xa] sm:$0x1]
    %v1906 = vld [vmem:[%s1894 + $0xb] sm:$0x1]
    %v1907 = vld [vmem:[%s1894 + $0xc] sm:$0x1]
    %v1908 = vld [vmem:[%s1894 + $0xd] sm:$0x1]
    %v1909 = vld [vmem:[%s1894 + $0xe] sm:$0x1]
    %v1910 = vld [vmem:[%s1894 + $0xf] sm:$0x1]
    %v1911 = vld [vmem:[%s1894 + $0x12] sm:$0x1]
    %v1912 = vld [vmem:[%s1894 + $0x13] sm:$0x1]
    %v1913 = vld [vmem:[%s1894 + $0x14] sm:$0x1]
    %v1914 = vld [vmem:[%s1894 + $0x15] sm:$0x1]
    %v1915 = vld [vmem:[%s1894 + $0x16] sm:$0x1]
    %v1916 = vld [vmem:[%s1894 + $0x17] sm:$0x1]
    %v1917 = vld [vmem:[%s1894 + $0x18] sm:$0x1]
    %v1918 = vld [vmem:[%s1894 + $0x19] sm:$0x1]
    %v1919 = vld [vmem:[%s1894 + $0x1a] sm:$0x1]
    %v1920 = vld [vmem:[%s1894 + $0x1b] sm:$0x1]
    %v1921 = vld [vmem:[%s1894 + $0x1c] sm:$0x1]
    %v1922 = vld [vmem:[%s1894 + $0x1d] sm:$0x1]
    %v1923 = vld [vmem:[%s1894 + $0x1e] sm:$0x1]
    %v1924 = vld [vmem:[%s1894 + $0x1f] sm:$0x1]
    %v1925 = vld [vmem:[%s1894 + $0x20] sm:$0x1]
    %v1926 = vld [vmem:[%s1894 + $0x21] sm:$0x1]
    %v1927 = vld [vmem:[%s1894 + $0x24] sm:$0x1]
    %v1928 = vld [vmem:[%s1894 + $0x25] sm:$0x1]
    %v1929 = vld [vmem:[%s1894 + $0x26] sm:$0x1]
    %v1930 = vld [vmem:[%s1894 + $0x27] sm:$0x1]
    %v1931 = vld [vmem:[%s1894 + $0x28] sm:$0x1]
    %v1932 = vld [vmem:[%s1894 + $0x29] sm:$0x1]
    %v1933 = vld [vmem:[%s1894 + $0x2a] sm:$0x1]
    %v1934 = vld [vmem:[%s1894 + $0x2b] sm:$0x1]
    %v1935 = vld [vmem:[%s1894 + $0x2c] sm:$0x1]
    %v1936 = vld [vmem:[%s1894 + $0x2d] sm:$0x1]
    %v1937 = vld [vmem:[%s1894 + $0x2e] sm:$0x1]
    %v1938 = vld [vmem:[%s1894 + $0x2f] sm:$0x1]
    %v1939 = vld [vmem:[%s1894 + $0x30] sm:$0x1]
    %v1940 = vld [vmem:[%s1894 + $0x31] sm:$0x1]
    %v1941 = vld [vmem:[%s1894 + $0x32] sm:$0x1]
    %v1942 = vld [vmem:[%s1894 + $0x33] sm:$0x1]
    %v1943 = vld [vmem:[%s1894 + $0x36] sm:$0x1]
    %v1944 = vld [vmem:[%s1894 + $0x37] sm:$0x1]
    %v1945 = vld [vmem:[%s1894 + $0x38] sm:$0x1]
    %v1946 = vld [vmem:[%s1894 + $0x39] sm:$0x1]
    %v1947 = vld [vmem:[%s1894 + $0x3a] sm:$0x1]
    %v1948 = vld [vmem:[%s1894 + $0x3b] sm:$0x1]
    %v1949 = vld [vmem:[%s1894 + $0x3c] sm:$0x1]
    %v1950 = vld [vmem:[%s1894 + $0x3d] sm:$0x1]
    %v1951 = vld [vmem:[%s1894 + $0x3e] sm:$0x1]
    %v1952 = vld [vmem:[%s1894 + $0x3f] sm:$0x1]
    %v1953 = vld [vmem:[%s1894 + $0x40] sm:$0x1]
    %v1954 = vld [vmem:[%s1894 + $0x41] sm:$0x1]
    %v1955 = vld [vmem:[%s1894 + $0x42] sm:$0x1]
    %v1956 = vld [vmem:[%s1894 + $0x43] sm:$0x1]
    %v1957 = vld [vmem:[%s1894 + $0x44] sm:$0x1]
    %v1958 = vld [vmem:[%s1894 + $0x45] sm:$0x1]
    %v1959 = vld [vmem:[%s1894 + $0x48] sm:$0x1]
    %v1960 = vld [vmem:[%s1894 + $0x49] sm:$0x1]
    %v1961 = vld [vmem:[%s1894 + $0x4a] sm:$0x1]
    %v1962 = vld [vmem:[%s1894 + $0x4b] sm:$0x1]
    %v1963 = vld [vmem:[%s1894 + $0x4c] sm:$0x1]
    %v1964 = vld [vmem:[%s1894 + $0x4d] sm:$0x1]
    %v1965 = vld [vmem:[%s1894 + $0x4e] sm:$0x1]
    %v1966 = vld [vmem:[%s1894 + $0x4f] sm:$0x1]
    %v1967 = vld [vmem:[%s1894 + $0x50] sm:$0x1]
    %v1968 = vld [vmem:[%s1894 + $0x51] sm:$0x1]
    %v1969 = vld [vmem:[%s1894 + $0x52] sm:$0x1]
    %v1970 = vld [vmem:[%s1894 + $0x53] sm:$0x1]
    %v1971 = vld [vmem:[%s1894 + $0x54] sm:$0x1]
    %v1972 = vld [vmem:[%s1894 + $0x55] sm:$0x1]
    %v1973 = vld [vmem:[%s1894 + $0x56] sm:$0x1]
    %v1974 = vld [vmem:[%s1894 + $0x57] sm:$0x1]
    %v1975 = vld [vmem:[%s1894 + $0x5a] sm:$0x1]
    %v1976 = vld [vmem:[%s1894 + $0x5b] sm:$0x1]
    %v1977 = vld [vmem:[%s1894 + $0x5c] sm:$0x1]
    %v1978 = vld [vmem:[%s1894 + $0x5d] sm:$0x1]
    %v1979 = vld [vmem:[%s1894 + $0x5e] sm:$0x1]
    %v1980 = vld [vmem:[%s1894 + $0x5f] sm:$0x1]
    %v1981 = vld [vmem:[%s1894 + $0x60] sm:$0x1]
    %v1982 = vld [vmem:[%s1894 + $0x61] sm:$0x1]
    %v1983 = vld [vmem:[%s1894 + $0x62] sm:$0x1]
    %v1984 = vld [vmem:[%s1894 + $0x63] sm:$0x1]
    %v1985 = vld [vmem:[%s1894 + $0x64] sm:$0x1]
    %v1986 = vld [vmem:[%s1894 + $0x65] sm:$0x1]
    %v1987 = vld [vmem:[%s1894 + $0x66] sm:$0x1]
    %v1988 = vld [vmem:[%s1894 + $0x67] sm:$0x1]
    %v1989 = vld [vmem:[%s1894 + $0x68] sm:$0x1]
    %v1990 = vld [vmem:[%s1894 + $0x69] sm:$0x1]
    %v1991 = vld [vmem:[%s1894 + $0x6c] sm:$0x1]
    %v1992 = vld [vmem:[%s1894 + $0x6d] sm:$0x1]
    %v1993 = vld [vmem:[%s1894 + $0x6e] sm:$0x1]
    %v1994 = vld [vmem:[%s1894 + $0x6f] sm:$0x1]
    %v1995 = vld [vmem:[%s1894 + $0x70] sm:$0x1]
    %v1996 = vld [vmem:[%s1894 + $0x71] sm:$0x1]
    %v1997 = vld [vmem:[%s1894 + $0x72] sm:$0x1]
    %v1998 = vld [vmem:[%s1894 + $0x73] sm:$0x1]
    %v1999 = vld [vmem:[%s1894 + $0x74] sm:$0x1]
    %v2000 = vld [vmem:[%s1894 + $0x75] sm:$0x1]
    %v2001 = vld [vmem:[%s1894 + $0x76] sm:$0x1]
    %v2002 = vld [vmem:[%s1894 + $0x77] sm:$0x1]
    %v2003 = vld [vmem:[%s1894 + $0x78] sm:$0x1]
    %v2004 = vld [vmem:[%s1894 + $0x79] sm:$0x1]
    %v2005 = vld [vmem:[%s1894 + $0x7a] sm:$0x1]
    %v2006 = vld [vmem:[%s1894 + $0x7b] sm:$0x1]
    %v2007 = vld [vmem:[%s1894 + $0x7e] sm:$0x1]
    %v2008 = vld [vmem:[%s1894 + $0x7f] sm:$0x1]
    %v2009 = vld [vmem:[%s1894 + $0x80] sm:$0x1]
    %v2010 = vld [vmem:[%s1894 + $0x81] sm:$0x1]
    %v2011 = vld [vmem:[%s1894 + $0x82] sm:$0x1]
    %v2012 = vld [vmem:[%s1894 + $0x83] sm:$0x1]
    %v2013 = vld [vmem:[%s1894 + $0x84] sm:$0x1]
    %v2014 = vld [vmem:[%s1894 + $0x85] sm:$0x1]
    %v2015 = vld [vmem:[%s1894 + $0x86] sm:$0x1]
    %v2016 = vld [vmem:[%s1894 + $0x87] sm:$0x1]
    %v2017 = vld [vmem:[%s1894 + $0x88] sm:$0x1]
    %v2018 = vld [vmem:[%s1894 + $0x89] sm:$0x1]
    %v2019 = vld [vmem:[%s1894 + $0x8a] sm:$0x1]
    %v2020 = vld [vmem:[%s1894 + $0x8b] sm:$0x1]
    %v2021 = vld [vmem:[%s1894 + $0x8c] sm:$0x1]
    %v2022 = vld [vmem:[%s1894 + $0x8d] sm:$0x1]
    %v2023 = vld [vmem:[%s1894 + $0x90] sm:$0x1]
    %v2024 = vld [vmem:[%s1894 + $0x91] sm:$0x1]
    %v2025 = vld [vmem:[%s1894 + $0x92] sm:$0x1]
    %v2026 = vld [vmem:[%s1894 + $0x93] sm:$0x1]
    %v2027 = vld [vmem:[%s1894 + $0x94] sm:$0x1]
    %v2028 = vld [vmem:[%s1894 + $0x95] sm:$0x1]
    %v2029 = vld [vmem:[%s1894 + $0x96] sm:$0x1]
    %v2030 = vld [vmem:[%s1894 + $0x97] sm:$0x1]
    %v2031 = vld [vmem:[%s1894 + $0x98] sm:$0x1]
    %v2032 = vld [vmem:[%s1894 + $0x99] sm:$0x1]
    %v2033 = vld [vmem:[%s1894 + $0x9a] sm:$0x1]
    %v2034 = vld [vmem:[%s1894 + $0x9b] sm:$0x1]
    %v2035 = vld [vmem:[%s1894 + $0x9c] sm:$0x1]
    %v2036 = vld [vmem:[%s1894 + $0x9d] sm:$0x1]
    %v2037 = vld [vmem:[%s1894 + $0x9e] sm:$0x1]
    %v2038 = vld [vmem:[%s1894 + $0x9f] sm:$0x1]
    %v2039 = vld [vmem:[%s1894 + $0xa2] sm:$0x1]
    %v2040 = vld [vmem:[%s1894 + $0xa3] sm:$0x1]
    %v2041 = vld [vmem:[%s1894 + $0xa4] sm:$0x1]
    %v2042 = vld [vmem:[%s1894 + $0xa5] sm:$0x1]
    %v2043 = vld [vmem:[%s1894 + $0xa6] sm:$0x1]
    %v2044 = vld [vmem:[%s1894 + $0xa7] sm:$0x1]
    %v2045 = vld [vmem:[%s1894 + $0xa8] sm:$0x1]
    %v2046 = vld [vmem:[%s1894 + $0xa9] sm:$0x1]
    %v2047 = vld [vmem:[%s1894 + $0xaa] sm:$0x1]
    %v2048 = vld [vmem:[%s1894 + $0xab] sm:$0x1]
    %v2049 = vld [vmem:[%s1894 + $0xac] sm:$0x1]
    %v2050 = vld [vmem:[%s1894 + $0xad] sm:$0x1]
    %v2051 = vld [vmem:[%s1894 + $0xae] sm:$0x1]
    %v2052 = vld [vmem:[%s1894 + $0xaf] sm:$0x1]
    %v2053 = vld [vmem:[%s1894 + $0xb0] sm:$0x1]
    %v2054 = vld [vmem:[%s1894 + $0xb1] sm:$0x1]
    %v2055 = vld [vmem:[%s1894 + $0xb4] sm:$0x1]
    %v2056 = vld [vmem:[%s1894 + $0xb5] sm:$0x1]
    %v2057 = vld [vmem:[%s1894 + $0xb6] sm:$0x1]
    %v2058 = vld [vmem:[%s1894 + $0xb7] sm:$0x1]
    %v2059 = vld [vmem:[%s1894 + $0xb8] sm:$0x1]
    %v2060 = vld [vmem:[%s1894 + $0xb9] sm:$0x1]
    %v2061 = vld [vmem:[%s1894 + $0xba] sm:$0x1]
    %v2062 = vld [vmem:[%s1894 + $0xbb] sm:$0x1]
    %v2063 = vld [vmem:[%s1894 + $0xbc] sm:$0x1]
    %v2064 = vld [vmem:[%s1894 + $0xbd] sm:$0x1]
    %v2065 = vld [vmem:[%s1894 + $0xbe] sm:$0x1]
    %v2066 = vld [vmem:[%s1894 + $0xbf] sm:$0x1]
    %v2067 = vld [vmem:[%s1894 + $0xc0] sm:$0x1]
    %v2068 = vld [vmem:[%s1894 + $0xc1] sm:$0x1]
    %v2069 = vld [vmem:[%s1894 + $0xc2] sm:$0x1]
    %v2070 = vld [vmem:[%s1894 + $0xc3] sm:$0x1]
    %v2071 = vld [vmem:[%s1894 + $0xc6] sm:$0x1]
    %v2072 = vld [vmem:[%s1894 + $0xc7] sm:$0x1]
    %v2073 = vld [vmem:[%s1894 + $0xc8] sm:$0x1]
    %v2074 = vld [vmem:[%s1894 + $0xc9] sm:$0x1]
    %v2075 = vld [vmem:[%s1894 + $0xca] sm:$0x1]
    %v2076 = vld [vmem:[%s1894 + $0xcb] sm:$0x1]
    %v2077 = vld [vmem:[%s1894 + $0xcc] sm:$0x1]
    %v2078 = vld [vmem:[%s1894 + $0xcd] sm:$0x1]
    %v2079 = vld [vmem:[%s1894 + $0xce] sm:$0x1]
    %v2080 = vld [vmem:[%s1894 + $0xcf] sm:$0x1]
    %v2081 = vld [vmem:[%s1894 + $0xd0] sm:$0x1]
    %v2082 = vld [vmem:[%s1894 + $0xd1] sm:$0x1]
    %v2083 = vld [vmem:[%s1894 + $0xd2] sm:$0x1]
    %v2084 = vld [vmem:[%s1894 + $0xd3] sm:$0x1]
    %v2085 = vld [vmem:[%s1894 + $0xd4] sm:$0x1]
    %v2086 = vld [vmem:[%s1894 + $0xd5] sm:$0x1]
    %v2087 = vld [vmem:[%s1894 + $0xd8] sm:$0x1]
    %v2088 = vld [vmem:[%s1894 + $0xd9] sm:$0x1]
    %v2089 = vld [vmem:[%s1894 + $0xda] sm:$0x1]
    %v2090 = vld [vmem:[%s1894 + $0xdb] sm:$0x1]
    %v2091 = vld [vmem:[%s1894 + $0xdc] sm:$0x1]
    %v2092 = vld [vmem:[%s1894 + $0xdd] sm:$0x1]
    %v2093 = vld [vmem:[%s1894 + $0xde] sm:$0x1]
    %v2094 = vld [vmem:[%s1894 + $0xdf] sm:$0x1]
    %v2095 = vld [vmem:[%s1894 + $0xe0] sm:$0x1]
    %v2096 = vld [vmem:[%s1894 + $0xe1] sm:$0x1]
    %v2097 = vld [vmem:[%s1894 + $0xe2] sm:$0x1]
    %v2098 = vld [vmem:[%s1894 + $0xe3] sm:$0x1]
    %v2099 = vld [vmem:[%s1894 + $0xe4] sm:$0x1]
    %v2100 = vld [vmem:[%s1894 + $0xe5] sm:$0x1]
    %v2101 = vld [vmem:[%s1894 + $0xe6] sm:$0x1]
    %v2102 = vld [vmem:[%s1894 + $0xe7] sm:$0x1]
    %v2103 = vld [vmem:[%s1894 + $0xea] sm:$0x1]
    %v2104 = vld [vmem:[%s1894 + $0xeb] sm:$0x1]
    %v2105 = vld [vmem:[%s1894 + $0xec] sm:$0x1]
    %v2106 = vld [vmem:[%s1894 + $0xed] sm:$0x1]
    %v2107 = vld [vmem:[%s1894 + $0xee] sm:$0x1]
    %v2108 = vld [vmem:[%s1894 + $0xef] sm:$0x1]
    %v2109 = vld [vmem:[%s1894 + $0xf0] sm:$0x1]
    %v2110 = vld [vmem:[%s1894 + $0xf1] sm:$0x1]
    %v2111 = vld [vmem:[%s1894 + $0xf2] sm:$0x1]
    %v2112 = vld [vmem:[%s1894 + $0xf3] sm:$0x1]
    %v2113 = vld [vmem:[%s1894 + $0xf4] sm:$0x1]
    %v2114 = vld [vmem:[%s1894 + $0xf5] sm:$0x1]
    %v2115 = vld [vmem:[%s1894 + $0xf6] sm:$0x1]
    %v2116 = vld [vmem:[%s1894 + $0xf7] sm:$0x1]
    %v2117 = vld [vmem:[%s1894 + $0xf8] sm:$0x1]
    %v2118 = vld [vmem:[%s1894 + $0xf9] sm:$0x1]
    %v2119 = vld [vmem:[%s1894 + $0xfc] sm:$0x1]
    %v2120 = vld [vmem:[%s1894 + $0xfd] sm:$0x1]
    %v2121 = vld [vmem:[%s1894 + $0xfe] sm:$0x1]
    %v2122 = vld [vmem:[%s1894 + $0xff] sm:$0x1]
    %v2123 = vld [vmem:[%s1894 + $0x100] sm:$0x1]
    %v2124 = vld [vmem:[%s1894 + $0x101] sm:$0x1]
    %v2125 = vld [vmem:[%s1894 + $0x102] sm:$0x1]
    %v2126 = vld [vmem:[%s1894 + $0x103] sm:$0x1]
    %v2127 = vld [vmem:[%s1894 + $0x104] sm:$0x1]
    %v2128 = vld [vmem:[%s1894 + $0x105] sm:$0x1]
    %v2129 = vld [vmem:[%s1894 + $0x106] sm:$0x1]
    %v2130 = vld [vmem:[%s1894 + $0x107] sm:$0x1]
    %v2131 = vld [vmem:[%s1894 + $0x108] sm:$0x1]
    %v2132 = vld [vmem:[%s1894 + $0x109] sm:$0x1]
    %v2133 = vld [vmem:[%s1894 + $0x10a] sm:$0x1]
    %v2134 = vld [vmem:[%s1894 + $0x10b] sm:$0x1]
    %v2135 = vld [vmem:[%s1894 + $0x10e] sm:$0x1]
    %v2136 = vld [vmem:[%s1894 + $0x10f] sm:$0x1]
    %v2137 = vld [vmem:[%s1894 + $0x110] sm:$0x1]
    %v2138 = vld [vmem:[%s1894 + $0x111] sm:$0x1]
    %v2139 = vld [vmem:[%s1894 + $0x112] sm:$0x1]
    %v2140 = vld [vmem:[%s1894 + $0x113] sm:$0x1]
    %v2141 = vld [vmem:[%s1894 + $0x114] sm:$0x1]
    %v2142 = vld [vmem:[%s1894 + $0x115] sm:$0x1]
    %v2143 = vld [vmem:[%s1894 + $0x116] sm:$0x1]
    %v2144 = vld [vmem:[%s1894 + $0x117] sm:$0x1]
    %v2145 = vld [vmem:[%s1894 + $0x118] sm:$0x1]
    %v2146 = vld [vmem:[%s1894 + $0x119] sm:$0x1]
    %v2147 = vld [vmem:[%s1894 + $0x11a] sm:$0x1]
    %v2148 = vld [vmem:[%s1894 + $0x11b] sm:$0x1]
    %v2149 = vld [vmem:[%s1894 + $0x11c] sm:$0x1]
    %v2150 = vld [vmem:[%s1894 + $0x11d] sm:$0x1]
    %v2151 = vmul.f32 %v1895, 0.225
    %v2152 = vmul.f32 %v1896, 0.225
    %v2153 = vmul.f32 %v1897, 0.225
    %v2154 = vmul.f32 %v1898, 0.225
    %v2155 = vmul.f32 %v1899, 0.225
    %v2156 = vmul.f32 %v1900, 0.225
    %v2157 = vmul.f32 %v1901, 0.225
    %v2158 = vmul.f32 %v1902, 0.225
    %v2159 = vmul.f32 %v1903, 0.225
    %v2160 = vmul.f32 %v1904, 0.225
    %v2161 = vmul.f32 %v1905, 0.225
    %v2162 = vmul.f32 %v1906, 0.225
    %v2163 = vmul.f32 %v1907, 0.225
    %v2164 = vmul.f32 %v1908, 0.225
    %v2165 = vmul.f32 %v1909, 0.225
    %v2166 = vmul.f32 %v1910, 0.225
    %v2167 = vmul.f32 %v1911, 0.225
    %v2168 = vmul.f32 %v1912, 0.225
    %v2169 = vmul.f32 %v1913, 0.225
    %v2170 = vmul.f32 %v1914, 0.225
    %v2171 = vmul.f32 %v1915, 0.225
    %v2172 = vmul.f32 %v1916, 0.225
    %v2173 = vmul.f32 %v1917, 0.225
    %v2174 = vmul.f32 %v1918, 0.225
    %v2175 = vmul.f32 %v1919, 0.225
    %v2176 = vmul.f32 %v1920, 0.225
    %v2177 = vmul.f32 %v1921, 0.225
    %v2178 = vmul.f32 %v1922, 0.225
    %v2179 = vmul.f32 %v1923, 0.225
    %v2180 = vmul.f32 %v1924, 0.225
    %v2181 = vmul.f32 %v1925, 0.225
    %v2182 = vmul.f32 %v1926, 0.225
    %v2183 = vmul.f32 %v1927, 0.225
    %v2184 = vmul.f32 %v1928, 0.225
    %v2185 = vmul.f32 %v1929, 0.225
    %v2186 = vmul.f32 %v1930, 0.225
    %v2187 = vmul.f32 %v1931, 0.225
    %v2188 = vmul.f32 %v1932, 0.225
    %v2189 = vmul.f32 %v1933, 0.225
    %v2190 = vmul.f32 %v1934, 0.225
    %v2191 = vmul.f32 %v1935, 0.225
    %v2192 = vmul.f32 %v1936, 0.225
    %v2193 = vmul.f32 %v1937, 0.225
    %v2194 = vmul.f32 %v1938, 0.225
    %v2195 = vmul.f32 %v1939, 0.225
    %v2196 = vmul.f32 %v1940, 0.225
    %v2197 = vmul.f32 %v1941, 0.225
    %v2198 = vmul.f32 %v1942, 0.225
    %v2199 = vmul.f32 %v1943, 0.225
    %v2200 = vmul.f32 %v1944, 0.225
    %v2201 = vmul.f32 %v1945, 0.225
    %v2202 = vmul.f32 %v1946, 0.225
    %v2203 = vmul.f32 %v1947, 0.225
    %v2204 = vmul.f32 %v1948, 0.225
    %v2205 = vmul.f32 %v1949, 0.225
    %v2206 = vmul.f32 %v1950, 0.225
    %v2207 = vmul.f32 %v1951, 0.225
    %v2208 = vmul.f32 %v1952, 0.225
    %v2209 = vmul.f32 %v1953, 0.225
    %v2210 = vmul.f32 %v1954, 0.225
    %v2211 = vmul.f32 %v1955, 0.225
    %v2212 = vmul.f32 %v1956, 0.225
    %v2213 = vmul.f32 %v1957, 0.225
    %v2214 = vmul.f32 %v1958, 0.225
    %v2215 = vmul.f32 %v1959, 0.225
    %v2216 = vmul.f32 %v1960, 0.225
    %v2217 = vmul.f32 %v1961, 0.225
    %v2218 = vmul.f32 %v1962, 0.225
    %v2219 = vmul.f32 %v1963, 0.225
    %v2220 = vmul.f32 %v1964, 0.225
    %v2221 = vmul.f32 %v1965, 0.225
    %v2222 = vmul.f32 %v1966, 0.225
    %v2223 = vmul.f32 %v1967, 0.225
    %v2224 = vmul.f32 %v1968, 0.225
    %v2225 = vmul.f32 %v1969, 0.225
    %v2226 = vmul.f32 %v1970, 0.225
    %v2227 = vmul.f32 %v1971, 0.225
    %v2228 = vmul.f32 %v1972, 0.225
    %v2229 = vmul.f32 %v1973, 0.225
    %v2230 = vmul.f32 %v1974, 0.225
    %v2231 = vmul.f32 %v1975, 0.225
    %v2232 = vmul.f32 %v1976, 0.225
    %v2233 = vmul.f32 %v1977, 0.225
    %v2234 = vmul.f32 %v1978, 0.225
    %v2235 = vmul.f32 %v1979, 0.225
    %v2236 = vmul.f32 %v1980, 0.225
    %v2237 = vmul.f32 %v1981, 0.225
    %v2238 = vmul.f32 %v1982, 0.225
    %v2239 = vmul.f32 %v1983, 0.225
    %v2240 = vmul.f32 %v1984, 0.225
    %v2241 = vmul.f32 %v1985, 0.225
    %v2242 = vmul.f32 %v1986, 0.225
    %v2243 = vmul.f32 %v1987, 0.225
    %v2244 = vmul.f32 %v1988, 0.225
    %v2245 = vmul.f32 %v1989, 0.225
    %v2246 = vmul.f32 %v1990, 0.225
    %v2247 = vmul.f32 %v1991, 0.225
    %v2248 = vmul.f32 %v1992, 0.225
    %v2249 = vmul.f32 %v1993, 0.225
    %v2250 = vmul.f32 %v1994, 0.225
    %v2251 = vmul.f32 %v1995, 0.225
    %v2252 = vmul.f32 %v1996, 0.225
    %v2253 = vmul.f32 %v1997, 0.225
    %v2254 = vmul.f32 %v1998, 0.225
    %v2255 = vmul.f32 %v1999, 0.225
    %v2256 = vmul.f32 %v2000, 0.225
    %v2257 = vmul.f32 %v2001, 0.225
    %v2258 = vmul.f32 %v2002, 0.225
    %v2259 = vmul.f32 %v2003, 0.225
    %v2260 = vmul.f32 %v2004, 0.225
    %v2261 = vmul.f32 %v2005, 0.225
    %v2262 = vmul.f32 %v2006, 0.225
    %v2263 = vmul.f32 %v2007, 0.225
    %v2264 = vmul.f32 %v2008, 0.225
    %v2265 = vmul.f32 %v2009, 0.225
    %v2266 = vmul.f32 %v2010, 0.225
    %v2267 = vmul.f32 %v2011, 0.225
    %v2268 = vmul.f32 %v2012, 0.225
    %v2269 = vmul.f32 %v2013, 0.225
    %v2270 = vmul.f32 %v2014, 0.225
    %v2271 = vmul.f32 %v2015, 0.225
    %v2272 = vmul.f32 %v2016, 0.225
    %v2273 = vmul.f32 %v2017, 0.225
    %v2274 = vmul.f32 %v2018, 0.225
    %v2275 = vmul.f32 %v2019, 0.225
    %v2276 = vmul.f32 %v2020, 0.225
    %v2277 = vmul.f32 %v2021, 0.225
    %v2278 = vmul.f32 %v2022, 0.225
    %v2279 = vmul.f32 %v2023, 0.225
    %v2280 = vmul.f32 %v2024, 0.225
    %v2281 = vmul.f32 %v2025, 0.225
    %v2282 = vmul.f32 %v2026, 0.225
    %v2283 = vmul.f32 %v2027, 0.225
    %v2284 = vmul.f32 %v2028, 0.225
    %v2285 = vmul.f32 %v2029, 0.225
    %v2286 = vmul.f32 %v2030, 0.225
    %v2287 = vmul.f32 %v2031, 0.225
    %v2288 = vmul.f32 %v2032, 0.225
    %v2289 = vmul.f32 %v2033, 0.225
    %v2290 = vmul.f32 %v2034, 0.225
    %v2291 = vmul.f32 %v2035, 0.225
    %v2292 = vmul.f32 %v2036, 0.225
    %v2293 = vmul.f32 %v2037, 0.225
    %v2294 = vmul.f32 %v2038, 0.225
    %v2295 = vmul.f32 %v2039, 0.225
    %v2296 = vmul.f32 %v2040, 0.225
    %v2297 = vmul.f32 %v2041, 0.225
    %v2298 = vmul.f32 %v2042, 0.225
    %v2299 = vmul.f32 %v2043, 0.225
    %v2300 = vmul.f32 %v2044, 0.225
    %v2301 = vmul.f32 %v2045, 0.225
    %v2302 = vmul.f32 %v2046, 0.225
    %v2303 = vmul.f32 %v2047, 0.225
    %v2304 = vmul.f32 %v2048, 0.225
    %v2305 = vmul.f32 %v2049, 0.225
    %v2306 = vmul.f32 %v2050, 0.225
    %v2307 = vmul.f32 %v2051, 0.225
    %v2308 = vmul.f32 %v2052, 0.225
    %v2309 = vmul.f32 %v2053, 0.225
    %v2310 = vmul.f32 %v2054, 0.225
    %v2311 = vmul.f32 %v2055, 0.225
    %v2312 = vmul.f32 %v2056, 0.225
    %v2313 = vmul.f32 %v2057, 0.225
    %v2314 = vmul.f32 %v2058, 0.225
    %v2315 = vmul.f32 %v2059, 0.225
    %v2316 = vmul.f32 %v2060, 0.225
    %v2317 = vmul.f32 %v2061, 0.225
    %v2318 = vmul.f32 %v2062, 0.225
    %v2319 = vmul.f32 %v2063, 0.225
    %v2320 = vmul.f32 %v2064, 0.225
    %v2321 = vmul.f32 %v2065, 0.225
    %v2322 = vmul.f32 %v2066, 0.225
    %v2323 = vmul.f32 %v2067, 0.225
    %v2324 = vmul.f32 %v2068, 0.225
    %v2325 = vmul.f32 %v2069, 0.225
    %v2326 = vmul.f32 %v2070, 0.225
    %v2327 = vmul.f32 %v2071, 0.225
    %v2328 = vmul.f32 %v2072, 0.225
    %v2329 = vmul.f32 %v2073, 0.225
    %v2330 = vmul.f32 %v2074, 0.225
    %v2331 = vmul.f32 %v2075, 0.225
    %v2332 = vmul.f32 %v2076, 0.225
    %v2333 = vmul.f32 %v2077, 0.225
    %v2334 = vmul.f32 %v2078, 0.225
    %v2335 = vmul.f32 %v2079, 0.225
    %v2336 = vmul.f32 %v2080, 0.225
    %v2337 = vmul.f32 %v2081, 0.225
    %v2338 = vmul.f32 %v2082, 0.225
    %v2339 = vmul.f32 %v2083, 0.225
    %v2340 = vmul.f32 %v2084, 0.225
    %v2341 = vmul.f32 %v2085, 0.225
    %v2342 = vmul.f32 %v2086, 0.225
    %v2343 = vmul.f32 %v2087, 0.225
    %v2344 = vmul.f32 %v2088, 0.225
    %v2345 = vmul.f32 %v2089, 0.225
    %v2346 = vmul.f32 %v2090, 0.225
    %v2347 = vmul.f32 %v2091, 0.225
    %v2348 = vmul.f32 %v2092, 0.225
    %v2349 = vmul.f32 %v2093, 0.225
    %v2350 = vmul.f32 %v2094, 0.225
    %v2351 = vmul.f32 %v2095, 0.225
    %v2352 = vmul.f32 %v2096, 0.225
    %v2353 = vmul.f32 %v2097, 0.225
    %v2354 = vmul.f32 %v2098, 0.225
    %v2355 = vmul.f32 %v2099, 0.225
    %v2356 = vmul.f32 %v2100, 0.225
    %v2357 = vmul.f32 %v2101, 0.225
    %v2358 = vmul.f32 %v2102, 0.225
    %v2359 = vmul.f32 %v2103, 0.225
    %v2360 = vmul.f32 %v2104, 0.225
    %v2361 = vmul.f32 %v2105, 0.225
    %v2362 = vmul.f32 %v2106, 0.225
    %v2363 = vmul.f32 %v2107, 0.225
    %v2364 = vmul.f32 %v2108, 0.225
    %v2365 = vmul.f32 %v2109, 0.225
    %v2366 = vmul.f32 %v2110, 0.225
    %v2367 = vmul.f32 %v2111, 0.225
    %v2368 = vmul.f32 %v2112, 0.225
    %v2369 = vmul.f32 %v2113, 0.225
    %v2370 = vmul.f32 %v2114, 0.225
    %v2371 = vmul.f32 %v2115, 0.225
    %v2372 = vmul.f32 %v2116, 0.225
    %v2373 = vmul.f32 %v2117, 0.225
    %v2374 = vmul.f32 %v2118, 0.225
    %v2375 = vmul.f32 %v2119, 0.225
    %v2376 = vmul.f32 %v2120, 0.225
    %v2377 = vmul.f32 %v2121, 0.225
    %v2378 = vmul.f32 %v2122, 0.225
    %v2379 = vmul.f32 %v2123, 0.225
    %v2380 = vmul.f32 %v2124, 0.225
    %v2381 = vmul.f32 %v2125, 0.225
    %v2382 = vmul.f32 %v2126, 0.225
    %v2383 = vmul.f32 %v2127, 0.225
    %v2384 = vmul.f32 %v2128, 0.225
    %v2385 = vmul.f32 %v2129, 0.225
    %v2386 = vmul.f32 %v2130, 0.225
    %v2387 = vmul.f32 %v2131, 0.225
    %v2388 = vmul.f32 %v2132, 0.225
    %v2389 = vmul.f32 %v2133, 0.225
    %v2390 = vmul.f32 %v2134, 0.225
    %v2391 = vmul.f32 %v2135, 0.225
    %v2392 = vmul.f32 %v2136, 0.225
    %v2393 = vmul.f32 %v2137, 0.225
    %v2394 = vmul.f32 %v2138, 0.225
    %v2395 = vmul.f32 %v2139, 0.225
    %v2396 = vmul.f32 %v2140, 0.225
    %v2397 = vmul.f32 %v2141, 0.225
    %v2398 = vmul.f32 %v2142, 0.225
    %v2399 = vmul.f32 %v2143, 0.225
    %v2400 = vmul.f32 %v2144, 0.225
    %v2401 = vmul.f32 %v2145, 0.225
    %v2402 = vmul.f32 %v2146, 0.225
    %v2403 = vmul.f32 %v2147, 0.225
    %v2404 = vmul.f32 %v2148, 0.225
    %v2405 = vmul.f32 %v2149, 0.225
    %v2406 = vmul.f32 %v2150, 0.225
    %v2407 = vadd.f32 %v1638, %v2151
    %v2408 = vadd.f32 %v1639, %v2152
    %v2409 = vadd.f32 %v1640, %v2153
    %v2410 = vadd.f32 %v1641, %v2154
    %v2411 = vadd.f32 %v1642, %v2155
    %v2412 = vadd.f32 %v1643, %v2156
    %v2413 = vadd.f32 %v1644, %v2157
    %v2414 = vadd.f32 %v1645, %v2158
    %v2415 = vadd.f32 %v1646, %v2159
    %v2416 = vadd.f32 %v1647, %v2160
    %v2417 = vadd.f32 %v1648, %v2161
    %v2418 = vadd.f32 %v1649, %v2162
    %v2419 = vadd.f32 %v1650, %v2163
    %v2420 = vadd.f32 %v1651, %v2164
    %v2421 = vadd.f32 %v1652, %v2165
    %v2422 = vadd.f32 %v1653, %v2166
    %v2423 = vadd.f32 %v1654, %v2167
    %v2424 = vadd.f32 %v1655, %v2168
    %v2425 = vadd.f32 %v1656, %v2169
    %v2426 = vadd.f32 %v1657, %v2170
    %v2427 = vadd.f32 %v1658, %v2171
    %v2428 = vadd.f32 %v1659, %v2172
    %v2429 = vadd.f32 %v1660, %v2173
    %v2430 = vadd.f32 %v1661, %v2174
    %v2431 = vadd.f32 %v1662, %v2175
    %v2432 = vadd.f32 %v1663, %v2176
    %v2433 = vadd.f32 %v1664, %v2177
    %v2434 = vadd.f32 %v1665, %v2178
    %v2435 = vadd.f32 %v1666, %v2179
    %v2436 = vadd.f32 %v1667, %v2180
    %v2437 = vadd.f32 %v1668, %v2181
    %v2438 = vadd.f32 %v1669, %v2182
    %v2439 = vadd.f32 %v1670, %v2183
    %v2440 = vadd.f32 %v1671, %v2184
    %v2441 = vadd.f32 %v1672, %v2185
    %v2442 = vadd.f32 %v1673, %v2186
    %v2443 = vadd.f32 %v1674, %v2187
    %v2444 = vadd.f32 %v1675, %v2188
    %v2445 = vadd.f32 %v1676, %v2189
    %v2446 = vadd.f32 %v1677, %v2190
    %v2447 = vadd.f32 %v1678, %v2191
    %v2448 = vadd.f32 %v1679, %v2192
    %v2449 = vadd.f32 %v1680, %v2193
    %v2450 = vadd.f32 %v1681, %v2194
    %v2451 = vadd.f32 %v1682, %v2195
    %v2452 = vadd.f32 %v1683, %v2196
    %v2453 = vadd.f32 %v1684, %v2197
    %v2454 = vadd.f32 %v1685, %v2198
    %v2455 = vadd.f32 %v1686, %v2199
    %v2456 = vadd.f32 %v1687, %v2200
    %v2457 = vadd.f32 %v1688, %v2201
    %v2458 = vadd.f32 %v1689, %v2202
    %v2459 = vadd.f32 %v1690, %v2203
    %v2460 = vadd.f32 %v1691, %v2204
    %v2461 = vadd.f32 %v1692, %v2205
    %v2462 = vadd.f32 %v1693, %v2206
    %v2463 = vadd.f32 %v1694, %v2207
    %v2464 = vadd.f32 %v1695, %v2208
    %v2465 = vadd.f32 %v1696, %v2209
    %v2466 = vadd.f32 %v1697, %v2210
    %v2467 = vadd.f32 %v1698, %v2211
    %v2468 = vadd.f32 %v1699, %v2212
    %v2469 = vadd.f32 %v1700, %v2213
    %v2470 = vadd.f32 %v1701, %v2214
    %v2471 = vadd.f32 %v1702, %v2215
    %v2472 = vadd.f32 %v1703, %v2216
    %v2473 = vadd.f32 %v1704, %v2217
    %v2474 = vadd.f32 %v1705, %v2218
    %v2475 = vadd.f32 %v1706, %v2219
    %v2476 = vadd.f32 %v1707, %v2220
    %v2477 = vadd.f32 %v1708, %v2221
    %v2478 = vadd.f32 %v1709, %v2222
    %v2479 = vadd.f32 %v1710, %v2223
    %v2480 = vadd.f32 %v1711, %v2224
    %v2481 = vadd.f32 %v1712, %v2225
    %v2482 = vadd.f32 %v1713, %v2226
    %v2483 = vadd.f32 %v1714, %v2227
    %v2484 = vadd.f32 %v1715, %v2228
    %v2485 = vadd.f32 %v1716, %v2229
    %v2486 = vadd.f32 %v1717, %v2230
    %v2487 = vadd.f32 %v1718, %v2231
    %v2488 = vadd.f32 %v1719, %v2232
    %v2489 = vadd.f32 %v1720, %v2233
    %v2490 = vadd.f32 %v1721, %v2234
    %v2491 = vadd.f32 %v1722, %v2235
    %v2492 = vadd.f32 %v1723, %v2236
    %v2493 = vadd.f32 %v1724, %v2237
    %v2494 = vadd.f32 %v1725, %v2238
    %v2495 = vadd.f32 %v1726, %v2239
    %v2496 = vadd.f32 %v1727, %v2240
    %v2497 = vadd.f32 %v1728, %v2241
    %v2498 = vadd.f32 %v1729, %v2242
    %v2499 = vadd.f32 %v1730, %v2243
    %v2500 = vadd.f32 %v1731, %v2244
    %v2501 = vadd.f32 %v1732, %v2245
    %v2502 = vadd.f32 %v1733, %v2246
    %v2503 = vadd.f32 %v1734, %v2247
    %v2504 = vadd.f32 %v1735, %v2248
    %v2505 = vadd.f32 %v1736, %v2249
    %v2506 = vadd.f32 %v1737, %v2250
    %v2507 = vadd.f32 %v1738, %v2251
    %v2508 = vadd.f32 %v1739, %v2252
    %v2509 = vadd.f32 %v1740, %v2253
    %v2510 = vadd.f32 %v1741, %v2254
    %v2511 = vadd.f32 %v1742, %v2255
    %v2512 = vadd.f32 %v1743, %v2256
    %v2513 = vadd.f32 %v1744, %v2257
    %v2514 = vadd.f32 %v1745, %v2258
    %v2515 = vadd.f32 %v1746, %v2259
    %v2516 = vadd.f32 %v1747, %v2260
    %v2517 = vadd.f32 %v1748, %v2261
    %v2518 = vadd.f32 %v1749, %v2262
    %v2519 = vadd.f32 %v1750, %v2263
    %v2520 = vadd.f32 %v1751, %v2264
    %v2521 = vadd.f32 %v1752, %v2265
    %v2522 = vadd.f32 %v1753, %v2266
    %v2523 = vadd.f32 %v1754, %v2267
    %v2524 = vadd.f32 %v1755, %v2268
    %v2525 = vadd.f32 %v1756, %v2269
    %v2526 = vadd.f32 %v1757, %v2270
    %v2527 = vadd.f32 %v1758, %v2271
    %v2528 = vadd.f32 %v1759, %v2272
    %v2529 = vadd.f32 %v1760, %v2273
    %v2530 = vadd.f32 %v1761, %v2274
    %v2531 = vadd.f32 %v1762, %v2275
    %v2532 = vadd.f32 %v1763, %v2276
    %v2533 = vadd.f32 %v1764, %v2277
    %v2534 = vadd.f32 %v1765, %v2278
    %v2535 = vadd.f32 %v1766, %v2279
    %v2536 = vadd.f32 %v1767, %v2280
    %v2537 = vadd.f32 %v1768, %v2281
    %v2538 = vadd.f32 %v1769, %v2282
    %v2539 = vadd.f32 %v1770, %v2283
    %v2540 = vadd.f32 %v1771, %v2284
    %v2541 = vadd.f32 %v1772, %v2285
    %v2542 = vadd.f32 %v1773, %v2286
    %v2543 = vadd.f32 %v1774, %v2287
    %v2544 = vadd.f32 %v1775, %v2288
    %v2545 = vadd.f32 %v1776, %v2289
    %v2546 = vadd.f32 %v1777, %v2290
    %v2547 = vadd.f32 %v1778, %v2291
    %v2548 = vadd.f32 %v1779, %v2292
    %v2549 = vadd.f32 %v1780, %v2293
    %v2550 = vadd.f32 %v1781, %v2294
    %v2551 = vadd.f32 %v1782, %v2295
    %v2552 = vadd.f32 %v1783, %v2296
    %v2553 = vadd.f32 %v1784, %v2297
    %v2554 = vadd.f32 %v1785, %v2298
    %v2555 = vadd.f32 %v1786, %v2299
    %v2556 = vadd.f32 %v1787, %v2300
    %v2557 = vadd.f32 %v1788, %v2301
    %v2558 = vadd.f32 %v1789, %v2302
    %v2559 = vadd.f32 %v1790, %v2303
    %v2560 = vadd.f32 %v1791, %v2304
    %v2561 = vadd.f32 %v1792, %v2305
    %v2562 = vadd.f32 %v1793, %v2306
    %v2563 = vadd.f32 %v1794, %v2307
    %v2564 = vadd.f32 %v1795, %v2308
    %v2565 = vadd.f32 %v1796, %v2309
    %v2566 = vadd.f32 %v1797, %v2310
    %v2567 = vadd.f32 %v1798, %v2311
    %v2568 = vadd.f32 %v1799, %v2312
    %v2569 = vadd.f32 %v1800, %v2313
    %v2570 = vadd.f32 %v1801, %v2314
    %v2571 = vadd.f32 %v1802, %v2315
    %v2572 = vadd.f32 %v1803, %v2316
    %v2573 = vadd.f32 %v1804, %v2317
    %v2574 = vadd.f32 %v1805, %v2318
    %v2575 = vadd.f32 %v1806, %v2319
    %v2576 = vadd.f32 %v1807, %v2320
    %v2577 = vadd.f32 %v1808, %v2321
    %v2578 = vadd.f32 %v1809, %v2322
    %v2579 = vadd.f32 %v1810, %v2323
    %v2580 = vadd.f32 %v1811, %v2324
    %v2581 = vadd.f32 %v1812, %v2325
    %v2582 = vadd.f32 %v1813, %v2326
    %v2583 = vadd.f32 %v1814, %v2327
    %v2584 = vadd.f32 %v1815, %v2328
    %v2585 = vadd.f32 %v1816, %v2329
    %v2586 = vadd.f32 %v1817, %v2330
    %v2587 = vadd.f32 %v1818, %v2331
    %v2588 = vadd.f32 %v1819, %v2332
    %v2589 = vadd.f32 %v1820, %v2333
    %v2590 = vadd.f32 %v1821, %v2334
    %v2591 = vadd.f32 %v1822, %v2335
    %v2592 = vadd.f32 %v1823, %v2336
    %v2593 = vadd.f32 %v1824, %v2337
    %v2594 = vadd.f32 %v1825, %v2338
    %v2595 = vadd.f32 %v1826, %v2339
    %v2596 = vadd.f32 %v1827, %v2340
    %v2597 = vadd.f32 %v1828, %v2341
    %v2598 = vadd.f32 %v1829, %v2342
    %v2599 = vadd.f32 %v1830, %v2343
    %v2600 = vadd.f32 %v1831, %v2344
    %v2601 = vadd.f32 %v1832, %v2345
    %v2602 = vadd.f32 %v1833, %v2346
    %v2603 = vadd.f32 %v1834, %v2347
    %v2604 = vadd.f32 %v1835, %v2348
    %v2605 = vadd.f32 %v1836, %v2349
    %v2606 = vadd.f32 %v1837, %v2350
    %v2607 = vadd.f32 %v1838, %v2351
    %v2608 = vadd.f32 %v1839, %v2352
    %v2609 = vadd.f32 %v1840, %v2353
    %v2610 = vadd.f32 %v1841, %v2354
    %v2611 = vadd.f32 %v1842, %v2355
    %v2612 = vadd.f32 %v1843, %v2356
    %v2613 = vadd.f32 %v1844, %v2357
    %v2614 = vadd.f32 %v1845, %v2358
    %v2615 = vadd.f32 %v1846, %v2359
    %v2616 = vadd.f32 %v1847, %v2360
    %v2617 = vadd.f32 %v1848, %v2361
    %v2618 = vadd.f32 %v1849, %v2362
    %v2619 = vadd.f32 %v1850, %v2363
    %v2620 = vadd.f32 %v1851, %v2364
    %v2621 = vadd.f32 %v1852, %v2365
    %v2622 = vadd.f32 %v1853, %v2366
    %v2623 = vadd.f32 %v1854, %v2367
    %v2624 = vadd.f32 %v1855, %v2368
    %v2625 = vadd.f32 %v1856, %v2369
    %v2626 = vadd.f32 %v1857, %v2370
    %v2627 = vadd.f32 %v1858, %v2371
    %v2628 = vadd.f32 %v1859, %v2372
    %v2629 = vadd.f32 %v1860, %v2373
    %v2630 = vadd.f32 %v1861, %v2374
    %v2631 = vadd.f32 %v1862, %v2375
    %v2632 = vadd.f32 %v1863, %v2376
    %v2633 = vadd.f32 %v1864, %v2377
    %v2634 = vadd.f32 %v1865, %v2378
    %v2635 = vadd.f32 %v1866, %v2379
    %v2636 = vadd.f32 %v1867, %v2380
    %v2637 = vadd.f32 %v1868, %v2381
    %v2638 = vadd.f32 %v1869, %v2382
    %v2639 = vadd.f32 %v1870, %v2383
    %v2640 = vadd.f32 %v1871, %v2384
    %v2641 = vadd.f32 %v1872, %v2385
    %v2642 = vadd.f32 %v1873, %v2386
    %v2643 = vadd.f32 %v1874, %v2387
    %v2644 = vadd.f32 %v1875, %v2388
    %v2645 = vadd.f32 %v1876, %v2389
    %v2646 = vadd.f32 %v1877, %v2390
    %v2647 = vadd.f32 %v1878, %v2391
    %v2648 = vadd.f32 %v1879, %v2392
    %v2649 = vadd.f32 %v1880, %v2393
    %v2650 = vadd.f32 %v1881, %v2394
    %v2651 = vadd.f32 %v1882, %v2395
    %v2652 = vadd.f32 %v1883, %v2396
    %v2653 = vadd.f32 %v1884, %v2397
    %v2654 = vadd.f32 %v1885, %v2398
    %v2655 = vadd.f32 %v1886, %v2399
    %v2656 = vadd.f32 %v1887, %v2400
    %v2657 = vadd.f32 %v1888, %v2401
    %v2658 = vadd.f32 %v1889, %v2402
    %v2659 = vadd.f32 %v1890, %v2403
    %v2660 = vadd.f32 %v1891, %v2404
    %v2661 = vadd.f32 %v1892, %v2405
    %v2662 = vadd.f32 %v1893, %v2406
    %s2663 = scalar_lea.vmem [#allocation2], 37
    %v2664 = vld [vmem:[%s2663] sm:$0x1]
    %v2665 = vld [vmem:[%s2663 + $0x1] sm:$0x1]
    %v2666 = vld [vmem:[%s2663 + $0x2] sm:$0x1]
    %v2667 = vld [vmem:[%s2663 + $0x3] sm:$0x1]
    %v2668 = vld [vmem:[%s2663 + $0x4] sm:$0x1]
    %v2669 = vld [vmem:[%s2663 + $0x5] sm:$0x1]
    %v2670 = vld [vmem:[%s2663 + $0x6] sm:$0x1]
    %v2671 = vld [vmem:[%s2663 + $0x7] sm:$0x1]
    %v2672 = vld [vmem:[%s2663 + $0x8] sm:$0x1]
    %v2673 = vld [vmem:[%s2663 + $0x9] sm:$0x1]
    %v2674 = vld [vmem:[%s2663 + $0xa] sm:$0x1]
    %v2675 = vld [vmem:[%s2663 + $0xb] sm:$0x1]
    %v2676 = vld [vmem:[%s2663 + $0xc] sm:$0x1]
    %v2677 = vld [vmem:[%s2663 + $0xd] sm:$0x1]
    %v2678 = vld [vmem:[%s2663 + $0xe] sm:$0x1]
    %v2679 = vld [vmem:[%s2663 + $0xf] sm:$0x1]
    %v2680 = vld [vmem:[%s2663 + $0x12] sm:$0x1]
    %v2681 = vld [vmem:[%s2663 + $0x13] sm:$0x1]
    %v2682 = vld [vmem:[%s2663 + $0x14] sm:$0x1]
    %v2683 = vld [vmem:[%s2663 + $0x15] sm:$0x1]
    %v2684 = vld [vmem:[%s2663 + $0x16] sm:$0x1]
    %v2685 = vld [vmem:[%s2663 + $0x17] sm:$0x1]
    %v2686 = vld [vmem:[%s2663 + $0x18] sm:$0x1]
    %v2687 = vld [vmem:[%s2663 + $0x19] sm:$0x1]
    %v2688 = vld [vmem:[%s2663 + $0x1a] sm:$0x1]
    %v2689 = vld [vmem:[%s2663 + $0x1b] sm:$0x1]
    %v2690 = vld [vmem:[%s2663 + $0x1c] sm:$0x1]
    %v2691 = vld [vmem:[%s2663 + $0x1d] sm:$0x1]
    %v2692 = vld [vmem:[%s2663 + $0x1e] sm:$0x1]
    %v2693 = vld [vmem:[%s2663 + $0x1f] sm:$0x1]
    %v2694 = vld [vmem:[%s2663 + $0x20] sm:$0x1]
    %v2695 = vld [vmem:[%s2663 + $0x21] sm:$0x1]
    %v2696 = vld [vmem:[%s2663 + $0x24] sm:$0x1]
    %v2697 = vld [vmem:[%s2663 + $0x25] sm:$0x1]
    %v2698 = vld [vmem:[%s2663 + $0x26] sm:$0x1]
    %v2699 = vld [vmem:[%s2663 + $0x27] sm:$0x1]
    %v2700 = vld [vmem:[%s2663 + $0x28] sm:$0x1]
    %v2701 = vld [vmem:[%s2663 + $0x29] sm:$0x1]
    %v2702 = vld [vmem:[%s2663 + $0x2a] sm:$0x1]
    %v2703 = vld [vmem:[%s2663 + $0x2b] sm:$0x1]
    %v2704 = vld [vmem:[%s2663 + $0x2c] sm:$0x1]
    %v2705 = vld [vmem:[%s2663 + $0x2d] sm:$0x1]
    %v2706 = vld [vmem:[%s2663 + $0x2e] sm:$0x1]
    %v2707 = vld [vmem:[%s2663 + $0x2f] sm:$0x1]
    %v2708 = vld [vmem:[%s2663 + $0x30] sm:$0x1]
    %v2709 = vld [vmem:[%s2663 + $0x31] sm:$0x1]
    %v2710 = vld [vmem:[%s2663 + $0x32] sm:$0x1]
    %v2711 = vld [vmem:[%s2663 + $0x33] sm:$0x1]
    %v2712 = vld [vmem:[%s2663 + $0x36] sm:$0x1]
    %v2713 = vld [vmem:[%s2663 + $0x37] sm:$0x1]
    %v2714 = vld [vmem:[%s2663 + $0x38] sm:$0x1]
    %v2715 = vld [vmem:[%s2663 + $0x39] sm:$0x1]
    %v2716 = vld [vmem:[%s2663 + $0x3a] sm:$0x1]
    %v2717 = vld [vmem:[%s2663 + $0x3b] sm:$0x1]
    %v2718 = vld [vmem:[%s2663 + $0x3c] sm:$0x1]
    %v2719 = vld [vmem:[%s2663 + $0x3d] sm:$0x1]
    %v2720 = vld [vmem:[%s2663 + $0x3e] sm:$0x1]
    %v2721 = vld [vmem:[%s2663 + $0x3f] sm:$0x1]
    %v2722 = vld [vmem:[%s2663 + $0x40] sm:$0x1]
    %v2723 = vld [vmem:[%s2663 + $0x41] sm:$0x1]
    %v2724 = vld [vmem:[%s2663 + $0x42] sm:$0x1]
    %v2725 = vld [vmem:[%s2663 + $0x43] sm:$0x1]
    %v2726 = vld [vmem:[%s2663 + $0x44] sm:$0x1]
    %v2727 = vld [vmem:[%s2663 + $0x45] sm:$0x1]
    %v2728 = vld [vmem:[%s2663 + $0x48] sm:$0x1]
    %v2729 = vld [vmem:[%s2663 + $0x49] sm:$0x1]
    %v2730 = vld [vmem:[%s2663 + $0x4a] sm:$0x1]
    %v2731 = vld [vmem:[%s2663 + $0x4b] sm:$0x1]
    %v2732 = vld [vmem:[%s2663 + $0x4c] sm:$0x1]
    %v2733 = vld [vmem:[%s2663 + $0x4d] sm:$0x1]
    %v2734 = vld [vmem:[%s2663 + $0x4e] sm:$0x1]
    %v2735 = vld [vmem:[%s2663 + $0x4f] sm:$0x1]
    %v2736 = vld [vmem:[%s2663 + $0x50] sm:$0x1]
    %v2737 = vld [vmem:[%s2663 + $0x51] sm:$0x1]
    %v2738 = vld [vmem:[%s2663 + $0x52] sm:$0x1]
    %v2739 = vld [vmem:[%s2663 + $0x53] sm:$0x1]
    %v2740 = vld [vmem:[%s2663 + $0x54] sm:$0x1]
    %v2741 = vld [vmem:[%s2663 + $0x55] sm:$0x1]
    %v2742 = vld [vmem:[%s2663 + $0x56] sm:$0x1]
    %v2743 = vld [vmem:[%s2663 + $0x57] sm:$0x1]
    %v2744 = vld [vmem:[%s2663 + $0x5a] sm:$0x1]
    %v2745 = vld [vmem:[%s2663 + $0x5b] sm:$0x1]
    %v2746 = vld [vmem:[%s2663 + $0x5c] sm:$0x1]
    %v2747 = vld [vmem:[%s2663 + $0x5d] sm:$0x1]
    %v2748 = vld [vmem:[%s2663 + $0x5e] sm:$0x1]
    %v2749 = vld [vmem:[%s2663 + $0x5f] sm:$0x1]
    %v2750 = vld [vmem:[%s2663 + $0x60] sm:$0x1]
    %v2751 = vld [vmem:[%s2663 + $0x61] sm:$0x1]
    %v2752 = vld [vmem:[%s2663 + $0x62] sm:$0x1]
    %v2753 = vld [vmem:[%s2663 + $0x63] sm:$0x1]
    %v2754 = vld [vmem:[%s2663 + $0x64] sm:$0x1]
    %v2755 = vld [vmem:[%s2663 + $0x65] sm:$0x1]
    %v2756 = vld [vmem:[%s2663 + $0x66] sm:$0x1]
    %v2757 = vld [vmem:[%s2663 + $0x67] sm:$0x1]
    %v2758 = vld [vmem:[%s2663 + $0x68] sm:$0x1]
    %v2759 = vld [vmem:[%s2663 + $0x69] sm:$0x1]
    %v2760 = vld [vmem:[%s2663 + $0x6c] sm:$0x1]
    %v2761 = vld [vmem:[%s2663 + $0x6d] sm:$0x1]
    %v2762 = vld [vmem:[%s2663 + $0x6e] sm:$0x1]
    %v2763 = vld [vmem:[%s2663 + $0x6f] sm:$0x1]
    %v2764 = vld [vmem:[%s2663 + $0x70] sm:$0x1]
    %v2765 = vld [vmem:[%s2663 + $0x71] sm:$0x1]
    %v2766 = vld [vmem:[%s2663 + $0x72] sm:$0x1]
    %v2767 = vld [vmem:[%s2663 + $0x73] sm:$0x1]
    %v2768 = vld [vmem:[%s2663 + $0x74] sm:$0x1]
    %v2769 = vld [vmem:[%s2663 + $0x75] sm:$0x1]
    %v2770 = vld [vmem:[%s2663 + $0x76] sm:$0x1]
    %v2771 = vld [vmem:[%s2663 + $0x77] sm:$0x1]
    %v2772 = vld [vmem:[%s2663 + $0x78] sm:$0x1]
    %v2773 = vld [vmem:[%s2663 + $0x79] sm:$0x1]
    %v2774 = vld [vmem:[%s2663 + $0x7a] sm:$0x1]
    %v2775 = vld [vmem:[%s2663 + $0x7b] sm:$0x1]
    %v2776 = vld [vmem:[%s2663 + $0x7e] sm:$0x1]
    %v2777 = vld [vmem:[%s2663 + $0x7f] sm:$0x1]
    %v2778 = vld [vmem:[%s2663 + $0x80] sm:$0x1]
    %v2779 = vld [vmem:[%s2663 + $0x81] sm:$0x1]
    %v2780 = vld [vmem:[%s2663 + $0x82] sm:$0x1]
    %v2781 = vld [vmem:[%s2663 + $0x83] sm:$0x1]
    %v2782 = vld [vmem:[%s2663 + $0x84] sm:$0x1]
    %v2783 = vld [vmem:[%s2663 + $0x85] sm:$0x1]
    %v2784 = vld [vmem:[%s2663 + $0x86] sm:$0x1]
    %v2785 = vld [vmem:[%s2663 + $0x87] sm:$0x1]
    %v2786 = vld [vmem:[%s2663 + $0x88] sm:$0x1]
    %v2787 = vld [vmem:[%s2663 + $0x89] sm:$0x1]
    %v2788 = vld [vmem:[%s2663 + $0x8a] sm:$0x1]
    %v2789 = vld [vmem:[%s2663 + $0x8b] sm:$0x1]
    %v2790 = vld [vmem:[%s2663 + $0x8c] sm:$0x1]
    %v2791 = vld [vmem:[%s2663 + $0x8d] sm:$0x1]
    %v2792 = vld [vmem:[%s2663 + $0x90] sm:$0x1]
    %v2793 = vld [vmem:[%s2663 + $0x91] sm:$0x1]
    %v2794 = vld [vmem:[%s2663 + $0x92] sm:$0x1]
    %v2795 = vld [vmem:[%s2663 + $0x93] sm:$0x1]
    %v2796 = vld [vmem:[%s2663 + $0x94] sm:$0x1]
    %v2797 = vld [vmem:[%s2663 + $0x95] sm:$0x1]
    %v2798 = vld [vmem:[%s2663 + $0x96] sm:$0x1]
    %v2799 = vld [vmem:[%s2663 + $0x97] sm:$0x1]
    %v2800 = vld [vmem:[%s2663 + $0x98] sm:$0x1]
    %v2801 = vld [vmem:[%s2663 + $0x99] sm:$0x1]
    %v2802 = vld [vmem:[%s2663 + $0x9a] sm:$0x1]
    %v2803 = vld [vmem:[%s2663 + $0x9b] sm:$0x1]
    %v2804 = vld [vmem:[%s2663 + $0x9c] sm:$0x1]
    %v2805 = vld [vmem:[%s2663 + $0x9d] sm:$0x1]
    %v2806 = vld [vmem:[%s2663 + $0x9e] sm:$0x1]
    %v2807 = vld [vmem:[%s2663 + $0x9f] sm:$0x1]
    %v2808 = vld [vmem:[%s2663 + $0xa2] sm:$0x1]
    %v2809 = vld [vmem:[%s2663 + $0xa3] sm:$0x1]
    %v2810 = vld [vmem:[%s2663 + $0xa4] sm:$0x1]
    %v2811 = vld [vmem:[%s2663 + $0xa5] sm:$0x1]
    %v2812 = vld [vmem:[%s2663 + $0xa6] sm:$0x1]
    %v2813 = vld [vmem:[%s2663 + $0xa7] sm:$0x1]
    %v2814 = vld [vmem:[%s2663 + $0xa8] sm:$0x1]
    %v2815 = vld [vmem:[%s2663 + $0xa9] sm:$0x1]
    %v2816 = vld [vmem:[%s2663 + $0xaa] sm:$0x1]
    %v2817 = vld [vmem:[%s2663 + $0xab] sm:$0x1]
    %v2818 = vld [vmem:[%s2663 + $0xac] sm:$0x1]
    %v2819 = vld [vmem:[%s2663 + $0xad] sm:$0x1]
    %v2820 = vld [vmem:[%s2663 + $0xae] sm:$0x1]
    %v2821 = vld [vmem:[%s2663 + $0xaf] sm:$0x1]
    %v2822 = vld [vmem:[%s2663 + $0xb0] sm:$0x1]
    %v2823 = vld [vmem:[%s2663 + $0xb1] sm:$0x1]
    %v2824 = vld [vmem:[%s2663 + $0xb4] sm:$0x1]
    %v2825 = vld [vmem:[%s2663 + $0xb5] sm:$0x1]
    %v2826 = vld [vmem:[%s2663 + $0xb6] sm:$0x1]
    %v2827 = vld [vmem:[%s2663 + $0xb7] sm:$0x1]
    %v2828 = vld [vmem:[%s2663 + $0xb8] sm:$0x1]
    %v2829 = vld [vmem:[%s2663 + $0xb9] sm:$0x1]
    %v2830 = vld [vmem:[%s2663 + $0xba] sm:$0x1]
    %v2831 = vld [vmem:[%s2663 + $0xbb] sm:$0x1]
    %v2832 = vld [vmem:[%s2663 + $0xbc] sm:$0x1]
    %v2833 = vld [vmem:[%s2663 + $0xbd] sm:$0x1]
    %v2834 = vld [vmem:[%s2663 + $0xbe] sm:$0x1]
    %v2835 = vld [vmem:[%s2663 + $0xbf] sm:$0x1]
    %v2836 = vld [vmem:[%s2663 + $0xc0] sm:$0x1]
    %v2837 = vld [vmem:[%s2663 + $0xc1] sm:$0x1]
    %v2838 = vld [vmem:[%s2663 + $0xc2] sm:$0x1]
    %v2839 = vld [vmem:[%s2663 + $0xc3] sm:$0x1]
    %v2840 = vld [vmem:[%s2663 + $0xc6] sm:$0x1]
    %v2841 = vld [vmem:[%s2663 + $0xc7] sm:$0x1]
    %v2842 = vld [vmem:[%s2663 + $0xc8] sm:$0x1]
    %v2843 = vld [vmem:[%s2663 + $0xc9] sm:$0x1]
    %v2844 = vld [vmem:[%s2663 + $0xca] sm:$0x1]
    %v2845 = vld [vmem:[%s2663 + $0xcb] sm:$0x1]
    %v2846 = vld [vmem:[%s2663 + $0xcc] sm:$0x1]
    %v2847 = vld [vmem:[%s2663 + $0xcd] sm:$0x1]
    %v2848 = vld [vmem:[%s2663 + $0xce] sm:$0x1]
    %v2849 = vld [vmem:[%s2663 + $0xcf] sm:$0x1]
    %v2850 = vld [vmem:[%s2663 + $0xd0] sm:$0x1]
    %v2851 = vld [vmem:[%s2663 + $0xd1] sm:$0x1]
    %v2852 = vld [vmem:[%s2663 + $0xd2] sm:$0x1]
    %v2853 = vld [vmem:[%s2663 + $0xd3] sm:$0x1]
    %v2854 = vld [vmem:[%s2663 + $0xd4] sm:$0x1]
    %v2855 = vld [vmem:[%s2663 + $0xd5] sm:$0x1]
    %v2856 = vld [vmem:[%s2663 + $0xd8] sm:$0x1]
    %v2857 = vld [vmem:[%s2663 + $0xd9] sm:$0x1]
    %v2858 = vld [vmem:[%s2663 + $0xda] sm:$0x1]
    %v2859 = vld [vmem:[%s2663 + $0xdb] sm:$0x1]
    %v2860 = vld [vmem:[%s2663 + $0xdc] sm:$0x1]
    %v2861 = vld [vmem:[%s2663 + $0xdd] sm:$0x1]
    %v2862 = vld [vmem:[%s2663 + $0xde] sm:$0x1]
    %v2863 = vld [vmem:[%s2663 + $0xdf] sm:$0x1]
    %v2864 = vld [vmem:[%s2663 + $0xe0] sm:$0x1]
    %v2865 = vld [vmem:[%s2663 + $0xe1] sm:$0x1]
    %v2866 = vld [vmem:[%s2663 + $0xe2] sm:$0x1]
    %v2867 = vld [vmem:[%s2663 + $0xe3] sm:$0x1]
    %v2868 = vld [vmem:[%s2663 + $0xe4] sm:$0x1]
    %v2869 = vld [vmem:[%s2663 + $0xe5] sm:$0x1]
    %v2870 = vld [vmem:[%s2663 + $0xe6] sm:$0x1]
    %v2871 = vld [vmem:[%s2663 + $0xe7] sm:$0x1]
    %v2872 = vld [vmem:[%s2663 + $0xea] sm:$0x1]
    %v2873 = vld [vmem:[%s2663 + $0xeb] sm:$0x1]
    %v2874 = vld [vmem:[%s2663 + $0xec] sm:$0x1]
    %v2875 = vld [vmem:[%s2663 + $0xed] sm:$0x1]
    %v2876 = vld [vmem:[%s2663 + $0xee] sm:$0x1]
    %v2877 = vld [vmem:[%s2663 + $0xef] sm:$0x1]
    %v2878 = vld [vmem:[%s2663 + $0xf0] sm:$0x1]
    %v2879 = vld [vmem:[%s2663 + $0xf1] sm:$0x1]
    %v2880 = vld [vmem:[%s2663 + $0xf2] sm:$0x1]
    %v2881 = vld [vmem:[%s2663 + $0xf3] sm:$0x1]
    %v2882 = vld [vmem:[%s2663 + $0xf4] sm:$0x1]
    %v2883 = vld [vmem:[%s2663 + $0xf5] sm:$0x1]
    %v2884 = vld [vmem:[%s2663 + $0xf6] sm:$0x1]
    %v2885 = vld [vmem:[%s2663 + $0xf7] sm:$0x1]
    %v2886 = vld [vmem:[%s2663 + $0xf8] sm:$0x1]
    %v2887 = vld [vmem:[%s2663 + $0xf9] sm:$0x1]
    %v2888 = vld [vmem:[%s2663 + $0xfc] sm:$0x1]
    %v2889 = vld [vmem:[%s2663 + $0xfd] sm:$0x1]
    %v2890 = vld [vmem:[%s2663 + $0xfe] sm:$0x1]
    %v2891 = vld [vmem:[%s2663 + $0xff] sm:$0x1]
    %v2892 = vld [vmem:[%s2663 + $0x100] sm:$0x1]
    %v2893 = vld [vmem:[%s2663 + $0x101] sm:$0x1]
    %v2894 = vld [vmem:[%s2663 + $0x102] sm:$0x1]
    %v2895 = vld [vmem:[%s2663 + $0x103] sm:$0x1]
    %v2896 = vld [vmem:[%s2663 + $0x104] sm:$0x1]
    %v2897 = vld [vmem:[%s2663 + $0x105] sm:$0x1]
    %v2898 = vld [vmem:[%s2663 + $0x106] sm:$0x1]
    %v2899 = vld [vmem:[%s2663 + $0x107] sm:$0x1]
    %v2900 = vld [vmem:[%s2663 + $0x108] sm:$0x1]
    %v2901 = vld [vmem:[%s2663 + $0x109] sm:$0x1]
    %v2902 = vld [vmem:[%s2663 + $0x10a] sm:$0x1]
    %v2903 = vld [vmem:[%s2663 + $0x10b] sm:$0x1]
    %v2904 = vld [vmem:[%s2663 + $0x10e] sm:$0x1]
    %v2905 = vld [vmem:[%s2663 + $0x10f] sm:$0x1]
    %v2906 = vld [vmem:[%s2663 + $0x110] sm:$0x1]
    %v2907 = vld [vmem:[%s2663 + $0x111] sm:$0x1]
    %v2908 = vld [vmem:[%s2663 + $0x112] sm:$0x1]
    %v2909 = vld [vmem:[%s2663 + $0x113] sm:$0x1]
    %v2910 = vld [vmem:[%s2663 + $0x114] sm:$0x1]
    %v2911 = vld [vmem:[%s2663 + $0x115] sm:$0x1]
    %v2912 = vld [vmem:[%s2663 + $0x116] sm:$0x1]
    %v2913 = vld [vmem:[%s2663 + $0x117] sm:$0x1]
    %v2914 = vld [vmem:[%s2663 + $0x118] sm:$0x1]
    %v2915 = vld [vmem:[%s2663 + $0x119] sm:$0x1]
    %v2916 = vld [vmem:[%s2663 + $0x11a] sm:$0x1]
    %v2917 = vld [vmem:[%s2663 + $0x11b] sm:$0x1]
    %v2918 = vld [vmem:[%s2663 + $0x11c] sm:$0x1]
    %v2919 = vld [vmem:[%s2663 + $0x11d] sm:$0x1]
    %v2920 = vmul.f32 %v2664, 0.225
    %v2921 = vmul.f32 %v2665, 0.225
    %v2922 = vmul.f32 %v2666, 0.225
    %v2923 = vmul.f32 %v2667, 0.225
    %v2924 = vmul.f32 %v2668, 0.225
    %v2925 = vmul.f32 %v2669, 0.225
    %v2926 = vmul.f32 %v2670, 0.225
    %v2927 = vmul.f32 %v2671, 0.225
    %v2928 = vmul.f32 %v2672, 0.225
    %v2929 = vmul.f32 %v2673, 0.225
    %v2930 = vmul.f32 %v2674, 0.225
    %v2931 = vmul.f32 %v2675, 0.225
    %v2932 = vmul.f32 %v2676, 0.225
    %v2933 = vmul.f32 %v2677, 0.225
    %v2934 = vmul.f32 %v2678, 0.225
    %v2935 = vmul.f32 %v2679, 0.225
    %v2936 = vmul.f32 %v2680, 0.225
    %v2937 = vmul.f32 %v2681, 0.225
    %v2938 = vmul.f32 %v2682, 0.225
    %v2939 = vmul.f32 %v2683, 0.225
    %v2940 = vmul.f32 %v2684, 0.225
    %v2941 = vmul.f32 %v2685, 0.225
    %v2942 = vmul.f32 %v2686, 0.225
    %v2943 = vmul.f32 %v2687, 0.225
    %v2944 = vmul.f32 %v2688, 0.225
    %v2945 = vmul.f32 %v2689, 0.225
    %v2946 = vmul.f32 %v2690, 0.225
    %v2947 = vmul.f32 %v2691, 0.225
    %v2948 = vmul.f32 %v2692, 0.225
    %v2949 = vmul.f32 %v2693, 0.225
    %v2950 = vmul.f32 %v2694, 0.225
    %v2951 = vmul.f32 %v2695, 0.225
    %v2952 = vmul.f32 %v2696, 0.225
    %v2953 = vmul.f32 %v2697, 0.225
    %v2954 = vmul.f32 %v2698, 0.225
    %v2955 = vmul.f32 %v2699, 0.225
    %v2956 = vmul.f32 %v2700, 0.225
    %v2957 = vmul.f32 %v2701, 0.225
    %v2958 = vmul.f32 %v2702, 0.225
    %v2959 = vmul.f32 %v2703, 0.225
    %v2960 = vmul.f32 %v2704, 0.225
    %v2961 = vmul.f32 %v2705, 0.225
    %v2962 = vmul.f32 %v2706, 0.225
    %v2963 = vmul.f32 %v2707, 0.225
    %v2964 = vmul.f32 %v2708, 0.225
    %v2965 = vmul.f32 %v2709, 0.225
    %v2966 = vmul.f32 %v2710, 0.225
    %v2967 = vmul.f32 %v2711, 0.225
    %v2968 = vmul.f32 %v2712, 0.225
    %v2969 = vmul.f32 %v2713, 0.225
    %v2970 = vmul.f32 %v2714, 0.225
    %v2971 = vmul.f32 %v2715, 0.225
    %v2972 = vmul.f32 %v2716, 0.225
    %v2973 = vmul.f32 %v2717, 0.225
    %v2974 = vmul.f32 %v2718, 0.225
    %v2975 = vmul.f32 %v2719, 0.225
    %v2976 = vmul.f32 %v2720, 0.225
    %v2977 = vmul.f32 %v2721, 0.225
    %v2978 = vmul.f32 %v2722, 0.225
    %v2979 = vmul.f32 %v2723, 0.225
    %v2980 = vmul.f32 %v2724, 0.225
    %v2981 = vmul.f32 %v2725, 0.225
    %v2982 = vmul.f32 %v2726, 0.225
    %v2983 = vmul.f32 %v2727, 0.225
    %v2984 = vmul.f32 %v2728, 0.225
    %v2985 = vmul.f32 %v2729, 0.225
    %v2986 = vmul.f32 %v2730, 0.225
    %v2987 = vmul.f32 %v2731, 0.225
    %v2988 = vmul.f32 %v2732, 0.225
    %v2989 = vmul.f32 %v2733, 0.225
    %v2990 = vmul.f32 %v2734, 0.225
    %v2991 = vmul.f32 %v2735, 0.225
    %v2992 = vmul.f32 %v2736, 0.225
    %v2993 = vmul.f32 %v2737, 0.225
    %v2994 = vmul.f32 %v2738, 0.225
    %v2995 = vmul.f32 %v2739, 0.225
    %v2996 = vmul.f32 %v2740, 0.225
    %v2997 = vmul.f32 %v2741, 0.225
    %v2998 = vmul.f32 %v2742, 0.225
    %v2999 = vmul.f32 %v2743, 0.225
    %v3000 = vmul.f32 %v2744, 0.225
    %v3001 = vmul.f32 %v2745, 0.225
    %v3002 = vmul.f32 %v2746, 0.225
    %v3003 = vmul.f32 %v2747, 0.225
    %v3004 = vmul.f32 %v2748, 0.225
    %v3005 = vmul.f32 %v2749, 0.225
    %v3006 = vmul.f32 %v2750, 0.225
    %v3007 = vmul.f32 %v2751, 0.225
    %v3008 = vmul.f32 %v2752, 0.225
    %v3009 = vmul.f32 %v2753, 0.225
    %v3010 = vmul.f32 %v2754, 0.225
    %v3011 = vmul.f32 %v2755, 0.225
    %v3012 = vmul.f32 %v2756, 0.225
    %v3013 = vmul.f32 %v2757, 0.225
    %v3014 = vmul.f32 %v2758, 0.225
    %v3015 = vmul.f32 %v2759, 0.225
    %v3016 = vmul.f32 %v2760, 0.225
    %v3017 = vmul.f32 %v2761, 0.225
    %v3018 = vmul.f32 %v2762, 0.225
    %v3019 = vmul.f32 %v2763, 0.225
    %v3020 = vmul.f32 %v2764, 0.225
    %v3021 = vmul.f32 %v2765, 0.225
    %v3022 = vmul.f32 %v2766, 0.225
    %v3023 = vmul.f32 %v2767, 0.225
    %v3024 = vmul.f32 %v2768, 0.225
    %v3025 = vmul.f32 %v2769, 0.225
    %v3026 = vmul.f32 %v2770, 0.225
    %v3027 = vmul.f32 %v2771, 0.225
    %v3028 = vmul.f32 %v2772, 0.225
    %v3029 = vmul.f32 %v2773, 0.225
    %v3030 = vmul.f32 %v2774, 0.225
    %v3031 = vmul.f32 %v2775, 0.225
    %v3032 = vmul.f32 %v2776, 0.225
    %v3033 = vmul.f32 %v2777, 0.225
    %v3034 = vmul.f32 %v2778, 0.225
    %v3035 = vmul.f32 %v2779, 0.225
    %v3036 = vmul.f32 %v2780, 0.225
    %v3037 = vmul.f32 %v2781, 0.225
    %v3038 = vmul.f32 %v2782, 0.225
    %v3039 = vmul.f32 %v2783, 0.225
    %v3040 = vmul.f32 %v2784, 0.225
    %v3041 = vmul.f32 %v2785, 0.225
    %v3042 = vmul.f32 %v2786, 0.225
    %v3043 = vmul.f32 %v2787, 0.225
    %v3044 = vmul.f32 %v2788, 0.225
    %v3045 = vmul.f32 %v2789, 0.225
    %v3046 = vmul.f32 %v2790, 0.225
    %v3047 = vmul.f32 %v2791, 0.225
    %v3048 = vmul.f32 %v2792, 0.225
    %v3049 = vmul.f32 %v2793, 0.225
    %v3050 = vmul.f32 %v2794, 0.225
    %v3051 = vmul.f32 %v2795, 0.225
    %v3052 = vmul.f32 %v2796, 0.225
    %v3053 = vmul.f32 %v2797, 0.225
    %v3054 = vmul.f32 %v2798, 0.225
    %v3055 = vmul.f32 %v2799, 0.225
    %v3056 = vmul.f32 %v2800, 0.225
    %v3057 = vmul.f32 %v2801, 0.225
    %v3058 = vmul.f32 %v2802, 0.225
    %v3059 = vmul.f32 %v2803, 0.225
    %v3060 = vmul.f32 %v2804, 0.225
    %v3061 = vmul.f32 %v2805, 0.225
    %v3062 = vmul.f32 %v2806, 0.225
    %v3063 = vmul.f32 %v2807, 0.225
    %v3064 = vmul.f32 %v2808, 0.225
    %v3065 = vmul.f32 %v2809, 0.225
    %v3066 = vmul.f32 %v2810, 0.225
    %v3067 = vmul.f32 %v2811, 0.225
    %v3068 = vmul.f32 %v2812, 0.225
    %v3069 = vmul.f32 %v2813, 0.225
    %v3070 = vmul.f32 %v2814, 0.225
    %v3071 = vmul.f32 %v2815, 0.225
    %v3072 = vmul.f32 %v2816, 0.225
    %v3073 = vmul.f32 %v2817, 0.225
    %v3074 = vmul.f32 %v2818, 0.225
    %v3075 = vmul.f32 %v2819, 0.225
    %v3076 = vmul.f32 %v2820, 0.225
    %v3077 = vmul.f32 %v2821, 0.225
    %v3078 = vmul.f32 %v2822, 0.225
    %v3079 = vmul.f32 %v2823, 0.225
    %v3080 = vmul.f32 %v2824, 0.225
    %v3081 = vmul.f32 %v2825, 0.225
    %v3082 = vmul.f32 %v2826, 0.225
    %v3083 = vmul.f32 %v2827, 0.225
    %v3084 = vmul.f32 %v2828, 0.225
    %v3085 = vmul.f32 %v2829, 0.225
    %v3086 = vmul.f32 %v2830, 0.225
    %v3087 = vmul.f32 %v2831, 0.225
    %v3088 = vmul.f32 %v2832, 0.225
    %v3089 = vmul.f32 %v2833, 0.225
    %v3090 = vmul.f32 %v2834, 0.225
    %v3091 = vmul.f32 %v2835, 0.225
    %v3092 = vmul.f32 %v2836, 0.225
    %v3093 = vmul.f32 %v2837, 0.225
    %v3094 = vmul.f32 %v2838, 0.225
    %v3095 = vmul.f32 %v2839, 0.225
    %v3096 = vmul.f32 %v2840, 0.225
    %v3097 = vmul.f32 %v2841, 0.225
    %v3098 = vmul.f32 %v2842, 0.225
    %v3099 = vmul.f32 %v2843, 0.225
    %v3100 = vmul.f32 %v2844, 0.225
    %v3101 = vmul.f32 %v2845, 0.225
    %v3102 = vmul.f32 %v2846, 0.225
    %v3103 = vmul.f32 %v2847, 0.225
    %v3104 = vmul.f32 %v2848, 0.225
    %v3105 = vmul.f32 %v2849, 0.225
    %v3106 = vmul.f32 %v2850, 0.225
    %v3107 = vmul.f32 %v2851, 0.225
    %v3108 = vmul.f32 %v2852, 0.225
    %v3109 = vmul.f32 %v2853, 0.225
    %v3110 = vmul.f32 %v2854, 0.225
    %v3111 = vmul.f32 %v2855, 0.225
    %v3112 = vmul.f32 %v2856, 0.225
    %v3113 = vmul.f32 %v2857, 0.225
    %v3114 = vmul.f32 %v2858, 0.225
    %v3115 = vmul.f32 %v2859, 0.225
    %v3116 = vmul.f32 %v2860, 0.225
    %v3117 = vmul.f32 %v2861, 0.225
    %v3118 = vmul.f32 %v2862, 0.225
    %v3119 = vmul.f32 %v2863, 0.225
    %v3120 = vmul.f32 %v2864, 0.225
    %v3121 = vmul.f32 %v2865, 0.225
    %v3122 = vmul.f32 %v2866, 0.225
    %v3123 = vmul.f32 %v2867, 0.225
    %v3124 = vmul.f32 %v2868, 0.225
    %v3125 = vmul.f32 %v2869, 0.225
    %v3126 = vmul.f32 %v2870, 0.225
    %v3127 = vmul.f32 %v2871, 0.225
    %v3128 = vmul.f32 %v2872, 0.225
    %v3129 = vmul.f32 %v2873, 0.225
    %v3130 = vmul.f32 %v2874, 0.225
    %v3131 = vmul.f32 %v2875, 0.225
    %v3132 = vmul.f32 %v2876, 0.225
    %v3133 = vmul.f32 %v2877, 0.225
    %v3134 = vmul.f32 %v2878, 0.225
    %v3135 = vmul.f32 %v2879, 0.225
    %v3136 = vmul.f32 %v2880, 0.225
    %v3137 = vmul.f32 %v2881, 0.225
    %v3138 = vmul.f32 %v2882, 0.225
    %v3139 = vmul.f32 %v2883, 0.225
    %v3140 = vmul.f32 %v2884, 0.225
    %v3141 = vmul.f32 %v2885, 0.225
    %v3142 = vmul.f32 %v2886, 0.225
    %v3143 = vmul.f32 %v2887, 0.225
    %v3144 = vmul.f32 %v2888, 0.225
    %v3145 = vmul.f32 %v2889, 0.225
    %v3146 = vmul.f32 %v2890, 0.225
    %v3147 = vmul.f32 %v2891, 0.225
    %v3148 = vmul.f32 %v2892, 0.225
    %v3149 = vmul.f32 %v2893, 0.225
    %v3150 = vmul.f32 %v2894, 0.225
    %v3151 = vmul.f32 %v2895, 0.225
    %v3152 = vmul.f32 %v2896, 0.225
    %v3153 = vmul.f32 %v2897, 0.225
    %v3154 = vmul.f32 %v2898, 0.225
    %v3155 = vmul.f32 %v2899, 0.225
    %v3156 = vmul.f32 %v2900, 0.225
    %v3157 = vmul.f32 %v2901, 0.225
    %v3158 = vmul.f32 %v2902, 0.225
    %v3159 = vmul.f32 %v2903, 0.225
    %v3160 = vmul.f32 %v2904, 0.225
    %v3161 = vmul.f32 %v2905, 0.225
    %v3162 = vmul.f32 %v2906, 0.225
    %v3163 = vmul.f32 %v2907, 0.225
    %v3164 = vmul.f32 %v2908, 0.225
    %v3165 = vmul.f32 %v2909, 0.225
    %v3166 = vmul.f32 %v2910, 0.225
    %v3167 = vmul.f32 %v2911, 0.225
    %v3168 = vmul.f32 %v2912, 0.225
    %v3169 = vmul.f32 %v2913, 0.225
    %v3170 = vmul.f32 %v2914, 0.225
    %v3171 = vmul.f32 %v2915, 0.225
    %v3172 = vmul.f32 %v2916, 0.225
    %v3173 = vmul.f32 %v2917, 0.225
    %v3174 = vmul.f32 %v2918, 0.225
    %v3175 = vmul.f32 %v2919, 0.225
    %v3176 = vadd.f32 %v2407, %v2920
    %v3177 = vadd.f32 %v2408, %v2921
    %v3178 = vadd.f32 %v2409, %v2922
    %v3179 = vadd.f32 %v2410, %v2923
    %v3180 = vadd.f32 %v2411, %v2924
    %v3181 = vadd.f32 %v2412, %v2925
    %v3182 = vadd.f32 %v2413, %v2926
    %v3183 = vadd.f32 %v2414, %v2927
    %v3184 = vadd.f32 %v2415, %v2928
    %v3185 = vadd.f32 %v2416, %v2929
    %v3186 = vadd.f32 %v2417, %v2930
    %v3187 = vadd.f32 %v2418, %v2931
    %v3188 = vadd.f32 %v2419, %v2932
    %v3189 = vadd.f32 %v2420, %v2933
    %v3190 = vadd.f32 %v2421, %v2934
    %v3191 = vadd.f32 %v2422, %v2935
    %v3192 = vadd.f32 %v2423, %v2936
    %v3193 = vadd.f32 %v2424, %v2937
    %v3194 = vadd.f32 %v2425, %v2938
    %v3195 = vadd.f32 %v2426, %v2939
    %v3196 = vadd.f32 %v2427, %v2940
    %v3197 = vadd.f32 %v2428, %v2941
    %v3198 = vadd.f32 %v2429, %v2942
    %v3199 = vadd.f32 %v2430, %v2943
    %v3200 = vadd.f32 %v2431, %v2944
    %v3201 = vadd.f32 %v2432, %v2945
    %v3202 = vadd.f32 %v2433, %v2946
    %v3203 = vadd.f32 %v2434, %v2947
    %v3204 = vadd.f32 %v2435, %v2948
    %v3205 = vadd.f32 %v2436, %v2949
    %v3206 = vadd.f32 %v2437, %v2950
    %v3207 = vadd.f32 %v2438, %v2951
    %v3208 = vadd.f32 %v2439, %v2952
    %v3209 = vadd.f32 %v2440, %v2953
    %v3210 = vadd.f32 %v2441, %v2954
    %v3211 = vadd.f32 %v2442, %v2955
    %v3212 = vadd.f32 %v2443, %v2956
    %v3213 = vadd.f32 %v2444, %v2957
    %v3214 = vadd.f32 %v2445, %v2958
    %v3215 = vadd.f32 %v2446, %v2959
    %v3216 = vadd.f32 %v2447, %v2960
    %v3217 = vadd.f32 %v2448, %v2961
    %v3218 = vadd.f32 %v2449, %v2962
    %v3219 = vadd.f32 %v2450, %v2963
    %v3220 = vadd.f32 %v2451, %v2964
    %v3221 = vadd.f32 %v2452, %v2965
    %v3222 = vadd.f32 %v2453, %v2966
    %v3223 = vadd.f32 %v2454, %v2967
    %v3224 = vadd.f32 %v2455, %v2968
    %v3225 = vadd.f32 %v2456, %v2969
    %v3226 = vadd.f32 %v2457, %v2970
    %v3227 = vadd.f32 %v2458, %v2971
    %v3228 = vadd.f32 %v2459, %v2972
    %v3229 = vadd.f32 %v2460, %v2973
    %v3230 = vadd.f32 %v2461, %v2974
    %v3231 = vadd.f32 %v2462, %v2975
    %v3232 = vadd.f32 %v2463, %v2976
    %v3233 = vadd.f32 %v2464, %v2977
    %v3234 = vadd.f32 %v2465, %v2978
    %v3235 = vadd.f32 %v2466, %v2979
    %v3236 = vadd.f32 %v2467, %v2980
    %v3237 = vadd.f32 %v2468, %v2981
    %v3238 = vadd.f32 %v2469, %v2982
    %v3239 = vadd.f32 %v2470, %v2983
    %v3240 = vadd.f32 %v2471, %v2984
    %v3241 = vadd.f32 %v2472, %v2985
    %v3242 = vadd.f32 %v2473, %v2986
    %v3243 = vadd.f32 %v2474, %v2987
    %v3244 = vadd.f32 %v2475, %v2988
    %v3245 = vadd.f32 %v2476, %v2989
    %v3246 = vadd.f32 %v2477, %v2990
    %v3247 = vadd.f32 %v2478, %v2991
    %v3248 = vadd.f32 %v2479, %v2992
    %v3249 = vadd.f32 %v2480, %v2993
    %v3250 = vadd.f32 %v2481, %v2994
    %v3251 = vadd.f32 %v2482, %v2995
    %v3252 = vadd.f32 %v2483, %v2996
    %v3253 = vadd.f32 %v2484, %v2997
    %v3254 = vadd.f32 %v2485, %v2998
    %v3255 = vadd.f32 %v2486, %v2999
    %v3256 = vadd.f32 %v2487, %v3000
    %v3257 = vadd.f32 %v2488, %v3001
    %v3258 = vadd.f32 %v2489, %v3002
    %v3259 = vadd.f32 %v2490, %v3003
    %v3260 = vadd.f32 %v2491, %v3004
    %v3261 = vadd.f32 %v2492, %v3005
    %v3262 = vadd.f32 %v2493, %v3006
    %v3263 = vadd.f32 %v2494, %v3007
    %v3264 = vadd.f32 %v2495, %v3008
    %v3265 = vadd.f32 %v2496, %v3009
    %v3266 = vadd.f32 %v2497, %v3010
    %v3267 = vadd.f32 %v2498, %v3011
    %v3268 = vadd.f32 %v2499, %v3012
    %v3269 = vadd.f32 %v2500, %v3013
    %v3270 = vadd.f32 %v2501, %v3014
    %v3271 = vadd.f32 %v2502, %v3015
    %v3272 = vadd.f32 %v2503, %v3016
    %v3273 = vadd.f32 %v2504, %v3017
    %v3274 = vadd.f32 %v2505, %v3018
    %v3275 = vadd.f32 %v2506, %v3019
    %v3276 = vadd.f32 %v2507, %v3020
    %v3277 = vadd.f32 %v2508, %v3021
    %v3278 = vadd.f32 %v2509, %v3022
    %v3279 = vadd.f32 %v2510, %v3023
    %v3280 = vadd.f32 %v2511, %v3024
    %v3281 = vadd.f32 %v2512, %v3025
    %v3282 = vadd.f32 %v2513, %v3026
    %v3283 = vadd.f32 %v2514, %v3027
    %v3284 = vadd.f32 %v2515, %v3028
    %v3285 = vadd.f32 %v2516, %v3029
    %v3286 = vadd.f32 %v2517, %v3030
    %v3287 = vadd.f32 %v2518, %v3031
    %v3288 = vadd.f32 %v2519, %v3032
    %v3289 = vadd.f32 %v2520, %v3033
    %v3290 = vadd.f32 %v2521, %v3034
    %v3291 = vadd.f32 %v2522, %v3035
    %v3292 = vadd.f32 %v2523, %v3036
    %v3293 = vadd.f32 %v2524, %v3037
    %v3294 = vadd.f32 %v2525, %v3038
    %v3295 = vadd.f32 %v2526, %v3039
    %v3296 = vadd.f32 %v2527, %v3040
    %v3297 = vadd.f32 %v2528, %v3041
    %v3298 = vadd.f32 %v2529, %v3042
    %v3299 = vadd.f32 %v2530, %v3043
    %v3300 = vadd.f32 %v2531, %v3044
    %v3301 = vadd.f32 %v2532, %v3045
    %v3302 = vadd.f32 %v2533, %v3046
    %v3303 = vadd.f32 %v2534, %v3047
    %v3304 = vadd.f32 %v2535, %v3048
    %v3305 = vadd.f32 %v2536, %v3049
    %v3306 = vadd.f32 %v2537, %v3050
    %v3307 = vadd.f32 %v2538, %v3051
    %v3308 = vadd.f32 %v2539, %v3052
    %v3309 = vadd.f32 %v2540, %v3053
    %v3310 = vadd.f32 %v2541, %v3054
    %v3311 = vadd.f32 %v2542, %v3055
    %v3312 = vadd.f32 %v2543, %v3056
    %v3313 = vadd.f32 %v2544, %v3057
    %v3314 = vadd.f32 %v2545, %v3058
    %v3315 = vadd.f32 %v2546, %v3059
    %v3316 = vadd.f32 %v2547, %v3060
    %v3317 = vadd.f32 %v2548, %v3061
    %v3318 = vadd.f32 %v2549, %v3062
    %v3319 = vadd.f32 %v2550, %v3063
    %v3320 = vadd.f32 %v2551, %v3064
    %v3321 = vadd.f32 %v2552, %v3065
    %v3322 = vadd.f32 %v2553, %v3066
    %v3323 = vadd.f32 %v2554, %v3067
    %v3324 = vadd.f32 %v2555, %v3068
    %v3325 = vadd.f32 %v2556, %v3069
    %v3326 = vadd.f32 %v2557, %v3070
    %v3327 = vadd.f32 %v2558, %v3071
    %v3328 = vadd.f32 %v2559, %v3072
    %v3329 = vadd.f32 %v2560, %v3073
    %v3330 = vadd.f32 %v2561, %v3074
    %v3331 = vadd.f32 %v2562, %v3075
    %v3332 = vadd.f32 %v2563, %v3076
    %v3333 = vadd.f32 %v2564, %v3077
    %v3334 = vadd.f32 %v2565, %v3078
    %v3335 = vadd.f32 %v2566, %v3079
    %v3336 = vadd.f32 %v2567, %v3080
    %v3337 = vadd.f32 %v2568, %v3081
    %v3338 = vadd.f32 %v2569, %v3082
    %v3339 = vadd.f32 %v2570, %v3083
    %v3340 = vadd.f32 %v2571, %v3084
    %v3341 = vadd.f32 %v2572, %v3085
    %v3342 = vadd.f32 %v2573, %v3086
    %v3343 = vadd.f32 %v2574, %v3087
    %v3344 = vadd.f32 %v2575, %v3088
    %v3345 = vadd.f32 %v2576, %v3089
    %v3346 = vadd.f32 %v2577, %v3090
    %v3347 = vadd.f32 %v2578, %v3091
    %v3348 = vadd.f32 %v2579, %v3092
    %v3349 = vadd.f32 %v2580, %v3093
    %v3350 = vadd.f32 %v2581, %v3094
    %v3351 = vadd.f32 %v2582, %v3095
    %v3352 = vadd.f32 %v2583, %v3096
    %v3353 = vadd.f32 %v2584, %v3097
    %v3354 = vadd.f32 %v2585, %v3098
    %v3355 = vadd.f32 %v2586, %v3099
    %v3356 = vadd.f32 %v2587, %v3100
    %v3357 = vadd.f32 %v2588, %v3101
    %v3358 = vadd.f32 %v2589, %v3102
    %v3359 = vadd.f32 %v2590, %v3103
    %v3360 = vadd.f32 %v2591, %v3104
    %v3361 = vadd.f32 %v2592, %v3105
    %v3362 = vadd.f32 %v2593, %v3106
    %v3363 = vadd.f32 %v2594, %v3107
    %v3364 = vadd.f32 %v2595, %v3108
    %v3365 = vadd.f32 %v2596, %v3109
    %v3366 = vadd.f32 %v2597, %v3110
    %v3367 = vadd.f32 %v2598, %v3111
    %v3368 = vadd.f32 %v2599, %v3112
    %v3369 = vadd.f32 %v2600, %v3113
    %v3370 = vadd.f32 %v2601, %v3114
    %v3371 = vadd.f32 %v2602, %v3115
    %v3372 = vadd.f32 %v2603, %v3116
    %v3373 = vadd.f32 %v2604, %v3117
    %v3374 = vadd.f32 %v2605, %v3118
    %v3375 = vadd.f32 %v2606, %v3119
    %v3376 = vadd.f32 %v2607, %v3120
    %v3377 = vadd.f32 %v2608, %v3121
    %v3378 = vadd.f32 %v2609, %v3122
    %v3379 = vadd.f32 %v2610, %v3123
    %v3380 = vadd.f32 %v2611, %v3124
    %v3381 = vadd.f32 %v2612, %v3125
    %v3382 = vadd.f32 %v2613, %v3126
    %v3383 = vadd.f32 %v2614, %v3127
    %v3384 = vadd.f32 %v2615, %v3128
    %v3385 = vadd.f32 %v2616, %v3129
    %v3386 = vadd.f32 %v2617, %v3130
    %v3387 = vadd.f32 %v2618, %v3131
    %v3388 = vadd.f32 %v2619, %v3132
    %v3389 = vadd.f32 %v2620, %v3133
    %v3390 = vadd.f32 %v2621, %v3134
    %v3391 = vadd.f32 %v2622, %v3135
    %v3392 = vadd.f32 %v2623, %v3136
    %v3393 = vadd.f32 %v2624, %v3137
    %v3394 = vadd.f32 %v2625, %v3138
    %v3395 = vadd.f32 %v2626, %v3139
    %v3396 = vadd.f32 %v2627, %v3140
    %v3397 = vadd.f32 %v2628, %v3141
    %v3398 = vadd.f32 %v2629, %v3142
    %v3399 = vadd.f32 %v2630, %v3143
    %v3400 = vadd.f32 %v2631, %v3144
    %v3401 = vadd.f32 %v2632, %v3145
    %v3402 = vadd.f32 %v2633, %v3146
    %v3403 = vadd.f32 %v2634, %v3147
    %v3404 = vadd.f32 %v2635, %v3148
    %v3405 = vadd.f32 %v2636, %v3149
    %v3406 = vadd.f32 %v2637, %v3150
    %v3407 = vadd.f32 %v2638, %v3151
    %v3408 = vadd.f32 %v2639, %v3152
    %v3409 = vadd.f32 %v2640, %v3153
    %v3410 = vadd.f32 %v2641, %v3154
    %v3411 = vadd.f32 %v2642, %v3155
    %v3412 = vadd.f32 %v2643, %v3156
    %v3413 = vadd.f32 %v2644, %v3157
    %v3414 = vadd.f32 %v2645, %v3158
    %v3415 = vadd.f32 %v2646, %v3159
    %v3416 = vadd.f32 %v2647, %v3160
    %v3417 = vadd.f32 %v2648, %v3161
    %v3418 = vadd.f32 %v2649, %v3162
    %v3419 = vadd.f32 %v2650, %v3163
    %v3420 = vadd.f32 %v2651, %v3164
    %v3421 = vadd.f32 %v2652, %v3165
    %v3422 = vadd.f32 %v2653, %v3166
    %v3423 = vadd.f32 %v2654, %v3167
    %v3424 = vadd.f32 %v2655, %v3168
    %v3425 = vadd.f32 %v2656, %v3169
    %v3426 = vadd.f32 %v2657, %v3170
    %v3427 = vadd.f32 %v2658, %v3171
    %v3428 = vadd.f32 %v2659, %v3172
    %v3429 = vadd.f32 %v2660, %v3173
    %v3430 = vadd.f32 %v2661, %v3174
    %v3431 = vadd.f32 %v2662, %v3175
    %3432 = vst [vmem:[#allocation6] sm:$0x1] %v3176
    %3433 = vst [vmem:[#allocation6 + $0x1] sm:$0x1] %v3177
    %3434 = vst [vmem:[#allocation6 + $0x2] sm:$0x1] %v3178
    %3435 = vst [vmem:[#allocation6 + $0x3] sm:$0x1] %v3179
    %3436 = vst [vmem:[#allocation6 + $0x4] sm:$0x1] %v3180
    %3437 = vst [vmem:[#allocation6 + $0x5] sm:$0x1] %v3181
    %3438 = vst [vmem:[#allocation6 + $0x6] sm:$0x1] %v3182
    %3439 = vst [vmem:[#allocation6 + $0x7] sm:$0x1] %v3183
    %3440 = vst [vmem:[#allocation6 + $0x8] sm:$0x1] %v3184
    %3441 = vst [vmem:[#allocation6 + $0x9] sm:$0x1] %v3185
    %3442 = vst [vmem:[#allocation6 + $0xa] sm:$0x1] %v3186
    %3443 = vst [vmem:[#allocation6 + $0xb] sm:$0x1] %v3187
    %3444 = vst [vmem:[#allocation6 + $0xc] sm:$0x1] %v3188
    %3445 = vst [vmem:[#allocation6 + $0xd] sm:$0x1] %v3189
    %3446 = vst [vmem:[#allocation6 + $0xe] sm:$0x1] %v3190
    %3447 = vst [vmem:[#allocation6 + $0xf] sm:$0x1] %v3191
    %3448 = vst [vmem:[#allocation6 + $0x10] sm:$0x1] %v3192
    %3449 = vst [vmem:[#allocation6 + $0x11] sm:$0x1] %v3193
    %3450 = vst [vmem:[#allocation6 + $0x12] sm:$0x1] %v3194
    %3451 = vst [vmem:[#allocation6 + $0x13] sm:$0x1] %v3195
    %3452 = vst [vmem:[#allocation6 + $0x14] sm:$0x1] %v3196
    %3453 = vst [vmem:[#allocation6 + $0x15] sm:$0x1] %v3197
    %3454 = vst [vmem:[#allocation6 + $0x16] sm:$0x1] %v3198
    %3455 = vst [vmem:[#allocation6 + $0x17] sm:$0x1] %v3199
    %3456 = vst [vmem:[#allocation6 + $0x18] sm:$0x1] %v3200
    %3457 = vst [vmem:[#allocation6 + $0x19] sm:$0x1] %v3201
    %3458 = vst [vmem:[#allocation6 + $0x1a] sm:$0x1] %v3202
    %3459 = vst [vmem:[#allocation6 + $0x1b] sm:$0x1] %v3203
    %3460 = vst [vmem:[#allocation6 + $0x1c] sm:$0x1] %v3204
    %3461 = vst [vmem:[#allocation6 + $0x1d] sm:$0x1] %v3205
    %3462 = vst [vmem:[#allocation6 + $0x1e] sm:$0x1] %v3206
    %3463 = vst [vmem:[#allocation6 + $0x1f] sm:$0x1] %v3207
    %3464 = vst [vmem:[#allocation6 + $0x20] sm:$0x1] %v3208
    %3465 = vst [vmem:[#allocation6 + $0x21] sm:$0x1] %v3209
    %3466 = vst [vmem:[#allocation6 + $0x22] sm:$0x1] %v3210
    %3467 = vst [vmem:[#allocation6 + $0x23] sm:$0x1] %v3211
    %3468 = vst [vmem:[#allocation6 + $0x24] sm:$0x1] %v3212
    %3469 = vst [vmem:[#allocation6 + $0x25] sm:$0x1] %v3213
    %3470 = vst [vmem:[#allocation6 + $0x26] sm:$0x1] %v3214
    %3471 = vst [vmem:[#allocation6 + $0x27] sm:$0x1] %v3215
    %3472 = vst [vmem:[#allocation6 + $0x28] sm:$0x1] %v3216
    %3473 = vst [vmem:[#allocation6 + $0x29] sm:$0x1] %v3217
    %3474 = vst [vmem:[#allocation6 + $0x2a] sm:$0x1] %v3218
    %3475 = vst [vmem:[#allocation6 + $0x2b] sm:$0x1] %v3219
    %3476 = vst [vmem:[#allocation6 + $0x2c] sm:$0x1] %v3220
    %3477 = vst [vmem:[#allocation6 + $0x2d] sm:$0x1] %v3221
    %3478 = vst [vmem:[#allocation6 + $0x2e] sm:$0x1] %v3222
    %3479 = vst [vmem:[#allocation6 + $0x2f] sm:$0x1] %v3223
    %3480 = vst [vmem:[#allocation6 + $0x30] sm:$0x1] %v3224
    %3481 = vst [vmem:[#allocation6 + $0x31] sm:$0x1] %v3225
    %3482 = vst [vmem:[#allocation6 + $0x32] sm:$0x1] %v3226
    %3483 = vst [vmem:[#allocation6 + $0x33] sm:$0x1] %v3227
    %3484 = vst [vmem:[#allocation6 + $0x34] sm:$0x1] %v3228
    %3485 = vst [vmem:[#allocation6 + $0x35] sm:$0x1] %v3229
    %3486 = vst [vmem:[#allocation6 + $0x36] sm:$0x1] %v3230
    %3487 = vst [vmem:[#allocation6 + $0x37] sm:$0x1] %v3231
    %3488 = vst [vmem:[#allocation6 + $0x38] sm:$0x1] %v3232
    %3489 = vst [vmem:[#allocation6 + $0x39] sm:$0x1] %v3233
    %3490 = vst [vmem:[#allocation6 + $0x3a] sm:$0x1] %v3234
    %3491 = vst [vmem:[#allocation6 + $0x3b] sm:$0x1] %v3235
    %3492 = vst [vmem:[#allocation6 + $0x3c] sm:$0x1] %v3236
    %3493 = vst [vmem:[#allocation6 + $0x3d] sm:$0x1] %v3237
    %3494 = vst [vmem:[#allocation6 + $0x3e] sm:$0x1] %v3238
    %3495 = vst [vmem:[#allocation6 + $0x3f] sm:$0x1] %v3239
    %3496 = vst [vmem:[#allocation6 + $0x40] sm:$0x1] %v3240
    %3497 = vst [vmem:[#allocation6 + $0x41] sm:$0x1] %v3241
    %3498 = vst [vmem:[#allocation6 + $0x42] sm:$0x1] %v3242
    %3499 = vst [vmem:[#allocation6 + $0x43] sm:$0x1] %v3243
    %3500 = vst [vmem:[#allocation6 + $0x44] sm:$0x1] %v3244
    %3501 = vst [vmem:[#allocation6 + $0x45] sm:$0x1] %v3245
    %3502 = vst [vmem:[#allocation6 + $0x46] sm:$0x1] %v3246
    %3503 = vst [vmem:[#allocation6 + $0x47] sm:$0x1] %v3247
    %3504 = vst [vmem:[#allocation6 + $0x48] sm:$0x1] %v3248
    %3505 = vst [vmem:[#allocation6 + $0x49] sm:$0x1] %v3249
    %3506 = vst [vmem:[#allocation6 + $0x4a] sm:$0x1] %v3250
    %3507 = vst [vmem:[#allocation6 + $0x4b] sm:$0x1] %v3251
    %3508 = vst [vmem:[#allocation6 + $0x4c] sm:$0x1] %v3252
    %3509 = vst [vmem:[#allocation6 + $0x4d] sm:$0x1] %v3253
    %3510 = vst [vmem:[#allocation6 + $0x4e] sm:$0x1] %v3254
    %3511 = vst [vmem:[#allocation6 + $0x4f] sm:$0x1] %v3255
    %3512 = vst [vmem:[#allocation6 + $0x50] sm:$0x1] %v3256
    %3513 = vst [vmem:[#allocation6 + $0x51] sm:$0x1] %v3257
    %3514 = vst [vmem:[#allocation6 + $0x52] sm:$0x1] %v3258
    %3515 = vst [vmem:[#allocation6 + $0x53] sm:$0x1] %v3259
    %3516 = vst [vmem:[#allocation6 + $0x54] sm:$0x1] %v3260
    %3517 = vst [vmem:[#allocation6 + $0x55] sm:$0x1] %v3261
    %3518 = vst [vmem:[#allocation6 + $0x56] sm:$0x1] %v3262
    %3519 = vst [vmem:[#allocation6 + $0x57] sm:$0x1] %v3263
    %3520 = vst [vmem:[#allocation6 + $0x58] sm:$0x1] %v3264
    %3521 = vst [vmem:[#allocation6 + $0x59] sm:$0x1] %v3265
    %3522 = vst [vmem:[#allocation6 + $0x5a] sm:$0x1] %v3266
    %3523 = vst [vmem:[#allocation6 + $0x5b] sm:$0x1] %v3267
    %3524 = vst [vmem:[#allocation6 + $0x5c] sm:$0x1] %v3268
    %3525 = vst [vmem:[#allocation6 + $0x5d] sm:$0x1] %v3269
    %3526 = vst [vmem:[#allocation6 + $0x5e] sm:$0x1] %v3270
    %3527 = vst [vmem:[#allocation6 + $0x5f] sm:$0x1] %v3271
    %3528 = vst [vmem:[#allocation6 + $0x60] sm:$0x1] %v3272
    %3529 = vst [vmem:[#allocation6 + $0x61] sm:$0x1] %v3273
    %3530 = vst [vmem:[#allocation6 + $0x62] sm:$0x1] %v3274
    %3531 = vst [vmem:[#allocation6 + $0x63] sm:$0x1] %v3275
    %3532 = vst [vmem:[#allocation6 + $0x64] sm:$0x1] %v3276
    %3533 = vst [vmem:[#allocation6 + $0x65] sm:$0x1] %v3277
    %3534 = vst [vmem:[#allocation6 + $0x66] sm:$0x1] %v3278
    %3535 = vst [vmem:[#allocation6 + $0x67] sm:$0x1] %v3279
    %3536 = vst [vmem:[#allocation6 + $0x68] sm:$0x1] %v3280
    %3537 = vst [vmem:[#allocation6 + $0x69] sm:$0x1] %v3281
    %3538 = vst [vmem:[#allocation6 + $0x6a] sm:$0x1] %v3282
    %3539 = vst [vmem:[#allocation6 + $0x6b] sm:$0x1] %v3283
    %3540 = vst [vmem:[#allocation6 + $0x6c] sm:$0x1] %v3284
    %3541 = vst [vmem:[#allocation6 + $0x6d] sm:$0x1] %v3285
    %3542 = vst [vmem:[#allocation6 + $0x6e] sm:$0x1] %v3286
    %3543 = vst [vmem:[#allocation6 + $0x6f] sm:$0x1] %v3287
    %3544 = vst [vmem:[#allocation6 + $0x70] sm:$0x1] %v3288
    %3545 = vst [vmem:[#allocation6 + $0x71] sm:$0x1] %v3289
    %3546 = vst [vmem:[#allocation6 + $0x72] sm:$0x1] %v3290
    %3547 = vst [vmem:[#allocation6 + $0x73] sm:$0x1] %v3291
    %3548 = vst [vmem:[#allocation6 + $0x74] sm:$0x1] %v3292
    %3549 = vst [vmem:[#allocation6 + $0x75] sm:$0x1] %v3293
    %3550 = vst [vmem:[#allocation6 + $0x76] sm:$0x1] %v3294
    %3551 = vst [vmem:[#allocation6 + $0x77] sm:$0x1] %v3295
    %3552 = vst [vmem:[#allocation6 + $0x78] sm:$0x1] %v3296
    %3553 = vst [vmem:[#allocation6 + $0x79] sm:$0x1] %v3297
    %3554 = vst [vmem:[#allocation6 + $0x7a] sm:$0x1] %v3298
    %3555 = vst [vmem:[#allocation6 + $0x7b] sm:$0x1] %v3299
    %3556 = vst [vmem:[#allocation6 + $0x7c] sm:$0x1] %v3300
    %3557 = vst [vmem:[#allocation6 + $0x7d] sm:$0x1] %v3301
    %3558 = vst [vmem:[#allocation6 + $0x7e] sm:$0x1] %v3302
    %3559 = vst [vmem:[#allocation6 + $0x7f] sm:$0x1] %v3303
    %3560 = vst [vmem:[#allocation6 + $0x80] sm:$0x1] %v3304
    %3561 = vst [vmem:[#allocation6 + $0x81] sm:$0x1] %v3305
    %3562 = vst [vmem:[#allocation6 + $0x82] sm:$0x1] %v3306
    %3563 = vst [vmem:[#allocation6 + $0x83] sm:$0x1] %v3307
    %3564 = vst [vmem:[#allocation6 + $0x84] sm:$0x1] %v3308
    %3565 = vst [vmem:[#allocation6 + $0x85] sm:$0x1] %v3309
    %3566 = vst [vmem:[#allocation6 + $0x86] sm:$0x1] %v3310
    %3567 = vst [vmem:[#allocation6 + $0x87] sm:$0x1] %v3311
    %3568 = vst [vmem:[#allocation6 + $0x88] sm:$0x1] %v3312
    %3569 = vst [vmem:[#allocation6 + $0x89] sm:$0x1] %v3313
    %3570 = vst [vmem:[#allocation6 + $0x8a] sm:$0x1] %v3314
    %3571 = vst [vmem:[#allocation6 + $0x8b] sm:$0x1] %v3315
    %3572 = vst [vmem:[#allocation6 + $0x8c] sm:$0x1] %v3316
    %3573 = vst [vmem:[#allocation6 + $0x8d] sm:$0x1] %v3317
    %3574 = vst [vmem:[#allocation6 + $0x8e] sm:$0x1] %v3318
    %3575 = vst [vmem:[#allocation6 + $0x8f] sm:$0x1] %v3319
    %3576 = vst [vmem:[#allocation6 + $0x90] sm:$0x1] %v3320
    %3577 = vst [vmem:[#allocation6 + $0x91] sm:$0x1] %v3321
    %3578 = vst [vmem:[#allocation6 + $0x92] sm:$0x1] %v3322
    %3579 = vst [vmem:[#allocation6 + $0x93] sm:$0x1] %v3323
    %3580 = vst [vmem:[#allocation6 + $0x94] sm:$0x1] %v3324
    %3581 = vst [vmem:[#allocation6 + $0x95] sm:$0x1] %v3325
    %3582 = vst [vmem:[#allocation6 + $0x96] sm:$0x1] %v3326
    %3583 = vst [vmem:[#allocation6 + $0x97] sm:$0x1] %v3327
    %3584 = vst [vmem:[#allocation6 + $0x98] sm:$0x1] %v3328
    %3585 = vst [vmem:[#allocation6 + $0x99] sm:$0x1] %v3329
    %3586 = vst [vmem:[#allocation6 + $0x9a] sm:$0x1] %v3330
    %3587 = vst [vmem:[#allocation6 + $0x9b] sm:$0x1] %v3331
    %3588 = vst [vmem:[#allocation6 + $0x9c] sm:$0x1] %v3332
    %3589 = vst [vmem:[#allocation6 + $0x9d] sm:$0x1] %v3333
    %3590 = vst [vmem:[#allocation6 + $0x9e] sm:$0x1] %v3334
    %3591 = vst [vmem:[#allocation6 + $0x9f] sm:$0x1] %v3335
    %3592 = vst [vmem:[#allocation6 + $0xa0] sm:$0x1] %v3336
    %3593 = vst [vmem:[#allocation6 + $0xa1] sm:$0x1] %v3337
    %3594 = vst [vmem:[#allocation6 + $0xa2] sm:$0x1] %v3338
    %3595 = vst [vmem:[#allocation6 + $0xa3] sm:$0x1] %v3339
    %3596 = vst [vmem:[#allocation6 + $0xa4] sm:$0x1] %v3340
    %3597 = vst [vmem:[#allocation6 + $0xa5] sm:$0x1] %v3341
    %3598 = vst [vmem:[#allocation6 + $0xa6] sm:$0x1] %v3342
    %3599 = vst [vmem:[#allocation6 + $0xa7] sm:$0x1] %v3343
    %3600 = vst [vmem:[#allocation6 + $0xa8] sm:$0x1] %v3344
    %3601 = vst [vmem:[#allocation6 + $0xa9] sm:$0x1] %v3345
    %3602 = vst [vmem:[#allocation6 + $0xaa] sm:$0x1] %v3346
    %3603 = vst [vmem:[#allocation6 + $0xab] sm:$0x1] %v3347
    %3604 = vst [vmem:[#allocation6 + $0xac] sm:$0x1] %v3348
    %3605 = vst [vmem:[#allocation6 + $0xad] sm:$0x1] %v3349
    %3606 = vst [vmem:[#allocation6 + $0xae] sm:$0x1] %v3350
    %3607 = vst [vmem:[#allocation6 + $0xaf] sm:$0x1] %v3351
    %3608 = vst [vmem:[#allocation6 + $0xb0] sm:$0x1] %v3352
    %3609 = vst [vmem:[#allocation6 + $0xb1] sm:$0x1] %v3353
    %3610 = vst [vmem:[#allocation6 + $0xb2] sm:$0x1] %v3354
    %3611 = vst [vmem:[#allocation6 + $0xb3] sm:$0x1] %v3355
    %3612 = vst [vmem:[#allocation6 + $0xb4] sm:$0x1] %v3356
    %3613 = vst [vmem:[#allocation6 + $0xb5] sm:$0x1] %v3357
    %3614 = vst [vmem:[#allocation6 + $0xb6] sm:$0x1] %v3358
    %3615 = vst [vmem:[#allocation6 + $0xb7] sm:$0x1] %v3359
    %3616 = vst [vmem:[#allocation6 + $0xb8] sm:$0x1] %v3360
    %3617 = vst [vmem:[#allocation6 + $0xb9] sm:$0x1] %v3361
    %3618 = vst [vmem:[#allocation6 + $0xba] sm:$0x1] %v3362
    %3619 = vst [vmem:[#allocation6 + $0xbb] sm:$0x1] %v3363
    %3620 = vst [vmem:[#allocation6 + $0xbc] sm:$0x1] %v3364
    %3621 = vst [vmem:[#allocation6 + $0xbd] sm:$0x1] %v3365
    %3622 = vst [vmem:[#allocation6 + $0xbe] sm:$0x1] %v3366
    %3623 = vst [vmem:[#allocation6 + $0xbf] sm:$0x1] %v3367
    %3624 = vst [vmem:[#allocation6 + $0xc0] sm:$0x1] %v3368
    %3625 = vst [vmem:[#allocation6 + $0xc1] sm:$0x1] %v3369
    %3626 = vst [vmem:[#allocation6 + $0xc2] sm:$0x1] %v3370
    %3627 = vst [vmem:[#allocation6 + $0xc3] sm:$0x1] %v3371
    %3628 = vst [vmem:[#allocation6 + $0xc4] sm:$0x1] %v3372
    %3629 = vst [vmem:[#allocation6 + $0xc5] sm:$0x1] %v3373
    %3630 = vst [vmem:[#allocation6 + $0xc6] sm:$0x1] %v3374
    %3631 = vst [vmem:[#allocation6 + $0xc7] sm:$0x1] %v3375
    %3632 = vst [vmem:[#allocation6 + $0xc8] sm:$0x1] %v3376
    %3633 = vst [vmem:[#allocation6 + $0xc9] sm:$0x1] %v3377
    %3634 = vst [vmem:[#allocation6 + $0xca] sm:$0x1] %v3378
    %3635 = vst [vmem:[#allocation6 + $0xcb] sm:$0x1] %v3379
    %3636 = vst [vmem:[#allocation6 + $0xcc] sm:$0x1] %v3380
    %3637 = vst [vmem:[#allocation6 + $0xcd] sm:$0x1] %v3381
    %3638 = vst [vmem:[#allocation6 + $0xce] sm:$0x1] %v3382
    %3639 = vst [vmem:[#allocation6 + $0xcf] sm:$0x1] %v3383
    %3640 = vst [vmem:[#allocation6 + $0xd0] sm:$0x1] %v3384
    %3641 = vst [vmem:[#allocation6 + $0xd1] sm:$0x1] %v3385
    %3642 = vst [vmem:[#allocation6 + $0xd2] sm:$0x1] %v3386
    %3643 = vst [vmem:[#allocation6 + $0xd3] sm:$0x1] %v3387
    %3644 = vst [vmem:[#allocation6 + $0xd4] sm:$0x1] %v3388
    %3645 = vst [vmem:[#allocation6 + $0xd5] sm:$0x1] %v3389
    %3646 = vst [vmem:[#allocation6 + $0xd6] sm:$0x1] %v3390
    %3647 = vst [vmem:[#allocation6 + $0xd7] sm:$0x1] %v3391
    %3648 = vst [vmem:[#allocation6 + $0xd8] sm:$0x1] %v3392
    %3649 = vst [vmem:[#allocation6 + $0xd9] sm:$0x1] %v3393
    %3650 = vst [vmem:[#allocation6 + $0xda] sm:$0x1] %v3394
    %3651 = vst [vmem:[#allocation6 + $0xdb] sm:$0x1] %v3395
    %3652 = vst [vmem:[#allocation6 + $0xdc] sm:$0x1] %v3396
    %3653 = vst [vmem:[#allocation6 + $0xdd] sm:$0x1] %v3397
    %3654 = vst [vmem:[#allocation6 + $0xde] sm:$0x1] %v3398
    %3655 = vst [vmem:[#allocation6 + $0xdf] sm:$0x1] %v3399
    %3656 = vst [vmem:[#allocation6 + $0xe0] sm:$0x1] %v3400
    %3657 = vst [vmem:[#allocation6 + $0xe1] sm:$0x1] %v3401
    %3658 = vst [vmem:[#allocation6 + $0xe2] sm:$0x1] %v3402
    %3659 = vst [vmem:[#allocation6 + $0xe3] sm:$0x1] %v3403
    %3660 = vst [vmem:[#allocation6 + $0xe4] sm:$0x1] %v3404
    %3661 = vst [vmem:[#allocation6 + $0xe5] sm:$0x1] %v3405
    %3662 = vst [vmem:[#allocation6 + $0xe6] sm:$0x1] %v3406
    %3663 = vst [vmem:[#allocation6 + $0xe7] sm:$0x1] %v3407
    %3664 = vst [vmem:[#allocation6 + $0xe8] sm:$0x1] %v3408
    %3665 = vst [vmem:[#allocation6 + $0xe9] sm:$0x1] %v3409
    %3666 = vst [vmem:[#allocation6 + $0xea] sm:$0x1] %v3410
    %3667 = vst [vmem:[#allocation6 + $0xeb] sm:$0x1] %v3411
    %3668 = vst [vmem:[#allocation6 + $0xec] sm:$0x1] %v3412
    %3669 = vst [vmem:[#allocation6 + $0xed] sm:$0x1] %v3413
    %3670 = vst [vmem:[#allocation6 + $0xee] sm:$0x1] %v3414
    %3671 = vst [vmem:[#allocation6 + $0xef] sm:$0x1] %v3415
    %3672 = vst [vmem:[#allocation6 + $0xf0] sm:$0x1] %v3416
    %3673 = vst [vmem:[#allocation6 + $0xf1] sm:$0x1] %v3417
    %3674 = vst [vmem:[#allocation6 + $0xf2] sm:$0x1] %v3418
    %3675 = vst [vmem:[#allocation6 + $0xf3] sm:$0x1] %v3419
    %3676 = vst [vmem:[#allocation6 + $0xf4] sm:$0x1] %v3420
    %3677 = vst [vmem:[#allocation6 + $0xf5] sm:$0x1] %v3421
    %3678 = vst [vmem:[#allocation6 + $0xf6] sm:$0x1] %v3422
    %3679 = vst [vmem:[#allocation6 + $0xf7] sm:$0x1] %v3423
    %3680 = vst [vmem:[#allocation6 + $0xf8] sm:$0x1] %v3424
    %3681 = vst [vmem:[#allocation6 + $0xf9] sm:$0x1] %v3425
    %3682 = vst [vmem:[#allocation6 + $0xfa] sm:$0x1] %v3426
    %3683 = vst [vmem:[#allocation6 + $0xfb] sm:$0x1] %v3427
    %3684 = vst [vmem:[#allocation6 + $0xfc] sm:$0x1] %v3428
    %3685 = vst [vmem:[#allocation6 + $0xfd] sm:$0x1] %v3429
    %3686 = vst [vmem:[#allocation6 + $0xfe] sm:$0x1] %v3430
    %3687 = vst [vmem:[#allocation6 + $0xff] sm:$0x1] %v3431
    // Predicated region
    $region10: #{tpu_custom_call.1} parent=1 // pred_check
      _
    $region11: #{tpu_custom_call.1} parent=1 // pred_check_branch
      %3689 = sbr.rel (0) target = $region13
    $region12: #{tpu_custom_call.1} parent=1 // pred_region
      %3691 = vsyncadd [#allocation5], 0
      %s3692 = sshll.u32 [#allocation6], 4
      %s3693 = int_to_ptr.vmem [resolvable:$true] %s3692
      %s3694 = sshll.u32 %s1, 4
      %s3695 = int_to_ptr.hbm [resolvable:$true] %s3694
      %3700 = dma.vmem_to_hbm [thread:$0]  %s3693, 4096, %s3695, [#allocation5], 16, 16, 1
    $region13: #{tpu_custom_call.1} parent=1 // pred_fallthru
      _
    // Predicated region
    $region14: #{tpu_custom_call.1} parent=1 // pred_check
      _
    $region15: #{tpu_custom_call.1} parent=1 // pred_check_branch
      %3702 = sbr.rel (0) target = $region17
    $region16: #{tpu_custom_call.1} parent=1 // pred_region
      %3704 = dma.done [#allocation5], 4096
    $region17: #{tpu_custom_call.1} parent=1 // pred_fallthru
      _
    %3705 = vsyncpa [#allocation4], 1
    %3706 = vsyncpa [#allocation5], 1

</llo_original>
